<compile_context>
chip_gen: v6e
topology: v6e:2x2x1
jax: 0.10.0
libtpu: 0.0.40
codegen_flags: <defaults>
</compile_context>

<pallas_src>
import functools
import math

import jax
import jax.numpy as jnp
from jax.experimental import pallas as pl
from jax.experimental.pallas import tpu as pltpu

_BN_EPS = 1e-5


def _vmem_limit():
    try:
        cap = pltpu.get_tpu_info().vmem_capacity_bytes
    except Exception:
        cap = 64 * 1024 * 1024          # conservative (v7x per-TC VMEM)
    # ~25% headroom for double-buffering + compiler scratch; cap at 100 MiB.
    return min(int(cap * 3 // 4), 100 * 1024 * 1024)


_VMEM_LIMIT = _vmem_limit()


def _round_up(x, m):
    return ((x + m - 1) // m) * m


def _m_tile(M):
    """Padding-aware M tiling; prefer >=2 grid blocks (v7x megacore)."""
    cands = []
    for bm in (128, 256, 512):
        Mp = _round_up(M, bm)
        cands.append((Mp - M, bm, Mp))
    min_pad = min(c[0] for c in cands)
    cands = [c for c in cands if c[0] == min_pad]
    multi = [c for c in cands if c[2] // c[1] >= 2]
    pick = max(multi, key=lambda c: c[1]) if multi else max(cands, key=lambda c: c[1])
    return pick[1], pick[2]


def _n_tile(N):
    bn = min(256, _round_up(N, 128))
    return bn, _round_up(N, bn)


def _k_tile(Kp):
    if Kp <= 2048:
        return Kp
    for bk in (2048, 1024, 512, 256, 128):
        if Kp % bk == 0:
            return bk
    return Kp


def _row_tile(Mp):
    for bm in (512, 256, 128):
        if Mp % bm == 0 and Mp // bm >= 2:
            return bm
    return Mp


# ----------------------------- Pallas kernels ------------------------------

def _gemm_epilogue_kernel(a_ref, b_ref, s_ref, t_ref, o_ref, acc_ref, *, act):
    # o = act((a @ b) * s + t); bf16 operands, f32 accumulation on the MXU.
    # Grid = (M, N, K) with K innermost / "arbitrary"; acc_ref is VMEM f32.
    @pl.when(pl.program_id(2) == 0)
    def _():
        acc_ref[...] = jnp.zeros_like(acc_ref)

    acc_ref[...] += jnp.dot(a_ref[...], b_ref[...],
                            preferred_element_type=jnp.float32)

    @pl.when(pl.program_id(2) == pl.num_programs(2) - 1)
    def _():
        y = acc_ref[...] * s_ref[...] + t_ref[...]
        if act == "leaky":
            y = jnp.where(y > 0, y, 0.2 * y)
        elif act == "tanh":
            y = jnp.tanh(y)
        o_ref[...] = y.astype(o_ref.dtype)


def _gemm_stats_kernel(a_ref, b_ref, o_ref, sum_ref, ssq_ref):
    # o = a @ b (bf16 out) plus per-column sum / sum-of-squares accumulated
    # in f32 across the M grid axis (fused BatchNorm statistics). Zero-padded
    # rows of A contribute exactly zero to both accumulators.
    acc = jnp.dot(a_ref[...], b_ref[...], preferred_element_type=jnp.float32)
    o_ref[...] = acc.astype(o_ref.dtype)

    @pl.when(pl.program_id(1) == 0)
    def _():
        sum_ref[...] = jnp.zeros_like(sum_ref)
        ssq_ref[...] = jnp.zeros_like(ssq_ref)

    sum_ref[...] = sum_ref[...] + jnp.sum(acc, axis=0, keepdims=True)
    ssq_ref[...] = ssq_ref[...] + jnp.sum(acc * acc, axis=0, keepdims=True)


def _col_stats_kernel(x_ref, sum_ref, ssq_ref):
    # Per-column sum / sum-of-squares over the M grid axis (decoder BN stats).
    x = x_ref[...].astype(jnp.float32)

    @pl.when(pl.program_id(0) == 0)
    def _():
        sum_ref[...] = jnp.zeros_like(sum_ref)
        ssq_ref[...] = jnp.zeros_like(ssq_ref)

    sum_ref[...] = sum_ref[...] + jnp.sum(x, axis=0, keepdims=True)
    ssq_ref[...] = ssq_ref[...] + jnp.sum(x * x, axis=0, keepdims=True)


def _affine_act_kernel(x_ref, s_ref, t_ref, o_ref, *, act):
    y = x_ref[...].astype(jnp.float32) * s_ref[...] + t_ref[...]
    if act == "leaky":
        y = jnp.where(y > 0, y, 0.2 * y)
    elif act == "tanh":
        y = jnp.tanh(y)
    o_ref[...] = y.astype(o_ref.dtype)


# ----------------------------- kernel wrappers ------------------------------

def _pad_vec(v, N, Np):
    return jnp.zeros((1, Np), jnp.float32).at[0, :N].set(v.astype(jnp.float32))


def _pad_mat(a, Mp, Kp, dtype):
    M, K = a.shape
    return jnp.pad(a.astype(dtype), ((0, Mp - M), (0, Kp - K)))


def fused_gemm(a, wp, scale=None, shift=None, act="none", out_dtype=jnp.bfloat16):
    """act((a @ W) * scale + shift); a: (M, K), W pre-padded bf16. Returns (M, N)."""
    M, K = a.shape
    assert K == wp["K"]
    N, Kp, Np, bn = wp["N"], wp["Kp"], wp["Np"], wp["bn"]
    bm, Mp = _m_tile(M)
    bk = _k_tile(Kp)
    a_p = _pad_mat(a, Mp, Kp, jnp.bfloat16)
    s = jnp.ones((N,), jnp.float32) if scale is None else scale
    t = jnp.zeros((N,), jnp.float32) if shift is None else shift
    out = pl.pallas_call(
        functools.partial(_gemm_epilogue_kernel, act=act),
        out_shape=jax.ShapeDtypeStruct((Mp, Np), out_dtype),
        grid=(Mp // bm, Np // bn, Kp // bk),
        in_specs=[pl.BlockSpec((bm, bk), lambda i, j, k: (i, k)),
                  pl.BlockSpec((bk, bn), lambda i, j, k: (k, j)),
                  pl.BlockSpec((1, bn), lambda i, j, k: (0, j)),
                  pl.BlockSpec((1, bn), lambda i, j, k: (0, j))],
        out_specs=pl.BlockSpec((bm, bn), lambda i, j, k: (i, j)),
        scratch_shapes=[pltpu.VMEM((bm, bn), jnp.float32)],
        compiler_params=pltpu.CompilerParams(
            dimension_semantics=("parallel", "parallel", "arbitrary"),
            vmem_limit_bytes=_VMEM_LIMIT),
    )(a_p, wp["mat"], _pad_vec(s, N, Np), _pad_vec(t, N, Np))
    return out[:M, :N]


def gemm_with_stats(a, wp):
    """a @ W (padded bf16 output) plus per-column sum / sumsq in f32."""
    M, K = a.shape
    assert K == wp["K"]
    N, Kp, Np, bn = wp["N"], wp["Kp"], wp["Np"], wp["bn"]
    bm, Mp = _m_tile(M)
    a_p = _pad_mat(a, Mp, Kp, jnp.bfloat16)
    # TODO(synk): add K-axis tiling here too for very deep channel counts.
    out, csum, cssq = pl.pallas_call(
        _gemm_stats_kernel,
        out_shape=(jax.ShapeDtypeStruct((Mp, Np), jnp.bfloat16),
                   jax.ShapeDtypeStruct((8, Np), jnp.float32),
                   jax.ShapeDtypeStruct((8, Np), jnp.float32)),
        grid=(Np // bn, Mp // bm),                    # M (stats reduction) last
        in_specs=[pl.BlockSpec((bm, Kp), lambda j, i: (i, 0)),
                  pl.BlockSpec((Kp, bn), lambda j, i: (0, j))],
        out_specs=(pl.BlockSpec((bm, bn), lambda j, i: (i, j)),
                   pl.BlockSpec((8, bn), lambda j, i: (0, j)),
                   pl.BlockSpec((8, bn), lambda j, i: (0, j))),
        compiler_params=pltpu.CompilerParams(
            dimension_semantics=("parallel", "arbitrary"),
            vmem_limit_bytes=_VMEM_LIMIT),
    )(a_p, wp["mat"])
    return out, csum[0, :N], cssq[0, :N]


def column_stats_padded(x_p):
    """Per-column sum / sumsq of an already-padded (Mp, Cp) array."""
    Mp, Cp = x_p.shape
    bm = _row_tile(Mp)
    csum, cssq = pl.pallas_call(
        _col_stats_kernel,
        out_shape=(jax.ShapeDtypeStruct((8, Cp), jnp.float32),
                   jax.ShapeDtypeStruct((8, Cp), jnp.float32)),
        grid=(Mp // bm,),
        in_specs=[pl.BlockSpec((bm, Cp), lambda i: (i, 0))],
        out_specs=(pl.BlockSpec((8, Cp), lambda i: (0, 0)),
                   pl.BlockSpec((8, Cp), lambda i: (0, 0))),
        compiler_params=pltpu.CompilerParams(
            dimension_semantics=("arbitrary",),
            vmem_limit_bytes=_VMEM_LIMIT),
    )(x_p)
    return csum[0], cssq[0]


def affine_act_padded(x_p, scale_p, shift_p, act, out_dtype):
    """act(x * scale + shift) on an already-padded (Mp, Cp) array, tiled rows."""
    Mp, Cp = x_p.shape
    bm = _row_tile(Mp)
    return pl.pallas_call(
        functools.partial(_affine_act_kernel, act=act),
        out_shape=jax.ShapeDtypeStruct((Mp, Cp), out_dtype),
        grid=(Mp // bm,),
        in_specs=[pl.BlockSpec((bm, Cp), lambda i: (i, 0)),
                  pl.BlockSpec((1, Cp), lambda i: (0, 0)),
                  pl.BlockSpec((1, Cp), lambda i: (0, 0))],
        out_specs=pl.BlockSpec((bm, Cp), lambda i: (i, 0)),
        compiler_params=pltpu.CompilerParams(
            dimension_semantics=("parallel",),
            vmem_limit_bytes=_VMEM_LIMIT),
    )(x_p, scale_p, shift_p)


# ------------------------------- conv glue ---------------------------------
# TODO(synk): im2col / col2im remain XLA glue (implicit GEMM with shifted
# loads inside the Pallas kernel not implemented); both stay NHWC so channels
# sit lane-dense and no transposes are needed.

def _im2col_nhwc(xn, k, stride, pad):
    """xn: (B, H, W, C) bf16 -> (B*Ho*Wo, k*k*C) bf16; column order (kh, kw, c)."""
    B, H, W, C = xn.shape
    xp = jnp.pad(xn, ((0, 0), (pad, pad), (pad, pad), (0, 0)))
    Ho = (H + 2 * pad - k) // stride + 1
    Wo = (W + 2 * pad - k) // stride + 1
    cols = [xp[:, kh:kh + (Ho - 1) * stride + 1:stride,
                  kw:kw + (Wo - 1) * stride + 1:stride, :]
            for kh in range(k) for kw in range(k)]
    patches = jnp.concatenate(cols, axis=-1)        # (B, Ho, Wo, k*k*C)
    return patches.reshape(B * Ho * Wo, k * k * C), Ho, Wo


def conv_transpose_mat(xm, B, H, W, wp, stride, pad):
    """PyTorch ConvTranspose2d (no bias) as transposed GEMM + NHWC col2im
    overlap-add (Cout lane-dense, no transposes). xm: (B*H*W, Cin), rows in
    (b, h, w) order. Returns f32 (B*Ho*Wo, Cout), Ho, Wo."""
    k, Cout = wp["k"], wp["cout"]
    y = fused_gemm(xm, wp, act="none")              # (B*H*W, k*k*Cout) bf16
    y = y.reshape(B, H, W, k, k, Cout)
    Hf, Wf = (H - 1) * stride + k, (W - 1) * stride + k
    full = jnp.zeros((B, Hf, Wf, Cout), jnp.float32)
    for dh in range(k):
        for dw in range(k):
            full = full.at[:, dh:dh + (H - 1) * stride + 1:stride,
                              dw:dw + (W - 1) * stride + 1:stride, :].add(
                                  y[:, :, :, dh, dw, :].astype(jnp.float32))
    Ho, Wo = Hf - 2 * pad, Wf - 2 * pad
    out = full[:, pad:pad + Ho, pad:pad + Wo, :]
    return out.reshape(B * Ho * Wo, Cout), Ho, Wo


def _bn_scale_shift(mean, var, gamma, beta):
    scale = gamma * jax.lax.rsqrt(var + _BN_EPS)
    return scale, beta - mean * scale


# ------------------------------- parameters --------------------------------

def init_params(key, imageSize, nc, ngf, nz):
    n = int(round(math.log2(imageSize)))
    assert 2 ** n == imageSize and n >= 3
    keys = iter(jax.random.split(key, 64))
    s = 0.05

    def rand(shape):
        return jax.random.normal(next(keys), shape, jnp.float32) * s

    p = {}
    # Encoder
    p["enc_in_w"] = rand((ngf, nc, 4, 4))
    p["enc_pyr"] = []
    for i in range(n - 3):
        cin, cout = ngf * 2 ** i, ngf * 2 ** (i + 1)
        p["enc_pyr"].append({"w": rand((cout, cin, 4, 4)),
                             "gamma": jnp.ones((cout,), jnp.float32),
                             "beta": jnp.zeros((cout,), jnp.float32)})
    ctop = ngf * 2 ** (n - 3)
    p["conv1_w"], p["conv1_b"] = rand((nz, ctop, 4, 4)), rand((nz,))
    p["conv2_w"], p["conv2_b"] = rand((nz, ctop, 4, 4)), rand((nz,))
    # Decoder (ConvTranspose weights are (Cin, Cout, k, k))
    p["dec_in_w"] = rand((nz, ctop, 4, 4))
    p["dec_in_gamma"] = jnp.ones((ctop,), jnp.float32)
    p["dec_in_beta"] = jnp.zeros((ctop,), jnp.float32)
    p["dec_pyr"] = []
    for i in range(n - 3, 0, -1):
        cin, cout = ngf * 2 ** i, ngf * 2 ** (i - 1)
        p["dec_pyr"].append({"w": rand((cin, cout, 4, 4)),
                             "gamma": jnp.ones((cout,), jnp.float32),
                             "beta": jnp.zeros((cout,), jnp.float32)})
    p["dec_out_w"] = rand((ngf, nc, 4, 4))
    return p


def _prep_gemm_weight(wm):
    K, N = wm.shape
    Kp = _round_up(K, 128)
    bn, Np = _n_tile(N)
    mat = jnp.zeros((Kp, Np), jnp.bfloat16).at[:K, :N].set(wm.astype(jnp.bfloat16))
    return {"mat": mat, "K": K, "N": N, "Kp": Kp, "Np": Np, "bn": bn}


def _conv_mat(w):
    # (Cout, Cin, k, k) -> (k*k*Cin, Cout); rows ordered (kh, kw, ci) to match im2col.
    Cout, Cin, k, _ = w.shape
    return jnp.transpose(w, (2, 3, 1, 0)).reshape(k * k * Cin, Cout)


def _prep_conv(w):
    return _prep_gemm_weight(_conv_mat(w))


def _prep_convT(w):
    # (Cin, Cout, k, k) -> (Cin, k*k*Cout); cols ordered (kh, kw, co) so col2im
    # stays NHWC / Cout lane-dense.
    Cin, Cout, k, _ = w.shape
    d = _prep_gemm_weight(jnp.transpose(w, (0, 2, 3, 1)).reshape(Cin, k * k * Cout))
    d["k"], d["cout"] = k, Cout
    return d


def prepare_params(p):
    """Pad / reshape / bf16-cast all weights once, outside the jitted forward."""
    prep = {"enc_in": _prep_conv(p["enc_in_w"]), "enc_pyr": [], "dec_pyr": []}
    for lp in p["enc_pyr"]:
        d = _prep_conv(lp["w"])
        d["gamma"], d["beta"] = lp["gamma"], lp["beta"]
        prep["enc_pyr"].append(d)
    # Merge mu / logvar projections into one GEMM (shared patch read, 1 launch).
    prep["conv12"] = _prep_gemm_weight(
        jnp.concatenate([_conv_mat(p["conv1_w"]), _conv_mat(p["conv2_w"])], axis=1))
    prep["conv12_b"] = jnp.concatenate([p["conv1_b"], p["conv2_b"]])
    prep["nz"] = int(p["conv1_b"].shape[0])
    d = _prep_convT(p["dec_in_w"])
    d["gamma"], d["beta"] = p["dec_in_gamma"], p["dec_in_beta"]
    prep["dec_in"] = d
    for lp in p["dec_pyr"]:
        d = _prep_convT(lp["w"])
        d["gamma"], d["beta"] = lp["gamma"], lp["beta"]
        prep["dec_pyr"].append(d)
    prep["dec_out"] = _prep_convT(p["dec_out_w"])
    return prep


# -------------------------------- forward ----------------------------------

def netg_forward(prep, x, eps_noise):
    B = x.shape[0]
    h = x.transpose(0, 2, 3, 1).astype(jnp.bfloat16)   # NHWC bf16, channels on lanes

    # --- Encoder ---
    pa, Ho, Wo = _im2col_nhwc(h, 4, 2, 1)
    m = fused_gemm(pa, prep["enc_in"], act="leaky")     # conv + LeakyReLU fused, bf16
    h = m.reshape(B, Ho, Wo, prep["enc_in"]["N"])
    for lp in prep["enc_pyr"]:
        pa, Ho, Wo = _im2col_nhwc(h, 4, 2, 1)
        M, N = pa.shape[0], lp["N"]
        y_p, csum, cssq = gemm_with_stats(pa, lp)       # conv + BN stats fused
        mean = csum / M
        var = jnp.maximum(cssq / M - mean * mean, 0.0)  # biased (PyTorch training)
        scale, shift = _bn_scale_shift(mean, var, lp["gamma"], lp["beta"])
        Np = y_p.shape[1]
        m_p = affine_act_padded(y_p, _pad_vec(scale, N, Np), _pad_vec(shift, N, Np),
                                "leaky", jnp.bfloat16)  # reuses padded GEMM output
        h = m_p[:M, :N].reshape(B, Ho, Wo, N)

    pa, _, _ = _im2col_nhwc(h, 4, 1, 0)                 # spatial collapses to 1x1
    ml = fused_gemm(pa, prep["conv12"], shift=prep["conv12_b"], act="none",
                    out_dtype=jnp.float32)              # mu & logvar in ONE GEMM
    nz = prep["nz"]
    mu, logvar = ml[:, :nz], ml[:, nz:2 * nz]

    # --- Sampler: tiny (B, nz); plain jnp (a padded Pallas call is pure overhead)
    z = eps_noise * jnp.exp(0.5 * logvar) + mu          # (B, nz)

    # --- Decoder ---
    def bn_leaky(m, gamma, beta):
        M, C = m.shape
        Mp, Cp = _round_up(M, 128), _round_up(C, 128)
        x_p = _pad_mat(m, Mp, Cp, jnp.bfloat16)         # pad ONCE, shared by both passes
        csum, cssq = column_stats_padded(x_p)           # single-read Pallas stats
        mean = csum[:C] / M
        var = jnp.maximum(cssq[:C] / M - mean * mean, 0.0)
        scale, shift = _bn_scale_shift(mean, var, gamma, beta)
        out = affine_act_padded(x_p, _pad_vec(scale, C, Cp), _pad_vec(shift, C, Cp),
                                "leaky", jnp.bfloat16)
        return out[:M, :C]

    m, H, W = conv_transpose_mat(z, B, 1, 1, prep["dec_in"], 1, 0)
    m = bn_leaky(m, prep["dec_in"]["gamma"], prep["dec_in"]["beta"])
    for lp in prep["dec_pyr"]:
        m, H, W = conv_transpose_mat(m, B, H, W, lp, 2, 1)
        m = bn_leaky(m, lp["gamma"], lp["beta"])
    m, H, W = conv_transpose_mat(m, B, H, W, prep["dec_out"], 2, 1)
    C = prep["dec_out"]["cout"]
    M = m.shape[0]
    Mp, Cp = _round_up(M, 128), _round_up(C, 128)
    m_p = _pad_mat(m, Mp, Cp, jnp.float32)
    out = affine_act_padded(m_p,
                            _pad_vec(jnp.ones((C,), jnp.float32), C, Cp),
                            _pad_vec(jnp.zeros((C,), jnp.float32), C, Cp),
                            "tanh", jnp.float32)
    return out[:M, :C].reshape(B, H, W, C).transpose(0, 3, 1, 2)  # back to NCHW


# ---------------------------------- main ------------------------------------

if __name__ == "__main__":
    imageSize, nc, ngf, nz, B = 16, 3, 8, 16, 2
    key = jax.random.PRNGKey(0)
    kp, kx, ke = jax.random.split(key, 3)
    params = init_params(kp, imageSize, nc, ngf, nz)
    prep = prepare_params(params)                      # pad/cast weights ONCE
    x = jax.random.normal(kx, (B, nc, imageSize, imageSize), jnp.float32)
    eps_noise = jax.random.normal(ke, (B, nz), jnp.float32)

    fwd = jax.jit(functools.partial(netg_forward, prep))
    out = jax.block_until_ready(fwd(x, eps_noise))
    assert out.shape == (B, nc, imageSize, imageSize)
    assert bool(jnp.all(jnp.isfinite(out)))
    print("KERNEL_OK")
</pallas_src>

<mosaic_0001>
module attributes {stable_mosaic.version = 11 : i64} {
  func.func @_gemm_epilogue_kernel(%arg0: i32, %arg1: i32, %arg2: i32, %arg3: memref<128x128xbf16, #tpu.memory_space<vmem>>, %arg4: memref<128x128xbf16, #tpu.memory_space<vmem>>, %arg5: memref<1x128xf32, #tpu.memory_space<vmem>>, %arg6: memref<1x128xf32, #tpu.memory_space<vmem>>, %arg7: memref<128x128xbf16, #tpu.memory_space<vmem>>, %arg8: memref<128x128xf32, #tpu.memory_space<vmem>>) attributes {dimension_semantics = [#tpu.dimension_semantics<parallel>, #tpu.dimension_semantics<parallel>, #tpu.dimension_semantics<arbitrary>], iteration_bounds = array<i64: 1, 1, 1>, scalar_prefetch = 0 : i64, scratch_operands = 1 : i64, tpu.core_type = #tpu.core_type<tc>, window_params = [{transform_indices = @transform_0, window_bounds = array<i64: 128, 128>}, {transform_indices = @transform_1, window_bounds = array<i64: 128, 128>}, {transform_indices = @transform_2, window_bounds = array<i64: 1, 128>}, {transform_indices = @transform_3, window_bounds = array<i64: 1, 128>}, {transform_indices = @transform_4, window_bounds = array<i64: 128, 128>}]} {
    %c0_i32 = arith.constant 0 : i32
    %0 = arith.cmpi eq, %arg2, %c0_i32 : i32
    %1 = arith.extui %0 : i1 to i32
    %c0_i32_0 = arith.constant 0 : i32
    %2 = arith.cmpi ne, %1, %c0_i32_0 : i32
    scf.if %2 {
      %cst_10 = arith.constant 0.000000e+00 : f32
      %12 = vector.broadcast %cst_10 : f32 to vector<128x128xf32>
      %c0_11 = arith.constant 0 : index
      %c0_12 = arith.constant 0 : index
      %13 = vector.load %arg8[%c0_11, %c0_12] : memref<128x128xf32, #tpu.memory_space<vmem>>, vector<128x128xf32>
      tpu.vector_store %arg8[%c0_11, %c0_12], %12 {strides = array<i32>} : memref<128x128xf32, #tpu.memory_space<vmem>>, vector<128x128xf32>,
    } else {
    }
    %c0 = arith.constant 0 : index
    %c0_1 = arith.constant 0 : index
    %3 = vector.load %arg8[%c0, %c0_1] : memref<128x128xf32, #tpu.memory_space<vmem>>, vector<128x128xf32>
    %c0_2 = arith.constant 0 : index
    %c0_3 = arith.constant 0 : index
    %4 = vector.load %arg3[%c0_2, %c0_3] : memref<128x128xbf16, #tpu.memory_space<vmem>>, vector<128x128xbf16>
    %c0_4 = arith.constant 0 : index
    %c0_5 = arith.constant 0 : index
    %5 = vector.load %arg4[%c0_4, %c0_5] : memref<128x128xbf16, #tpu.memory_space<vmem>>, vector<128x128xbf16>
    %cst = arith.constant dense<0.000000e+00> : vector<128x128xf32>
    %6 = tpu.matmul %4, %5, %cst {dimension_numbers = #tpu.dot_dimension_numbers<[1], [0], [0], [1], [0, 0, 1, 1], [], []>} : vector<128x128xbf16>, vector<128x128xbf16>, vector<128x128xf32> -> vector<128x128xf32>
    %7 = arith.addf %3, %6 : vector<128x128xf32>
    %c0_6 = arith.constant 0 : index
    %c0_7 = arith.constant 0 : index
    %8 = vector.load %arg8[%c0_6, %c0_7] : memref<128x128xf32, #tpu.memory_space<vmem>>, vector<128x128xf32>
    tpu.vector_store %arg8[%c0_6, %c0_7], %7 {strides = array<i32>} : memref<128x128xf32, #tpu.memory_space<vmem>>, vector<128x128xf32>,
    %c0_i32_8 = arith.constant 0 : i32
    %9 = arith.cmpi eq, %arg2, %c0_i32_8 : i32
    %10 = arith.extui %9 : i1 to i32
    %c0_i32_9 = arith.constant 0 : i32
    %11 = arith.cmpi ne, %10, %c0_i32_9 : i32
    scf.if %11 {
      %c0_10 = arith.constant 0 : index
      %c0_11 = arith.constant 0 : index
      %12 = vector.load %arg8[%c0_10, %c0_11] : memref<128x128xf32, #tpu.memory_space<vmem>>, vector<128x128xf32>
      %c0_12 = arith.constant 0 : index
      %c0_13 = arith.constant 0 : index
      %13 = vector.load %arg5[%c0_12, %c0_13] : memref<1x128xf32, #tpu.memory_space<vmem>>, vector<1x128xf32>
      %14 = vector.broadcast %13 : vector<1x128xf32> to vector<128x128xf32>
      %15 = arith.mulf %12, %14 : vector<128x128xf32>
      %c0_14 = arith.constant 0 : index
      %c0_15 = arith.constant 0 : index
      %16 = vector.load %arg6[%c0_14, %c0_15] : memref<1x128xf32, #tpu.memory_space<vmem>>, vector<1x128xf32>
      %17 = vector.broadcast %16 : vector<1x128xf32> to vector<128x128xf32>
      %18 = arith.addf %15, %17 : vector<128x128xf32>
      %cst_16 = arith.constant 0.000000e+00 : f32
      %19 = vector.broadcast %cst_16 : f32 to vector<128x128xf32>
      %20 = arith.cmpf ogt, %18, %19 : vector<128x128xf32>
      %cst_17 = arith.constant 2.000000e-01 : f32
      %21 = vector.broadcast %cst_17 : f32 to vector<128x128xf32>
      %22 = arith.mulf %21, %18 : vector<128x128xf32>
      %23 = arith.select %20, %18, %22 : vector<128x128xi1>, vector<128x128xf32>
      %24 = arith.truncf %23 : vector<128x128xf32> to vector<128x128xbf16>
      %c0_18 = arith.constant 0 : index
      %c0_19 = arith.constant 0 : index
      %25 = vector.load %arg7[%c0_18, %c0_19] : memref<128x128xbf16, #tpu.memory_space<vmem>>, vector<128x128xbf16>
      tpu.vector_store %arg7[%c0_18, %c0_19], %24 {strides = array<i32>} : memref<128x128xbf16, #tpu.memory_space<vmem>>, vector<128x128xbf16>,
    } else {
    }
    return
  }
  func.func @transform_0(%arg0: i32, %arg1: i32, %arg2: i32) -> (i32, i32) {
    %c0_i32 = arith.constant 0 : i32
    return %arg0, %arg2 : i32, i32
  }
  func.func @transform_1(%arg0: i32, %arg1: i32, %arg2: i32) -> (i32, i32) {
    %c0_i32 = arith.constant 0 : i32
    return %arg2, %arg1 : i32, i32
  }
  func.func @transform_2(%arg0: i32, %arg1: i32, %arg2: i32) -> (i32, i32) {
    %c0_i32 = arith.constant 0 : i32
    %c0_i32_0 = arith.constant 0 : i32
    return %c0_i32, %arg1 : i32, i32
  }
  func.func @transform_3(%arg0: i32, %arg1: i32, %arg2: i32) -> (i32, i32) {
    %c0_i32 = arith.constant 0 : i32
    %c0_i32_0 = arith.constant 0 : i32
    return %c0_i32, %arg1 : i32, i32
  }
  func.func @transform_4(%arg0: i32, %arg1: i32, %arg2: i32) -> (i32, i32) {
    %c0_i32 = arith.constant 0 : i32
    return %arg0, %arg1 : i32, i32
  }
}

module attributes {stable_mosaic.version = 11 : i64} {
  func.func @_affine_act_kernel(%arg0: i32, %arg1: memref<128x128xbf16, #tpu.memory_space<vmem>>, %arg2: memref<1x128xf32, #tpu.memory_space<vmem>>, %arg3: memref<1x128xf32, #tpu.memory_space<vmem>>, %arg4: memref<128x128xbf16, #tpu.memory_space<vmem>>) attributes {dimension_semantics = [#tpu.dimension_semantics<parallel>], iteration_bounds = array<i64: 1>, scalar_prefetch = 0 : i64, scratch_operands = 0 : i64, tpu.core_type = #tpu.core_type<tc>, window_params = [{transform_indices = @transform_0, window_bounds = array<i64: 128, 128>}, {pipeline_mode = #tpu.pipeline_mode<synchronous>, transform_indices = @transform_1, window_bounds = array<i64: 1, 128>}, {pipeline_mode = #tpu.pipeline_mode<synchronous>, transform_indices = @transform_2, window_bounds = array<i64: 1, 128>}, {transform_indices = @transform_3, window_bounds = array<i64: 128, 128>}]} {
    %c0 = arith.constant 0 : index
    %c0_0 = arith.constant 0 : index
    %0 = vector.load %arg1[%c0, %c0_0] : memref<128x128xbf16, #tpu.memory_space<vmem>>, vector<128x128xbf16>
    %1 = arith.extf %0 : vector<128x128xbf16> to vector<128x128xf32>
    %c0_1 = arith.constant 0 : index
    %c0_2 = arith.constant 0 : index
    %2 = vector.load %arg2[%c0_1, %c0_2] : memref<1x128xf32, #tpu.memory_space<vmem>>, vector<1x128xf32>
    %3 = vector.broadcast %2 : vector<1x128xf32> to vector<128x128xf32>
    %4 = arith.mulf %1, %3 : vector<128x128xf32>
    %c0_3 = arith.constant 0 : index
    %c0_4 = arith.constant 0 : index
    %5 = vector.load %arg3[%c0_3, %c0_4] : memref<1x128xf32, #tpu.memory_space<vmem>>, vector<1x128xf32>
    %6 = vector.broadcast %5 : vector<1x128xf32> to vector<128x128xf32>
    %7 = arith.addf %4, %6 : vector<128x128xf32>
    %cst = arith.constant 0.000000e+00 : f32
    %8 = vector.broadcast %cst : f32 to vector<128x128xf32>
    %9 = arith.cmpf ogt, %7, %8 : vector<128x128xf32>
    %cst_5 = arith.constant 2.000000e-01 : f32
    %10 = vector.broadcast %cst_5 : f32 to vector<128x128xf32>
    %11 = arith.mulf %10, %7 : vector<128x128xf32>
    %12 = arith.select %9, %7, %11 : vector<128x128xi1>, vector<128x128xf32>
    %13 = arith.truncf %12 : vector<128x128xf32> to vector<128x128xbf16>
    %c0_6 = arith.constant 0 : index
    %c0_7 = arith.constant 0 : index
    %14 = vector.load %arg4[%c0_6, %c0_7] : memref<128x128xbf16, #tpu.memory_space<vmem>>, vector<128x128xbf16>
    tpu.vector_store %arg4[%c0_6, %c0_7], %13 {strides = array<i32>} : memref<128x128xbf16, #tpu.memory_space<vmem>>, vector<128x128xbf16>,
    return
  }
  func.func @transform_0(%arg0: i32) -> (i32, i32) {
    %c0_i32 = arith.constant 0 : i32
    %c0_i32_0 = arith.constant 0 : i32
    return %arg0, %c0_i32 : i32, i32
  }
  func.func @transform_1(%arg0: i32) -> (i32, i32) {
    %c0_i32 = arith.constant 0 : i32
    %c0_i32_0 = arith.constant 0 : i32
    %c0_i32_1 = arith.constant 0 : i32
    return %c0_i32, %c0_i32_0 : i32, i32
  }
  func.func @transform_2(%arg0: i32) -> (i32, i32) {
    %c0_i32 = arith.constant 0 : i32
    %c0_i32_0 = arith.constant 0 : i32
    %c0_i32_1 = arith.constant 0 : i32
    return %c0_i32, %c0_i32_0 : i32, i32
  }
  func.func @transform_3(%arg0: i32) -> (i32, i32) {
    %c0_i32 = arith.constant 0 : i32
    %c0_i32_0 = arith.constant 0 : i32
    return %arg0, %c0_i32 : i32, i32
  }
}

module attributes {stable_mosaic.version = 11 : i64} {
  func.func @_gemm_stats_kernel(%arg0: i32, %arg1: i32, %arg2: memref<128x128xbf16, #tpu.memory_space<vmem>>, %arg3: memref<128x128xbf16, #tpu.memory_space<vmem>>, %arg4: memref<128x128xbf16, #tpu.memory_space<vmem>>, %arg5: memref<8x128xf32, #tpu.memory_space<vmem>>, %arg6: memref<8x128xf32, #tpu.memory_space<vmem>>) attributes {dimension_semantics = [#tpu.dimension_semantics<parallel>, #tpu.dimension_semantics<arbitrary>], iteration_bounds = array<i64: 1, 1>, scalar_prefetch = 0 : i64, scratch_operands = 0 : i64, tpu.core_type = #tpu.core_type<tc>, window_params = [{transform_indices = @transform_0, window_bounds = array<i64: 128, 128>}, {transform_indices = @transform_1, window_bounds = array<i64: 128, 128>}, {transform_indices = @transform_2, window_bounds = array<i64: 128, 128>}, {transform_indices = @transform_3, window_bounds = array<i64: 8, 128>}, {transform_indices = @transform_4, window_bounds = array<i64: 8, 128>}]} {
    %c0 = arith.constant 0 : index
    %c0_0 = arith.constant 0 : index
    %0 = vector.load %arg2[%c0, %c0_0] : memref<128x128xbf16, #tpu.memory_space<vmem>>, vector<128x128xbf16>
    %c0_1 = arith.constant 0 : index
    %c0_2 = arith.constant 0 : index
    %1 = vector.load %arg3[%c0_1, %c0_2] : memref<128x128xbf16, #tpu.memory_space<vmem>>, vector<128x128xbf16>
    %cst = arith.constant dense<0.000000e+00> : vector<128x128xf32>
    %2 = tpu.matmul %0, %1, %cst {dimension_numbers = #tpu.dot_dimension_numbers<[1], [0], [0], [1], [0, 0, 1, 1], [], []>} : vector<128x128xbf16>, vector<128x128xbf16>, vector<128x128xf32> -> vector<128x128xf32>
    %3 = arith.truncf %2 : vector<128x128xf32> to vector<128x128xbf16>
    %c0_3 = arith.constant 0 : index
    %c0_4 = arith.constant 0 : index
    %4 = vector.load %arg4[%c0_3, %c0_4] : memref<128x128xbf16, #tpu.memory_space<vmem>>, vector<128x128xbf16>
    tpu.vector_store %arg4[%c0_3, %c0_4], %3 {strides = array<i32>} : memref<128x128xbf16, #tpu.memory_space<vmem>>, vector<128x128xbf16>,
    %c0_i32 = arith.constant 0 : i32
    %5 = arith.cmpi eq, %arg1, %c0_i32 : i32
    %6 = arith.extui %5 : i1 to i32
    %c0_i32_5 = arith.constant 0 : i32
    %7 = arith.cmpi ne, %6, %c0_i32_5 : i32
    scf.if %7 {
      %cst_16 = arith.constant 0.000000e+00 : f32
      %21 = vector.broadcast %cst_16 : f32 to vector<8x128xf32>
      %c0_17 = arith.constant 0 : index
      %c0_18 = arith.constant 0 : index
      %22 = vector.load %arg5[%c0_17, %c0_18] : memref<8x128xf32, #tpu.memory_space<vmem>>, vector<8x128xf32>
      tpu.vector_store %arg5[%c0_17, %c0_18], %21 {strides = array<i32>} : memref<8x128xf32, #tpu.memory_space<vmem>>, vector<8x128xf32>,
      %cst_19 = arith.constant 0.000000e+00 : f32
      %23 = vector.broadcast %cst_19 : f32 to vector<8x128xf32>
      %c0_20 = arith.constant 0 : index
      %c0_21 = arith.constant 0 : index
      %24 = vector.load %arg6[%c0_20, %c0_21] : memref<8x128xf32, #tpu.memory_space<vmem>>, vector<8x128xf32>
      tpu.vector_store %arg6[%c0_20, %c0_21], %23 {strides = array<i32>} : memref<8x128xf32, #tpu.memory_space<vmem>>, vector<8x128xf32>,
    } else {
    }
    %c0_6 = arith.constant 0 : index
    %c0_7 = arith.constant 0 : index
    %8 = vector.load %arg5[%c0_6, %c0_7] : memref<8x128xf32, #tpu.memory_space<vmem>>, vector<8x128xf32>
    %cst_8 = arith.constant dense<0.000000e+00> : vector<128xf32>
    %9 = vector.multi_reduction <add>, %2, %cst_8 [0] : vector<128x128xf32> to vector<128xf32>
    %10 = vector.shape_cast %9 : vector<128xf32> to vector<1x128xf32>
    %11 = vector.broadcast %10 : vector<1x128xf32> to vector<8x128xf32>
    %12 = arith.addf %8, %11 : vector<8x128xf32>
    %c0_9 = arith.constant 0 : index
    %c0_10 = arith.constant 0 : index
    %13 = vector.load %arg5[%c0_9, %c0_10] : memref<8x128xf32, #tpu.memory_space<vmem>>, vector<8x128xf32>
    tpu.vector_store %arg5[%c0_9, %c0_10], %12 {strides = array<i32>} : memref<8x128xf32, #tpu.memory_space<vmem>>, vector<8x128xf32>,
    %c0_11 = arith.constant 0 : index
    %c0_12 = arith.constant 0 : index
    %14 = vector.load %arg6[%c0_11, %c0_12] : memref<8x128xf32, #tpu.memory_space<vmem>>, vector<8x128xf32>
    %15 = arith.mulf %2, %2 : vector<128x128xf32>
    %cst_13 = arith.constant dense<0.000000e+00> : vector<128xf32>
    %16 = vector.multi_reduction <add>, %15, %cst_13 [0] : vector<128x128xf32> to vector<128xf32>
    %17 = vector.shape_cast %16 : vector<128xf32> to vector<1x128xf32>
    %18 = vector.broadcast %17 : vector<1x128xf32> to vector<8x128xf32>
    %19 = arith.addf %14, %18 : vector<8x128xf32>
    %c0_14 = arith.constant 0 : index
    %c0_15 = arith.constant 0 : index
    %20 = vector.load %arg6[%c0_14, %c0_15] : memref<8x128xf32, #tpu.memory_space<vmem>>, vector<8x128xf32>
    tpu.vector_store %arg6[%c0_14, %c0_15], %19 {strides = array<i32>} : memref<8x128xf32, #tpu.memory_space<vmem>>, vector<8x128xf32>,
    return
  }
  func.func @transform_0(%arg0: i32, %arg1: i32) -> (i32, i32) {
    %c0_i32 = arith.constant 0 : i32
    %c0_i32_0 = arith.constant 0 : i32
    return %arg1, %c0_i32 : i32, i32
  }
  func.func @transform_1(%arg0: i32, %arg1: i32) -> (i32, i32) {
    %c0_i32 = arith.constant 0 : i32
    %c0_i32_0 = arith.constant 0 : i32
    return %c0_i32, %arg0 : i32, i32
  }
  func.func @transform_2(%arg0: i32, %arg1: i32) -> (i32, i32) {
    %c0_i32 = arith.constant 0 : i32
    return %arg1, %arg0 : i32, i32
  }
  func.func @transform_3(%arg0: i32, %arg1: i32) -> (i32, i32) {
    %c0_i32 = arith.constant 0 : i32
    %c0_i32_0 = arith.constant 0 : i32
    return %c0_i32, %arg0 : i32, i32
  }
  func.func @transform_4(%arg0: i32, %arg1: i32) -> (i32, i32) {
    %c0_i32 = arith.constant 0 : i32
    %c0_i32_0 = arith.constant 0 : i32
    return %c0_i32, %arg0 : i32, i32
  }
}

module attributes {stable_mosaic.version = 11 : i64} {
  func.func @_gemm_epilogue_kernel(%arg0: i32, %arg1: i32, %arg2: i32, %arg3: memref<128x128xbf16, #tpu.memory_space<vmem>>, %arg4: memref<128x256xbf16, #tpu.memory_space<vmem>>, %arg5: memref<1x256xf32, #tpu.memory_space<vmem>>, %arg6: memref<1x256xf32, #tpu.memory_space<vmem>>, %arg7: memref<128x256xbf16, #tpu.memory_space<vmem>>, %arg8: memref<128x256xf32, #tpu.memory_space<vmem>>) attributes {dimension_semantics = [#tpu.dimension_semantics<parallel>, #tpu.dimension_semantics<parallel>, #tpu.dimension_semantics<arbitrary>], iteration_bounds = array<i64: 1, 1, 1>, scalar_prefetch = 0 : i64, scratch_operands = 1 : i64, tpu.core_type = #tpu.core_type<tc>, window_params = [{transform_indices = @transform_0, window_bounds = array<i64: 128, 128>}, {transform_indices = @transform_1, window_bounds = array<i64: 128, 256>}, {transform_indices = @transform_2, window_bounds = array<i64: 1, 256>}, {transform_indices = @transform_3, window_bounds = array<i64: 1, 256>}, {transform_indices = @transform_4, window_bounds = array<i64: 128, 256>}]} {
    %c0_i32 = arith.constant 0 : i32
    %0 = arith.cmpi eq, %arg2, %c0_i32 : i32
    %1 = arith.extui %0 : i1 to i32
    %c0_i32_0 = arith.constant 0 : i32
    %2 = arith.cmpi ne, %1, %c0_i32_0 : i32
    scf.if %2 {
      %cst_10 = arith.constant 0.000000e+00 : f32
      %12 = vector.broadcast %cst_10 : f32 to vector<128x256xf32>
      %c0_11 = arith.constant 0 : index
      %c0_12 = arith.constant 0 : index
      %13 = vector.load %arg8[%c0_11, %c0_12] : memref<128x256xf32, #tpu.memory_space<vmem>>, vector<128x256xf32>
      tpu.vector_store %arg8[%c0_11, %c0_12], %12 {strides = array<i32>} : memref<128x256xf32, #tpu.memory_space<vmem>>, vector<128x256xf32>,
    } else {
    }
    %c0 = arith.constant 0 : index
    %c0_1 = arith.constant 0 : index
    %3 = vector.load %arg8[%c0, %c0_1] : memref<128x256xf32, #tpu.memory_space<vmem>>, vector<128x256xf32>
    %c0_2 = arith.constant 0 : index
    %c0_3 = arith.constant 0 : index
    %4 = vector.load %arg3[%c0_2, %c0_3] : memref<128x128xbf16, #tpu.memory_space<vmem>>, vector<128x128xbf16>
    %c0_4 = arith.constant 0 : index
    %c0_5 = arith.constant 0 : index
    %5 = vector.load %arg4[%c0_4, %c0_5] : memref<128x256xbf16, #tpu.memory_space<vmem>>, vector<128x256xbf16>
    %cst = arith.constant dense<0.000000e+00> : vector<128x256xf32>
    %6 = tpu.matmul %4, %5, %cst {dimension_numbers = #tpu.dot_dimension_numbers<[1], [0], [0], [1], [0, 0, 1, 1], [], []>} : vector<128x128xbf16>, vector<128x256xbf16>, vector<128x256xf32> -> vector<128x256xf32>
    %7 = arith.addf %3, %6 : vector<128x256xf32>
    %c0_6 = arith.constant 0 : index
    %c0_7 = arith.constant 0 : index
    %8 = vector.load %arg8[%c0_6, %c0_7] : memref<128x256xf32, #tpu.memory_space<vmem>>, vector<128x256xf32>
    tpu.vector_store %arg8[%c0_6, %c0_7], %7 {strides = array<i32>} : memref<128x256xf32, #tpu.memory_space<vmem>>, vector<128x256xf32>,
    %c0_i32_8 = arith.constant 0 : i32
    %9 = arith.cmpi eq, %arg2, %c0_i32_8 : i32
    %10 = arith.extui %9 : i1 to i32
    %c0_i32_9 = arith.constant 0 : i32
    %11 = arith.cmpi ne, %10, %c0_i32_9 : i32
    scf.if %11 {
      %c0_10 = arith.constant 0 : index
      %c0_11 = arith.constant 0 : index
      %12 = vector.load %arg8[%c0_10, %c0_11] : memref<128x256xf32, #tpu.memory_space<vmem>>, vector<128x256xf32>
      %c0_12 = arith.constant 0 : index
      %c0_13 = arith.constant 0 : index
      %13 = vector.load %arg5[%c0_12, %c0_13] : memref<1x256xf32, #tpu.memory_space<vmem>>, vector<1x256xf32>
      %14 = vector.broadcast %13 : vector<1x256xf32> to vector<128x256xf32>
      %15 = arith.mulf %12, %14 : vector<128x256xf32>
      %c0_14 = arith.constant 0 : index
      %c0_15 = arith.constant 0 : index
      %16 = vector.load %arg6[%c0_14, %c0_15] : memref<1x256xf32, #tpu.memory_space<vmem>>, vector<1x256xf32>
      %17 = vector.broadcast %16 : vector<1x256xf32> to vector<128x256xf32>
      %18 = arith.addf %15, %17 : vector<128x256xf32>
      %19 = arith.truncf %18 : vector<128x256xf32> to vector<128x256xbf16>
      %c0_16 = arith.constant 0 : index
      %c0_17 = arith.constant 0 : index
      %20 = vector.load %arg7[%c0_16, %c0_17] : memref<128x256xbf16, #tpu.memory_space<vmem>>, vector<128x256xbf16>
      tpu.vector_store %arg7[%c0_16, %c0_17], %19 {strides = array<i32>} : memref<128x256xbf16, #tpu.memory_space<vmem>>, vector<128x256xbf16>,
    } else {
    }
    return
  }
  func.func @transform_0(%arg0: i32, %arg1: i32, %arg2: i32) -> (i32, i32) {
    %c0_i32 = arith.constant 0 : i32
    return %arg0, %arg2 : i32, i32
  }
  func.func @transform_1(%arg0: i32, %arg1: i32, %arg2: i32) -> (i32, i32) {
    %c0_i32 = arith.constant 0 : i32
    return %arg2, %arg1 : i32, i32
  }
  func.func @transform_2(%arg0: i32, %arg1: i32, %arg2: i32) -> (i32, i32) {
    %c0_i32 = arith.constant 0 : i32
    %c0_i32_0 = arith.constant 0 : i32
    return %c0_i32, %arg1 : i32, i32
  }
  func.func @transform_3(%arg0: i32, %arg1: i32, %arg2: i32) -> (i32, i32) {
    %c0_i32 = arith.constant 0 : i32
    %c0_i32_0 = arith.constant 0 : i32
    return %c0_i32, %arg1 : i32, i32
  }
  func.func @transform_4(%arg0: i32, %arg1: i32, %arg2: i32) -> (i32, i32) {
    %c0_i32 = arith.constant 0 : i32
    return %arg0, %arg1 : i32, i32
  }
}

module attributes {stable_mosaic.version = 11 : i64} {
  func.func @_gemm_epilogue_kernel(%arg0: i32, %arg1: i32, %arg2: i32, %arg3: memref<128x256xbf16, #tpu.memory_space<vmem>>, %arg4: memref<256x128xbf16, #tpu.memory_space<vmem>>, %arg5: memref<1x128xf32, #tpu.memory_space<vmem>>, %arg6: memref<1x128xf32, #tpu.memory_space<vmem>>, %arg7: memref<128x128xf32, #tpu.memory_space<vmem>>, %arg8: memref<128x128xf32, #tpu.memory_space<vmem>>) attributes {dimension_semantics = [#tpu.dimension_semantics<parallel>, #tpu.dimension_semantics<parallel>, #tpu.dimension_semantics<arbitrary>], iteration_bounds = array<i64: 1, 1, 1>, scalar_prefetch = 0 : i64, scratch_operands = 1 : i64, tpu.core_type = #tpu.core_type<tc>, window_params = [{transform_indices = @transform_0, window_bounds = array<i64: 128, 256>}, {transform_indices = @transform_1, window_bounds = array<i64: 256, 128>}, {transform_indices = @transform_2, window_bounds = array<i64: 1, 128>}, {transform_indices = @transform_3, window_bounds = array<i64: 1, 128>}, {transform_indices = @transform_4, window_bounds = array<i64: 128, 128>}]} {
    %c0_i32 = arith.constant 0 : i32
    %0 = arith.cmpi eq, %arg2, %c0_i32 : i32
    %1 = arith.extui %0 : i1 to i32
    %c0_i32_0 = arith.constant 0 : i32
    %2 = arith.cmpi ne, %1, %c0_i32_0 : i32
    scf.if %2 {
      %cst_10 = arith.constant 0.000000e+00 : f32
      %12 = vector.broadcast %cst_10 : f32 to vector<128x128xf32>
      %c0_11 = arith.constant 0 : index
      %c0_12 = arith.constant 0 : index
      %13 = vector.load %arg8[%c0_11, %c0_12] : memref<128x128xf32, #tpu.memory_space<vmem>>, vector<128x128xf32>
      tpu.vector_store %arg8[%c0_11, %c0_12], %12 {strides = array<i32>} : memref<128x128xf32, #tpu.memory_space<vmem>>, vector<128x128xf32>,
    } else {
    }
    %c0 = arith.constant 0 : index
    %c0_1 = arith.constant 0 : index
    %3 = vector.load %arg8[%c0, %c0_1] : memref<128x128xf32, #tpu.memory_space<vmem>>, vector<128x128xf32>
    %c0_2 = arith.constant 0 : index
    %c0_3 = arith.constant 0 : index
    %4 = vector.load %arg3[%c0_2, %c0_3] : memref<128x256xbf16, #tpu.memory_space<vmem>>, vector<128x256xbf16>
    %c0_4 = arith.constant 0 : index
    %c0_5 = arith.constant 0 : index
    %5 = vector.load %arg4[%c0_4, %c0_5] : memref<256x128xbf16, #tpu.memory_space<vmem>>, vector<256x128xbf16>
    %cst = arith.constant dense<0.000000e+00> : vector<128x128xf32>
    %6 = tpu.matmul %4, %5, %cst {dimension_numbers = #tpu.dot_dimension_numbers<[1], [0], [0], [1], [0, 0, 1, 1], [], []>} : vector<128x256xbf16>, vector<256x128xbf16>, vector<128x128xf32> -> vector<128x128xf32>
    %7 = arith.addf %3, %6 : vector<128x128xf32>
    %c0_6 = arith.constant 0 : index
    %c0_7 = arith.constant 0 : index
    %8 = vector.load %arg8[%c0_6, %c0_7] : memref<128x128xf32, #tpu.memory_space<vmem>>, vector<128x128xf32>
    tpu.vector_store %arg8[%c0_6, %c0_7], %7 {strides = array<i32>} : memref<128x128xf32, #tpu.memory_space<vmem>>, vector<128x128xf32>,
    %c0_i32_8 = arith.constant 0 : i32
    %9 = arith.cmpi eq, %arg2, %c0_i32_8 : i32
    %10 = arith.extui %9 : i1 to i32
    %c0_i32_9 = arith.constant 0 : i32
    %11 = arith.cmpi ne, %10, %c0_i32_9 : i32
    scf.if %11 {
      %c0_10 = arith.constant 0 : index
      %c0_11 = arith.constant 0 : index
      %12 = vector.load %arg8[%c0_10, %c0_11] : memref<128x128xf32, #tpu.memory_space<vmem>>, vector<128x128xf32>
      %c0_12 = arith.constant 0 : index
      %c0_13 = arith.constant 0 : index
      %13 = vector.load %arg5[%c0_12, %c0_13] : memref<1x128xf32, #tpu.memory_space<vmem>>, vector<1x128xf32>
      %14 = vector.broadcast %13 : vector<1x128xf32> to vector<128x128xf32>
      %15 = arith.mulf %12, %14 : vector<128x128xf32>
      %c0_14 = arith.constant 0 : index
      %c0_15 = arith.constant 0 : index
      %16 = vector.load %arg6[%c0_14, %c0_15] : memref<1x128xf32, #tpu.memory_space<vmem>>, vector<1x128xf32>
      %17 = vector.broadcast %16 : vector<1x128xf32> to vector<128x128xf32>
      %18 = arith.addf %15, %17 : vector<128x128xf32>
      %c0_16 = arith.constant 0 : index
      %c0_17 = arith.constant 0 : index
      %19 = vector.load %arg7[%c0_16, %c0_17] : memref<128x128xf32, #tpu.memory_space<vmem>>, vector<128x128xf32>
      tpu.vector_store %arg7[%c0_16, %c0_17], %18 {strides = array<i32>} : memref<128x128xf32, #tpu.memory_space<vmem>>, vector<128x128xf32>,
    } else {
    }
    return
  }
  func.func @transform_0(%arg0: i32, %arg1: i32, %arg2: i32) -> (i32, i32) {
    %c0_i32 = arith.constant 0 : i32
    return %arg0, %arg2 : i32, i32
  }
  func.func @transform_1(%arg0: i32, %arg1: i32, %arg2: i32) -> (i32, i32) {
    %c0_i32 = arith.constant 0 : i32
    return %arg2, %arg1 : i32, i32
  }
  func.func @transform_2(%arg0: i32, %arg1: i32, %arg2: i32) -> (i32, i32) {
    %c0_i32 = arith.constant 0 : i32
    %c0_i32_0 = arith.constant 0 : i32
    return %c0_i32, %arg1 : i32, i32
  }
  func.func @transform_3(%arg0: i32, %arg1: i32, %arg2: i32) -> (i32, i32) {
    %c0_i32 = arith.constant 0 : i32
    %c0_i32_0 = arith.constant 0 : i32
    return %c0_i32, %arg1 : i32, i32
  }
  func.func @transform_4(%arg0: i32, %arg1: i32, %arg2: i32) -> (i32, i32) {
    %c0_i32 = arith.constant 0 : i32
    return %arg0, %arg1 : i32, i32
  }
}

module attributes {stable_mosaic.version = 11 : i64} {
  func.func @_col_stats_kernel(%arg0: i32, %arg1: memref<128x128xbf16, #tpu.memory_space<vmem>>, %arg2: memref<8x128xf32, #tpu.memory_space<vmem>>, %arg3: memref<8x128xf32, #tpu.memory_space<vmem>>) attributes {dimension_semantics = [#tpu.dimension_semantics<arbitrary>], iteration_bounds = array<i64: 1>, scalar_prefetch = 0 : i64, scratch_operands = 0 : i64, tpu.core_type = #tpu.core_type<tc>, window_params = [{transform_indices = @transform_0, window_bounds = array<i64: 128, 128>}, {pipeline_mode = #tpu.pipeline_mode<synchronous>, transform_indices = @transform_1, window_bounds = array<i64: 8, 128>}, {pipeline_mode = #tpu.pipeline_mode<synchronous>, transform_indices = @transform_2, window_bounds = array<i64: 8, 128>}]} {
    %c0 = arith.constant 0 : index
    %c0_0 = arith.constant 0 : index
    %0 = vector.load %arg1[%c0, %c0_0] : memref<128x128xbf16, #tpu.memory_space<vmem>>, vector<128x128xbf16>
    %1 = arith.extf %0 : vector<128x128xbf16> to vector<128x128xf32>
    %c0_i32 = arith.constant 0 : i32
    %2 = arith.cmpi eq, %arg0, %c0_i32 : i32
    %3 = arith.extui %2 : i1 to i32
    %c0_i32_1 = arith.constant 0 : i32
    %4 = arith.cmpi ne, %3, %c0_i32_1 : i32
    scf.if %4 {
      %cst_11 = arith.constant 0.000000e+00 : f32
      %18 = vector.broadcast %cst_11 : f32 to vector<8x128xf32>
      %c0_12 = arith.constant 0 : index
      %c0_13 = arith.constant 0 : index
      %19 = vector.load %arg2[%c0_12, %c0_13] : memref<8x128xf32, #tpu.memory_space<vmem>>, vector<8x128xf32>
      tpu.vector_store %arg2[%c0_12, %c0_13], %18 {strides = array<i32>} : memref<8x128xf32, #tpu.memory_space<vmem>>, vector<8x128xf32>,
      %cst_14 = arith.constant 0.000000e+00 : f32
      %20 = vector.broadcast %cst_14 : f32 to vector<8x128xf32>
      %c0_15 = arith.constant 0 : index
      %c0_16 = arith.constant 0 : index
      %21 = vector.load %arg3[%c0_15, %c0_16] : memref<8x128xf32, #tpu.memory_space<vmem>>, vector<8x128xf32>
      tpu.vector_store %arg3[%c0_15, %c0_16], %20 {strides = array<i32>} : memref<8x128xf32, #tpu.memory_space<vmem>>, vector<8x128xf32>,
    } else {
    }
    %c0_2 = arith.constant 0 : index
    %c0_3 = arith.constant 0 : index
    %5 = vector.load %arg2[%c0_2, %c0_3] : memref<8x128xf32, #tpu.memory_space<vmem>>, vector<8x128xf32>
    %cst = arith.constant dense<0.000000e+00> : vector<128xf32>
    %6 = vector.multi_reduction <add>, %1, %cst [0] : vector<128x128xf32> to vector<128xf32>
    %7 = vector.shape_cast %6 : vector<128xf32> to vector<1x128xf32>
    %8 = vector.broadcast %7 : vector<1x128xf32> to vector<8x128xf32>
    %9 = arith.addf %5, %8 : vector<8x128xf32>
    %c0_4 = arith.constant 0 : index
    %c0_5 = arith.constant 0 : index
    %10 = vector.load %arg2[%c0_4, %c0_5] : memref<8x128xf32, #tpu.memory_space<vmem>>, vector<8x128xf32>
    tpu.vector_store %arg2[%c0_4, %c0_5], %9 {strides = array<i32>} : memref<8x128xf32, #tpu.memory_space<vmem>>, vector<8x128xf32>,
    %c0_6 = arith.constant 0 : index
    %c0_7 = arith.constant 0 : index
    %11 = vector.load %arg3[%c0_6, %c0_7] : memref<8x128xf32, #tpu.memory_space<vmem>>, vector<8x128xf32>
    %12 = arith.mulf %1, %1 : vector<128x128xf32>
    %cst_8 = arith.constant dense<0.000000e+00> : vector<128xf32>
    %13 = vector.multi_reduction <add>, %12, %cst_8 [0] : vector<128x128xf32> to vector<128xf32>
    %14 = vector.shape_cast %13 : vector<128xf32> to vector<1x128xf32>
    %15 = vector.broadcast %14 : vector<1x128xf32> to vector<8x128xf32>
    %16 = arith.addf %11, %15 : vector<8x128xf32>
    %c0_9 = arith.constant 0 : index
    %c0_10 = arith.constant 0 : index
    %17 = vector.load %arg3[%c0_9, %c0_10] : memref<8x128xf32, #tpu.memory_space<vmem>>, vector<8x128xf32>
    tpu.vector_store %arg3[%c0_9, %c0_10], %16 {strides = array<i32>} : memref<8x128xf32, #tpu.memory_space<vmem>>, vector<8x128xf32>,
    return
  }
  func.func @transform_0(%arg0: i32) -> (i32, i32) {
    %c0_i32 = arith.constant 0 : i32
    %c0_i32_0 = arith.constant 0 : i32
    return %arg0, %c0_i32 : i32, i32
  }
  func.func @transform_1(%arg0: i32) -> (i32, i32) {
    %c0_i32 = arith.constant 0 : i32
    %c0_i32_0 = arith.constant 0 : i32
    %c0_i32_1 = arith.constant 0 : i32
    return %c0_i32, %c0_i32_0 : i32, i32
  }
  func.func @transform_2(%arg0: i32) -> (i32, i32) {
    %c0_i32 = arith.constant 0 : i32
    %c0_i32_0 = arith.constant 0 : i32
    %c0_i32_1 = arith.constant 0 : i32
    return %c0_i32, %c0_i32_0 : i32, i32
  }
}

module attributes {stable_mosaic.version = 11 : i64} {
  func.func @_gemm_epilogue_kernel(%arg0: i32, %arg1: i32, %arg2: i32, %arg3: memref<128x128xbf16, #tpu.memory_space<vmem>>, %arg4: memref<128x128xbf16, #tpu.memory_space<vmem>>, %arg5: memref<1x128xf32, #tpu.memory_space<vmem>>, %arg6: memref<1x128xf32, #tpu.memory_space<vmem>>, %arg7: memref<128x128xbf16, #tpu.memory_space<vmem>>, %arg8: memref<128x128xf32, #tpu.memory_space<vmem>>) attributes {dimension_semantics = [#tpu.dimension_semantics<parallel>, #tpu.dimension_semantics<parallel>, #tpu.dimension_semantics<arbitrary>], iteration_bounds = array<i64: 1, 1, 1>, scalar_prefetch = 0 : i64, scratch_operands = 1 : i64, tpu.core_type = #tpu.core_type<tc>, window_params = [{transform_indices = @transform_0, window_bounds = array<i64: 128, 128>}, {transform_indices = @transform_1, window_bounds = array<i64: 128, 128>}, {transform_indices = @transform_2, window_bounds = array<i64: 1, 128>}, {transform_indices = @transform_3, window_bounds = array<i64: 1, 128>}, {transform_indices = @transform_4, window_bounds = array<i64: 128, 128>}]} {
    %c0_i32 = arith.constant 0 : i32
    %0 = arith.cmpi eq, %arg2, %c0_i32 : i32
    %1 = arith.extui %0 : i1 to i32
    %c0_i32_0 = arith.constant 0 : i32
    %2 = arith.cmpi ne, %1, %c0_i32_0 : i32
    scf.if %2 {
      %cst_10 = arith.constant 0.000000e+00 : f32
      %12 = vector.broadcast %cst_10 : f32 to vector<128x128xf32>
      %c0_11 = arith.constant 0 : index
      %c0_12 = arith.constant 0 : index
      %13 = vector.load %arg8[%c0_11, %c0_12] : memref<128x128xf32, #tpu.memory_space<vmem>>, vector<128x128xf32>
      tpu.vector_store %arg8[%c0_11, %c0_12], %12 {strides = array<i32>} : memref<128x128xf32, #tpu.memory_space<vmem>>, vector<128x128xf32>,
    } else {
    }
    %c0 = arith.constant 0 : index
    %c0_1 = arith.constant 0 : index
    %3 = vector.load %arg8[%c0, %c0_1] : memref<128x128xf32, #tpu.memory_space<vmem>>, vector<128x128xf32>
    %c0_2 = arith.constant 0 : index
    %c0_3 = arith.constant 0 : index
    %4 = vector.load %arg3[%c0_2, %c0_3] : memref<128x128xbf16, #tpu.memory_space<vmem>>, vector<128x128xbf16>
    %c0_4 = arith.constant 0 : index
    %c0_5 = arith.constant 0 : index
    %5 = vector.load %arg4[%c0_4, %c0_5] : memref<128x128xbf16, #tpu.memory_space<vmem>>, vector<128x128xbf16>
    %cst = arith.constant dense<0.000000e+00> : vector<128x128xf32>
    %6 = tpu.matmul %4, %5, %cst {dimension_numbers = #tpu.dot_dimension_numbers<[1], [0], [0], [1], [0, 0, 1, 1], [], []>} : vector<128x128xbf16>, vector<128x128xbf16>, vector<128x128xf32> -> vector<128x128xf32>
    %7 = arith.addf %3, %6 : vector<128x128xf32>
    %c0_6 = arith.constant 0 : index
    %c0_7 = arith.constant 0 : index
    %8 = vector.load %arg8[%c0_6, %c0_7] : memref<128x128xf32, #tpu.memory_space<vmem>>, vector<128x128xf32>
    tpu.vector_store %arg8[%c0_6, %c0_7], %7 {strides = array<i32>} : memref<128x128xf32, #tpu.memory_space<vmem>>, vector<128x128xf32>,
    %c0_i32_8 = arith.constant 0 : i32
    %9 = arith.cmpi eq, %arg2, %c0_i32_8 : i32
    %10 = arith.extui %9 : i1 to i32
    %c0_i32_9 = arith.constant 0 : i32
    %11 = arith.cmpi ne, %10, %c0_i32_9 : i32
    scf.if %11 {
      %c0_10 = arith.constant 0 : index
      %c0_11 = arith.constant 0 : index
      %12 = vector.load %arg8[%c0_10, %c0_11] : memref<128x128xf32, #tpu.memory_space<vmem>>, vector<128x128xf32>
      %c0_12 = arith.constant 0 : index
      %c0_13 = arith.constant 0 : index
      %13 = vector.load %arg5[%c0_12, %c0_13] : memref<1x128xf32, #tpu.memory_space<vmem>>, vector<1x128xf32>
      %14 = vector.broadcast %13 : vector<1x128xf32> to vector<128x128xf32>
      %15 = arith.mulf %12, %14 : vector<128x128xf32>
      %c0_14 = arith.constant 0 : index
      %c0_15 = arith.constant 0 : index
      %16 = vector.load %arg6[%c0_14, %c0_15] : memref<1x128xf32, #tpu.memory_space<vmem>>, vector<1x128xf32>
      %17 = vector.broadcast %16 : vector<1x128xf32> to vector<128x128xf32>
      %18 = arith.addf %15, %17 : vector<128x128xf32>
      %19 = arith.truncf %18 : vector<128x128xf32> to vector<128x128xbf16>
      %c0_16 = arith.constant 0 : index
      %c0_17 = arith.constant 0 : index
      %20 = vector.load %arg7[%c0_16, %c0_17] : memref<128x128xbf16, #tpu.memory_space<vmem>>, vector<128x128xbf16>
      tpu.vector_store %arg7[%c0_16, %c0_17], %19 {strides = array<i32>} : memref<128x128xbf16, #tpu.memory_space<vmem>>, vector<128x128xbf16>,
    } else {
    }
    return
  }
  func.func @transform_0(%arg0: i32, %arg1: i32, %arg2: i32) -> (i32, i32) {
    %c0_i32 = arith.constant 0 : i32
    return %arg0, %arg2 : i32, i32
  }
  func.func @transform_1(%arg0: i32, %arg1: i32, %arg2: i32) -> (i32, i32) {
    %c0_i32 = arith.constant 0 : i32
    return %arg2, %arg1 : i32, i32
  }
  func.func @transform_2(%arg0: i32, %arg1: i32, %arg2: i32) -> (i32, i32) {
    %c0_i32 = arith.constant 0 : i32
    %c0_i32_0 = arith.constant 0 : i32
    return %c0_i32, %arg1 : i32, i32
  }
  func.func @transform_3(%arg0: i32, %arg1: i32, %arg2: i32) -> (i32, i32) {
    %c0_i32 = arith.constant 0 : i32
    %c0_i32_0 = arith.constant 0 : i32
    return %c0_i32, %arg1 : i32, i32
  }
  func.func @transform_4(%arg0: i32, %arg1: i32, %arg2: i32) -> (i32, i32) {
    %c0_i32 = arith.constant 0 : i32
    return %arg0, %arg1 : i32, i32
  }
}

module attributes {stable_mosaic.version = 11 : i64} {
  func.func @_affine_act_kernel(%arg0: i32, %arg1: memref<256x128xf32, #tpu.memory_space<vmem>>, %arg2: memref<1x128xf32, #tpu.memory_space<vmem>>, %arg3: memref<1x128xf32, #tpu.memory_space<vmem>>, %arg4: memref<256x128xf32, #tpu.memory_space<vmem>>) attributes {dimension_semantics = [#tpu.dimension_semantics<parallel>], iteration_bounds = array<i64: 2>, scalar_prefetch = 0 : i64, scratch_operands = 0 : i64, tpu.core_type = #tpu.core_type<tc>, window_params = [{transform_indices = @transform_0, window_bounds = array<i64: 256, 128>}, {pipeline_mode = #tpu.pipeline_mode<synchronous>, transform_indices = @transform_1, window_bounds = array<i64: 1, 128>}, {pipeline_mode = #tpu.pipeline_mode<synchronous>, transform_indices = @transform_2, window_bounds = array<i64: 1, 128>}, {transform_indices = @transform_3, window_bounds = array<i64: 256, 128>}]} {
    %c0 = arith.constant 0 : index
    %c0_0 = arith.constant 0 : index
    %0 = vector.load %arg1[%c0, %c0_0] : memref<256x128xf32, #tpu.memory_space<vmem>>, vector<256x128xf32>
    %c0_1 = arith.constant 0 : index
    %c0_2 = arith.constant 0 : index
    %1 = vector.load %arg2[%c0_1, %c0_2] : memref<1x128xf32, #tpu.memory_space<vmem>>, vector<1x128xf32>
    %2 = vector.broadcast %1 : vector<1x128xf32> to vector<256x128xf32>
    %3 = arith.mulf %0, %2 : vector<256x128xf32>
    %c0_3 = arith.constant 0 : index
    %c0_4 = arith.constant 0 : index
    %4 = vector.load %arg3[%c0_3, %c0_4] : memref<1x128xf32, #tpu.memory_space<vmem>>, vector<1x128xf32>
    %5 = vector.broadcast %4 : vector<1x128xf32> to vector<256x128xf32>
    %6 = arith.addf %3, %5 : vector<256x128xf32>
    %7 = math.tanh %6 : vector<256x128xf32>
    %c0_5 = arith.constant 0 : index
    %c0_6 = arith.constant 0 : index
    %8 = vector.load %arg4[%c0_5, %c0_6] : memref<256x128xf32, #tpu.memory_space<vmem>>, vector<256x128xf32>
    tpu.vector_store %arg4[%c0_5, %c0_6], %7 {strides = array<i32>} : memref<256x128xf32, #tpu.memory_space<vmem>>, vector<256x128xf32>,
    return
  }
  func.func @transform_0(%arg0: i32) -> (i32, i32) {
    %c0_i32 = arith.constant 0 : i32
    %c0_i32_0 = arith.constant 0 : i32
    return %arg0, %c0_i32 : i32, i32
  }
  func.func @transform_1(%arg0: i32) -> (i32, i32) {
    %c0_i32 = arith.constant 0 : i32
    %c0_i32_0 = arith.constant 0 : i32
    %c0_i32_1 = arith.constant 0 : i32
    return %c0_i32, %c0_i32_0 : i32, i32
  }
  func.func @transform_2(%arg0: i32) -> (i32, i32) {
    %c0_i32 = arith.constant 0 : i32
    %c0_i32_0 = arith.constant 0 : i32
    %c0_i32_1 = arith.constant 0 : i32
    return %c0_i32, %c0_i32_0 : i32, i32
  }
  func.func @transform_3(%arg0: i32) -> (i32, i32) {
    %c0_i32 = arith.constant 0 : i32
    %c0_i32_0 = arith.constant 0 : i32
    return %arg0, %c0_i32 : i32, i32
  }
}

</mosaic_0001>

<llo_original>
// kernel: netg_forward.12
$region0: #{netg_forward.12}
  #allocation0 [shape = 'u32[]', space=smem, size = 0x4, offset = 0x4, fixed_abs, tag = 'smem constant byte address 0x4 - core index']
  #allocation1 [shape = 'u32[144,128]{1,0:T(1,128)}', space=vmem, size = 0x12000, scoped, tag = 'internal scratch']
  #allocation2 [shape = 'f32[128,128]{1,0:T(8,128)}', space=vmem, size = 0x10000, scoped, tag = 'scratch operand']
  %s0 = inlined_call_operand.vmem [shape: bf16[128,128], index: 0, kind: input, shape index: {}]
  %s1 = inlined_call_operand.vmem [shape: bf16[128,128], index: 1, kind: input, shape index: {}]
  %s2 = inlined_call_operand.vmem [shape: f32[1,128], index: 2, kind: input, shape index: {}]
  %s3 = inlined_call_operand.vmem [shape: f32[1,128], index: 3, kind: input, shape index: {}]
  %s4 = inlined_call_operand.vmem [shape: bf16[128,128], index: 4, kind: output, shape index: {}]
  %s5 = sld [smem:[#allocation0]]
  $region34: #{netg_forward.12} parent=0
    _
  %s7 = ssub.s32 1, %s5
  %s8 = scalar_select 0, %s7, %s5
  // Predicated region
  $region2: #{netg_forward.12} parent=0 // pred_check
    _
  $region3: #{netg_forward.12} parent=0 // pred_check_branch
    %10 = sbr.rel (0) target = $region5
  $region4: #{netg_forward.12} parent=0 // pred_region
    _
  $region5: #{netg_forward.12} parent=0 // pred_fallthru
    _
  // Predicated region
  $region6: #{netg_forward.12} parent=0 // pred_check
    _
  $region7: #{netg_forward.12} parent=0 // pred_check_branch
    %12 = sbr.rel (0) target = $region9
  $region8: #{netg_forward.12} parent=0 // pred_region
    _
  $region9: #{netg_forward.12} parent=0 // pred_fallthru
    _
  // Predicated region
  $region10: #{netg_forward.12} parent=0 // pred_check
    _
  $region11: #{netg_forward.12} parent=0 // pred_check_branch
    %14 = sbr.rel (0) target = $region13
  $region12: #{netg_forward.12} parent=0 // pred_region
    _
  $region13: #{netg_forward.12} parent=0 // pred_fallthru
    _
  // Predicated region
  $region14: #{netg_forward.12} parent=0 // pred_check
    _
  $region15: #{netg_forward.12} parent=0 // pred_check_branch
    %16 = sbr.rel (0) target = $region17
  $region16: #{netg_forward.12} parent=0 // pred_region
    _
  $region17: #{netg_forward.12} parent=0 // pred_fallthru
    _
  %p18 = scmp.eq.s32.totalorder 0, 0
  // Predicated region
  $region18: #{netg_forward.12} parent=0 // pred_check
    %p19 = pneg %p18
  $region19: #{netg_forward.12} parent=0 // pred_check_branch
    %21 = sbr.rel (%p19) target = $region21
  $region20: #{netg_forward.12} parent=0 // pred_region
    %22 = vst [vmem:[#allocation2] sm:$0xff] 0.0
    %23 = vst [vmem:[#allocation2 + $0x8] sm:$0xff] 0.0
    %24 = vst [vmem:[#allocation2 + $0x10] sm:$0xff] 0.0
    %25 = vst [vmem:[#allocation2 + $0x18] sm:$0xff] 0.0
    %26 = vst [vmem:[#allocation2 + $0x20] sm:$0xff] 0.0
    %27 = vst [vmem:[#allocation2 + $0x28] sm:$0xff] 0.0
    %28 = vst [vmem:[#allocation2 + $0x30] sm:$0xff] 0.0
    %29 = vst [vmem:[#allocation2 + $0x38] sm:$0xff] 0.0
    %30 = vst [vmem:[#allocation2 + $0x40] sm:$0xff] 0.0
    %31 = vst [vmem:[#allocation2 + $0x48] sm:$0xff] 0.0
    %32 = vst [vmem:[#allocation2 + $0x50] sm:$0xff] 0.0
    %33 = vst [vmem:[#allocation2 + $0x58] sm:$0xff] 0.0
    %34 = vst [vmem:[#allocation2 + $0x60] sm:$0xff] 0.0
    %35 = vst [vmem:[#allocation2 + $0x68] sm:$0xff] 0.0
    %36 = vst [vmem:[#allocation2 + $0x70] sm:$0xff] 0.0
    %37 = vst [vmem:[#allocation2 + $0x78] sm:$0xff] 0.0
  $region21: #{netg_forward.12} parent=0 // pred_fallthru
    _
  %v38 = vld [vmem:[#allocation2] sm:$0xff]
  %v39 = vld [vmem:[#allocation2 + $0x8] sm:$0xff]
  %v40 = vld [vmem:[#allocation2 + $0x10] sm:$0xff]
  %v41 = vld [vmem:[#allocation2 + $0x18] sm:$0xff]
  %v42 = vld [vmem:[#allocation2 + $0x20] sm:$0xff]
  %v43 = vld [vmem:[#allocation2 + $0x28] sm:$0xff]
  %v44 = vld [vmem:[#allocation2 + $0x30] sm:$0xff]
  %v45 = vld [vmem:[#allocation2 + $0x38] sm:$0xff]
  %v46 = vld [vmem:[#allocation2 + $0x40] sm:$0xff]
  %v47 = vld [vmem:[#allocation2 + $0x48] sm:$0xff]
  %v48 = vld [vmem:[#allocation2 + $0x50] sm:$0xff]
  %v49 = vld [vmem:[#allocation2 + $0x58] sm:$0xff]
  %v50 = vld [vmem:[#allocation2 + $0x60] sm:$0xff]
  %v51 = vld [vmem:[#allocation2 + $0x68] sm:$0xff]
  %v52 = vld [vmem:[#allocation2 + $0x70] sm:$0xff]
  %v53 = vld [vmem:[#allocation2 + $0x78] sm:$0xff]
  %v54 = vld [vmem:[%s0] sm:$0xf]
  %v55 = vld [vmem:[%s0 + $0x4] sm:$0xf]
  %v56 = vld [vmem:[%s0 + $0x8] sm:$0xf]
  %v57 = vld [vmem:[%s0 + $0xc] sm:$0xf]
  %v58 = vld [vmem:[%s0 + $0x10] sm:$0xf]
  %v59 = vld [vmem:[%s0 + $0x14] sm:$0xf]
  %v60 = vld [vmem:[%s0 + $0x18] sm:$0xf]
  %v61 = vld [vmem:[%s0 + $0x1c] sm:$0xf]
  %v62 = vld [vmem:[%s0 + $0x20] sm:$0xf]
  %v63 = vld [vmem:[%s0 + $0x24] sm:$0xf]
  %v64 = vld [vmem:[%s0 + $0x28] sm:$0xf]
  %v65 = vld [vmem:[%s0 + $0x2c] sm:$0xf]
  %v66 = vld [vmem:[%s0 + $0x30] sm:$0xf]
  %v67 = vld [vmem:[%s0 + $0x34] sm:$0xf]
  %v68 = vld [vmem:[%s0 + $0x38] sm:$0xf]
  %v69 = vld [vmem:[%s0 + $0x3c] sm:$0xf]
  %v70 = vld [vmem:[%s1] sm:$0xf]
  %v71 = vld [vmem:[%s1 + $0x4] sm:$0xf]
  %v72 = vld [vmem:[%s1 + $0x8] sm:$0xf]
  %v73 = vld [vmem:[%s1 + $0xc] sm:$0xf]
  %v74 = vld [vmem:[%s1 + $0x10] sm:$0xf]
  %v75 = vld [vmem:[%s1 + $0x14] sm:$0xf]
  %v76 = vld [vmem:[%s1 + $0x18] sm:$0xf]
  %v77 = vld [vmem:[%s1 + $0x1c] sm:$0xf]
  %v78 = vld [vmem:[%s1 + $0x20] sm:$0xf]
  %v79 = vld [vmem:[%s1 + $0x24] sm:$0xf]
  %v80 = vld [vmem:[%s1 + $0x28] sm:$0xf]
  %v81 = vld [vmem:[%s1 + $0x2c] sm:$0xf]
  %v82 = vld [vmem:[%s1 + $0x30] sm:$0xf]
  %v83 = vld [vmem:[%s1 + $0x34] sm:$0xf]
  %v84 = vld [vmem:[%s1 + $0x38] sm:$0xf]
  %v85 = vld [vmem:[%s1 + $0x3c] sm:$0xf]
  %v102 = vunpack.c.l.b16 %v54
  %v103 = vunpack.c.l.b16 %v55
  %v104 = vunpack.c.l.b16 %v56
  %v105 = vunpack.c.l.b16 %v57
  %v106 = vunpack.c.l.b16 %v58
  %v107 = vunpack.c.l.b16 %v59
  %v108 = vunpack.c.l.b16 %v60
  %v109 = vunpack.c.l.b16 %v61
  %v110 = vunpack.c.l.b16 %v62
  %v111 = vunpack.c.l.b16 %v63
  %v112 = vunpack.c.l.b16 %v64
  %v113 = vunpack.c.l.b16 %v65
  %v114 = vunpack.c.l.b16 %v66
  %v115 = vunpack.c.l.b16 %v67
  %v116 = vunpack.c.l.b16 %v68
  %v117 = vunpack.c.l.b16 %v69
  %v118 = vpack.c.b16 %v103, %v102
  %v119 = vpack.c.b16 %v105, %v104
  %v120 = vpack.c.b16 %v107, %v106
  %v121 = vpack.c.b16 %v109, %v108
  %v122 = vpack.c.b16 %v111, %v110
  %v123 = vpack.c.b16 %v113, %v112
  %v124 = vpack.c.b16 %v115, %v114
  %v125 = vpack.c.b16 %v117, %v116
  %v150 = vunpack.c.l.b16 %v70
  %v151 = vunpack.c.l.b16 %v71
  %v152 = vunpack.c.l.b16 %v72
  %v153 = vunpack.c.l.b16 %v73
  %v154 = vunpack.c.l.b16 %v74
  %v155 = vunpack.c.l.b16 %v75
  %v156 = vunpack.c.l.b16 %v76
  %v157 = vunpack.c.l.b16 %v77
  %v158 = vunpack.c.l.b16 %v78
  %v159 = vunpack.c.l.b16 %v79
  %v160 = vunpack.c.l.b16 %v80
  %v161 = vunpack.c.l.b16 %v81
  %v162 = vunpack.c.l.b16 %v82
  %v163 = vunpack.c.l.b16 %v83
  %v164 = vunpack.c.l.b16 %v84
  %v165 = vunpack.c.l.b16 %v85
  %v166 = vpack.c.b16 %v151, %v150
  %v167 = vpack.c.b16 %v153, %v152
  %v168 = vpack.c.b16 %v155, %v154
  %v169 = vpack.c.b16 %v157, %v156
  %v170 = vpack.c.b16 %v159, %v158
  %v171 = vpack.c.b16 %v161, %v160
  %v172 = vpack.c.b16 %v163, %v162
  %v173 = vpack.c.b16 %v165, %v164
  %182 = vmatprep.subr.bf16.mxu0 0
  %183 = vmatpush1.bf16.msra.mxu0 %v173
  %184 = vmatprep.subr.bf16.mxu0 0
  %185 = vmatpush1.bf16.msra.mxu0 %v172
  %186 = vmatprep.subr.bf16.mxu0 0
  %187 = vmatpush1.bf16.msra.mxu0 %v171
  %188 = vmatprep.subr.bf16.mxu0 0
  %189 = vmatpush1.bf16.msra.mxu0 %v170
  %190 = vmatprep.subr.bf16.mxu0 0
  %191 = vmatpush1.bf16.msra.mxu0 %v169
  %192 = vmatprep.subr.bf16.mxu0 0
  %193 = vmatpush1.bf16.msra.mxu0 %v168
  %194 = vmatprep.subr.bf16.mxu0 0
  %195 = vmatpush1.bf16.msra.mxu0 %v167
  %196 = vmatprep.subr.bf16.mxu0 0
  %197 = vmatpush1.bf16.msra.mxu0 %v166
  %198 = vmatprep.subr.bf16.mxu0 0
  %199 = vmatpush2.bf16.msra.mxu0 0
  %200 = vmatprep.subr.bf16.mxu0 0
  %201 = vmatpush2.bf16.msra.mxu0 0
  %202 = vmatprep.subr.bf16.mxu0 0
  %203 = vmatpush2.bf16.msra.mxu0 0
  %204 = vmatprep.subr.bf16.mxu0 0
  %205 = vmatpush2.bf16.msra.mxu0 0
  %206 = vmatprep.subr.bf16.mxu0 0
  %207 = vmatpush2.bf16.msra.mxu0 0
  %208 = vmatprep.subr.bf16.mxu0 0
  %209 = vmatpush2.bf16.msra.mxu0 0
  %210 = vmatprep.subr.bf16.mxu0 0
  %211 = vmatpush2.bf16.msra.mxu0 0
  %212 = vmatprep.subr.bf16.mxu0 0
  %213 = vmatpush2.bf16.msra.mxu0 0
  %214 = vmatprep.mubr.bf16.mxu0 0
  %215 = vmatmul.mubr.bf16.gmra.mxu0 %v118
  %v216 = vpop.f32.mrf.mxu0
  %v217 = vadd.f32 0.0, %v216
  %v218 = vpop.f32.mrf.mxu0
  %v219 = vpop.f32.mrf.mxu0
  %v220 = vadd.f32 0.0, %v219
  %v221 = vpop.f32.mrf.mxu0
  %222 = vmatprep.mubr.bf16.mxu0 0
  %223 = vmatmul.mubr.bf16.gmra.mxu0 %v119
  %v224 = vpop.f32.mrf.mxu0
  %v225 = vadd.f32 0.0, %v224
  %v226 = vpop.f32.mrf.mxu0
  %v227 = vpop.f32.mrf.mxu0
  %v228 = vadd.f32 0.0, %v227
  %v229 = vpop.f32.mrf.mxu0
  %230 = vmatprep.mubr.bf16.mxu0 0
  %231 = vmatmul.mubr.bf16.gmra.mxu0 %v120
  %v232 = vpop.f32.mrf.mxu0
  %v233 = vadd.f32 0.0, %v232
  %v234 = vpop.f32.mrf.mxu0
  %v235 = vpop.f32.mrf.mxu0
  %v236 = vadd.f32 0.0, %v235
  %v237 = vpop.f32.mrf.mxu0
  %238 = vmatprep.mubr.bf16.mxu0 0
  %239 = vmatmul.mubr.bf16.gmra.mxu0 %v121
  %v240 = vpop.f32.mrf.mxu0
  %v241 = vadd.f32 0.0, %v240
  %v242 = vpop.f32.mrf.mxu0
  %v243 = vpop.f32.mrf.mxu0
  %v244 = vadd.f32 0.0, %v243
  %v245 = vpop.f32.mrf.mxu0
  %246 = vmatprep.mubr.bf16.mxu0 0
  %247 = vmatmul.mubr.bf16.gmra.mxu0 %v122
  %v248 = vpop.f32.mrf.mxu0
  %v249 = vadd.f32 0.0, %v248
  %v250 = vpop.f32.mrf.mxu0
  %v251 = vpop.f32.mrf.mxu0
  %v252 = vadd.f32 0.0, %v251
  %v253 = vpop.f32.mrf.mxu0
  %254 = vmatprep.mubr.bf16.mxu0 0
  %255 = vmatmul.mubr.bf16.gmra.mxu0 %v123
  %v256 = vpop.f32.mrf.mxu0
  %v257 = vadd.f32 0.0, %v256
  %v258 = vpop.f32.mrf.mxu0
  %v259 = vpop.f32.mrf.mxu0
  %v260 = vadd.f32 0.0, %v259
  %v261 = vpop.f32.mrf.mxu0
  %262 = vmatprep.mubr.bf16.mxu0 0
  %263 = vmatmul.mubr.bf16.gmra.mxu0 %v124
  %v264 = vpop.f32.mrf.mxu0
  %v265 = vadd.f32 0.0, %v264
  %v266 = vpop.f32.mrf.mxu0
  %v267 = vpop.f32.mrf.mxu0
  %v268 = vadd.f32 0.0, %v267
  %v269 = vpop.f32.mrf.mxu0
  %270 = vmatprep.mubr.bf16.mxu0 0
  %271 = vmatmul.mubr.bf16.gmra.mxu0 %v125
  %v272 = vpop.f32.mrf.mxu0
  %v273 = vadd.f32 0.0, %v272
  %v274 = vpop.f32.mrf.mxu0
  %v275 = vpop.f32.mrf.mxu0
  %v276 = vadd.f32 0.0, %v275
  %v277 = vpop.f32.mrf.mxu0
  %278 = vdwg.mxu0
  %v279 = vadd.f32 %v38, %v217
  %v280 = vadd.f32 %v39, %v220
  %v281 = vadd.f32 %v40, %v225
  %v282 = vadd.f32 %v41, %v228
  %v283 = vadd.f32 %v42, %v233
  %v284 = vadd.f32 %v43, %v236
  %v285 = vadd.f32 %v44, %v241
  %v286 = vadd.f32 %v45, %v244
  %v287 = vadd.f32 %v46, %v249
  %v288 = vadd.f32 %v47, %v252
  %v289 = vadd.f32 %v48, %v257
  %v290 = vadd.f32 %v49, %v260
  %v291 = vadd.f32 %v50, %v265
  %v292 = vadd.f32 %v51, %v268
  %v293 = vadd.f32 %v52, %v273
  %v294 = vadd.f32 %v53, %v276
  %295 = vst [vmem:[#allocation2] sm:$0xff] %v279
  %296 = vst [vmem:[#allocation2 + $0x8] sm:$0xff] %v280
  %297 = vst [vmem:[#allocation2 + $0x10] sm:$0xff] %v281
  %298 = vst [vmem:[#allocation2 + $0x18] sm:$0xff] %v282
  %299 = vst [vmem:[#allocation2 + $0x20] sm:$0xff] %v283
  %300 = vst [vmem:[#allocation2 + $0x28] sm:$0xff] %v284
  %301 = vst [vmem:[#allocation2 + $0x30] sm:$0xff] %v285
  %302 = vst [vmem:[#allocation2 + $0x38] sm:$0xff] %v286
  %303 = vst [vmem:[#allocation2 + $0x40] sm:$0xff] %v287
  %304 = vst [vmem:[#allocation2 + $0x48] sm:$0xff] %v288
  %305 = vst [vmem:[#allocation2 + $0x50] sm:$0xff] %v289
  %306 = vst [vmem:[#allocation2 + $0x58] sm:$0xff] %v290
  %307 = vst [vmem:[#allocation2 + $0x60] sm:$0xff] %v291
  %308 = vst [vmem:[#allocation2 + $0x68] sm:$0xff] %v292
  %309 = vst [vmem:[#allocation2 + $0x70] sm:$0xff] %v293
  %310 = vst [vmem:[#allocation2 + $0x78] sm:$0xff] %v294
  // Predicated region
  $region22: #{netg_forward.12} parent=0 // pred_check
    %p311 = pneg %p18
  $region23: #{netg_forward.12} parent=0 // pred_check_branch
    %313 = sbr.rel (%p311) target = $region25
  $region24: #{netg_forward.12} parent=0 // pred_region
    %v314 = vld [vmem:[#allocation2] sm:$0xff]
    %v315 = vld [vmem:[#allocation2 + $0x8] sm:$0xff]
    %v316 = vld [vmem:[#allocation2 + $0x10] sm:$0xff]
    %v317 = vld [vmem:[#allocation2 + $0x18] sm:$0xff]
    %v318 = vld [vmem:[#allocation2 + $0x20] sm:$0xff]
    %v319 = vld [vmem:[#allocation2 + $0x28] sm:$0xff]
    %v320 = vld [vmem:[#allocation2 + $0x30] sm:$0xff]
    %v321 = vld [vmem:[#allocation2 + $0x38] sm:$0xff]
    %v322 = vld [vmem:[#allocation2 + $0x40] sm:$0xff]
    %v323 = vld [vmem:[#allocation2 + $0x48] sm:$0xff]
    %v324 = vld [vmem:[#allocation2 + $0x50] sm:$0xff]
    %v325 = vld [vmem:[#allocation2 + $0x58] sm:$0xff]
    %v326 = vld [vmem:[#allocation2 + $0x60] sm:$0xff]
    %v327 = vld [vmem:[#allocation2 + $0x68] sm:$0xff]
    %v328 = vld [vmem:[#allocation2 + $0x70] sm:$0xff]
    %v329 = vld [vmem:[#allocation2 + $0x78] sm:$0xff]
    %v330 = vld [vmem:[%s2] sm:$0x1]
    %v332 = vlaneseq
    %v333 = vshrl.u32 %v332, 7
    %v334 = vsub.s32 0, %v333
    %v335 = vrot.slane %v330, %v334
    %v337 = vmul.f32 %v314, %v335
    %v338 = vmul.f32 %v315, %v335
    %v339 = vmul.f32 %v316, %v335
    %v340 = vmul.f32 %v317, %v335
    %v341 = vmul.f32 %v318, %v335
    %v342 = vmul.f32 %v319, %v335
    %v343 = vmul.f32 %v320, %v335
    %v344 = vmul.f32 %v321, %v335
    %v345 = vmul.f32 %v322, %v335
    %v346 = vmul.f32 %v323, %v335
    %v347 = vmul.f32 %v324, %v335
    %v348 = vmul.f32 %v325, %v335
    %v349 = vmul.f32 %v326, %v335
    %v350 = vmul.f32 %v327, %v335
    %v351 = vmul.f32 %v328, %v335
    %v352 = vmul.f32 %v329, %v335
    %v353 = vld [vmem:[%s3] sm:$0x1]
    %v355 = vlaneseq
    %v356 = vshrl.u32 %v355, 7
    %v357 = vsub.s32 0, %v356
    %v358 = vrot.slane %v353, %v357
    %v360 = vadd.f32 %v337, %v358
    %v361 = vadd.f32 %v338, %v358
    %v362 = vadd.f32 %v339, %v358
    %v363 = vadd.f32 %v340, %v358
    %v364 = vadd.f32 %v341, %v358
    %v365 = vadd.f32 %v342, %v358
    %v366 = vadd.f32 %v343, %v358
    %v367 = vadd.f32 %v344, %v358
    %v368 = vadd.f32 %v345, %v358
    %v369 = vadd.f32 %v346, %v358
    %v370 = vadd.f32 %v347, %v358
    %v371 = vadd.f32 %v348, %v358
    %v372 = vadd.f32 %v349, %v358
    %v373 = vadd.f32 %v350, %v358
    %v374 = vadd.f32 %v351, %v358
    %v375 = vadd.f32 %v352, %v358
    %vm376 = vcmp.gt.f32.partialorder %v360, 0.0
    %vm377 = vcmp.gt.f32.partialorder %v361, 0.0
    %vm378 = vcmp.gt.f32.partialorder %v362, 0.0
    %vm379 = vcmp.gt.f32.partialorder %v363, 0.0
    %vm380 = vcmp.gt.f32.partialorder %v364, 0.0
    %vm381 = vcmp.gt.f32.partialorder %v365, 0.0
    %vm382 = vcmp.gt.f32.partialorder %v366, 0.0
    %vm383 = vcmp.gt.f32.partialorder %v367, 0.0
    %vm384 = vcmp.gt.f32.partialorder %v368, 0.0
    %vm385 = vcmp.gt.f32.partialorder %v369, 0.0
    %vm386 = vcmp.gt.f32.partialorder %v370, 0.0
    %vm387 = vcmp.gt.f32.partialorder %v371, 0.0
    %vm388 = vcmp.gt.f32.partialorder %v372, 0.0
    %vm389 = vcmp.gt.f32.partialorder %v373, 0.0
    %vm390 = vcmp.gt.f32.partialorder %v374, 0.0
    %vm391 = vcmp.gt.f32.partialorder %v375, 0.0
    %v392 = vmul.f32 %v360, 0.2
    %v393 = vmul.f32 %v361, 0.2
    %v394 = vmul.f32 %v362, 0.2
    %v395 = vmul.f32 %v363, 0.2
    %v396 = vmul.f32 %v364, 0.2
    %v397 = vmul.f32 %v365, 0.2
    %v398 = vmul.f32 %v366, 0.2
    %v399 = vmul.f32 %v367, 0.2
    %v400 = vmul.f32 %v368, 0.2
    %v401 = vmul.f32 %v369, 0.2
    %v402 = vmul.f32 %v370, 0.2
    %v403 = vmul.f32 %v371, 0.2
    %v404 = vmul.f32 %v372, 0.2
    %v405 = vmul.f32 %v373, 0.2
    %v406 = vmul.f32 %v374, 0.2
    %v407 = vmul.f32 %v375, 0.2
    %v408 = vsel %vm376, %v360, %v392
    %v409 = vsel %vm377, %v361, %v393
    %v410 = vsel %vm378, %v362, %v394
    %v411 = vsel %vm379, %v363, %v395
    %v412 = vsel %vm380, %v364, %v396
    %v413 = vsel %vm381, %v365, %v397
    %v414 = vsel %vm382, %v366, %v398
    %v415 = vsel %vm383, %v367, %v399
    %v416 = vsel %vm384, %v368, %v400
    %v417 = vsel %vm385, %v369, %v401
    %v418 = vsel %vm386, %v370, %v402
    %v419 = vsel %vm387, %v371, %v403
    %v420 = vsel %vm388, %v372, %v404
    %v421 = vsel %vm389, %v373, %v405
    %v422 = vsel %vm390, %v374, %v406
    %v423 = vsel %vm391, %v375, %v407
    %v424 = vpack.c.bf16 %v409, %v408
    %v425 = vpack.c.bf16 %v411, %v410
    %v426 = vpack.c.bf16 %v413, %v412
    %v427 = vpack.c.bf16 %v415, %v414
    %v428 = vpack.c.bf16 %v417, %v416
    %v429 = vpack.c.bf16 %v419, %v418
    %v430 = vpack.c.bf16 %v421, %v420
    %v431 = vpack.c.bf16 %v423, %v422
    %v440 = vunpack.c.l.b16 %v424
    %v441 = vunpack.c.h.b16 %v424
    %v442 = vunpack.c.l.b16 %v425
    %v443 = vunpack.c.h.b16 %v425
    %v444 = vunpack.c.l.b16 %v426
    %v445 = vunpack.c.h.b16 %v426
    %v446 = vunpack.c.l.b16 %v427
    %v447 = vunpack.c.h.b16 %v427
    %v448 = vunpack.c.l.b16 %v428
    %v449 = vunpack.c.h.b16 %v428
    %v450 = vunpack.c.l.b16 %v429
    %v451 = vunpack.c.h.b16 %v429
    %v452 = vunpack.c.l.b16 %v430
    %v453 = vunpack.c.h.b16 %v430
    %v454 = vunpack.c.l.b16 %v431
    %v455 = vunpack.c.h.b16 %v431
    %v456 = vpack.c.b16 %v440, %v440
    %v457 = vpack.c.b16 %v441, %v441
    %v458 = vpack.c.b16 %v442, %v442
    %v459 = vpack.c.b16 %v443, %v443
    %v460 = vpack.c.b16 %v444, %v444
    %v461 = vpack.c.b16 %v445, %v445
    %v462 = vpack.c.b16 %v446, %v446
    %v463 = vpack.c.b16 %v447, %v447
    %v464 = vpack.c.b16 %v448, %v448
    %v465 = vpack.c.b16 %v449, %v449
    %v466 = vpack.c.b16 %v450, %v450
    %v467 = vpack.c.b16 %v451, %v451
    %v468 = vpack.c.b16 %v452, %v452
    %v469 = vpack.c.b16 %v453, %v453
    %v470 = vpack.c.b16 %v454, %v454
    %v471 = vpack.c.b16 %v455, %v455
    %488 = vst [vmem:[%s4] sm:$0xf] %v456
    %489 = vst [vmem:[%s4 + $0x4] sm:$0xf] %v457
    %490 = vst [vmem:[%s4 + $0x8] sm:$0xf] %v458
    %491 = vst [vmem:[%s4 + $0xc] sm:$0xf] %v459
    %492 = vst [vmem:[%s4 + $0x10] sm:$0xf] %v460
    %493 = vst [vmem:[%s4 + $0x14] sm:$0xf] %v461
    %494 = vst [vmem:[%s4 + $0x18] sm:$0xf] %v462
    %495 = vst [vmem:[%s4 + $0x1c] sm:$0xf] %v463
    %496 = vst [vmem:[%s4 + $0x20] sm:$0xf] %v464
    %497 = vst [vmem:[%s4 + $0x24] sm:$0xf] %v465
    %498 = vst [vmem:[%s4 + $0x28] sm:$0xf] %v466
    %499 = vst [vmem:[%s4 + $0x2c] sm:$0xf] %v467
    %500 = vst [vmem:[%s4 + $0x30] sm:$0xf] %v468
    %501 = vst [vmem:[%s4 + $0x34] sm:$0xf] %v469
    %502 = vst [vmem:[%s4 + $0x38] sm:$0xf] %v470
    %503 = vst [vmem:[%s4 + $0x3c] sm:$0xf] %v471
  $region25: #{netg_forward.12} parent=0 // pred_fallthru
    _
  // Predicated region
  $region26: #{netg_forward.12} parent=0 // pred_check
    _
  $region27: #{netg_forward.12} parent=0 // pred_check_branch
    %505 = sbr.rel (0) target = $region29
  $region28: #{netg_forward.12} parent=0 // pred_region
    _
  $region29: #{netg_forward.12} parent=0 // pred_fallthru
    _
  // Predicated region
  $region30: #{netg_forward.12} parent=0 // pred_check
    _
  $region31: #{netg_forward.12} parent=0 // pred_check_branch
    %507 = sbr.rel (0) target = $region33
  $region32: #{netg_forward.12} parent=0 // pred_region
    _
  $region33: #{netg_forward.12} parent=0 // pred_fallthru
    _

// kernel: netg_forward.14
$region0: #{netg_forward.14}
  #allocation0 [shape = 'u32[]', space=smem, size = 0x4, offset = 0x4, fixed_abs, tag = 'smem constant byte address 0x4 - core index']
  #allocation1 [shape = 'u32[144,128]{1,0:T(1,128)}', space=vmem, size = 0x12000, scoped, tag = 'internal scratch']
  %s0 = inlined_call_operand.vmem [shape: bf16[128,128], index: 0, kind: input, shape index: {}]
  %s1 = inlined_call_operand.vmem [shape: f32[1,128], index: 1, kind: input, shape index: {}]
  %s2 = inlined_call_operand.vmem [shape: f32[1,128], index: 2, kind: input, shape index: {}]
  %s3 = inlined_call_operand.vmem [shape: bf16[128,128], index: 3, kind: output, shape index: {}]
  %s4 = sld [smem:[#allocation0]]
  $region22: #{netg_forward.14} parent=0
    _
  %s6 = ssub.s32 1, %s4
  %s7 = scalar_select 0, %s6, %s4
  // Predicated region
  $region2: #{netg_forward.14} parent=0 // pred_check
    _
  $region3: #{netg_forward.14} parent=0 // pred_check_branch
    %9 = sbr.rel (0) target = $region5
  $region4: #{netg_forward.14} parent=0 // pred_region
    _
  $region5: #{netg_forward.14} parent=0 // pred_fallthru
    _
  // Predicated region
  $region6: #{netg_forward.14} parent=0 // pred_check
    _
  $region7: #{netg_forward.14} parent=0 // pred_check_branch
    %11 = sbr.rel (0) target = $region9
  $region8: #{netg_forward.14} parent=0 // pred_region
    _
  $region9: #{netg_forward.14} parent=0 // pred_fallthru
    _
  // Predicated region
  $region10: #{netg_forward.14} parent=0 // pred_check
    _
  $region11: #{netg_forward.14} parent=0 // pred_check_branch
    %13 = sbr.rel (0) target = $region13
  $region12: #{netg_forward.14} parent=0 // pred_region
    _
  $region13: #{netg_forward.14} parent=0 // pred_fallthru
    _
  %v14 = vld [vmem:[%s0] sm:$0xf]
  %v15 = vld [vmem:[%s0 + $0x4] sm:$0xf]
  %v16 = vld [vmem:[%s0 + $0x8] sm:$0xf]
  %v17 = vld [vmem:[%s0 + $0xc] sm:$0xf]
  %v18 = vld [vmem:[%s0 + $0x10] sm:$0xf]
  %v19 = vld [vmem:[%s0 + $0x14] sm:$0xf]
  %v20 = vld [vmem:[%s0 + $0x18] sm:$0xf]
  %v21 = vld [vmem:[%s0 + $0x1c] sm:$0xf]
  %v22 = vld [vmem:[%s0 + $0x20] sm:$0xf]
  %v23 = vld [vmem:[%s0 + $0x24] sm:$0xf]
  %v24 = vld [vmem:[%s0 + $0x28] sm:$0xf]
  %v25 = vld [vmem:[%s0 + $0x2c] sm:$0xf]
  %v26 = vld [vmem:[%s0 + $0x30] sm:$0xf]
  %v27 = vld [vmem:[%s0 + $0x34] sm:$0xf]
  %v28 = vld [vmem:[%s0 + $0x38] sm:$0xf]
  %v29 = vld [vmem:[%s0 + $0x3c] sm:$0xf]
  %v30 = vunpack.c.l.bf16 %v14
  %v31 = vunpack.c.l.bf16 %v15
  %v32 = vunpack.c.l.bf16 %v16
  %v33 = vunpack.c.l.bf16 %v17
  %v34 = vunpack.c.l.bf16 %v18
  %v35 = vunpack.c.l.bf16 %v19
  %v36 = vunpack.c.l.bf16 %v20
  %v37 = vunpack.c.l.bf16 %v21
  %v38 = vunpack.c.l.bf16 %v22
  %v39 = vunpack.c.l.bf16 %v23
  %v40 = vunpack.c.l.bf16 %v24
  %v41 = vunpack.c.l.bf16 %v25
  %v42 = vunpack.c.l.bf16 %v26
  %v43 = vunpack.c.l.bf16 %v27
  %v44 = vunpack.c.l.bf16 %v28
  %v45 = vunpack.c.l.bf16 %v29
  %v46 = vld [vmem:[%s1] sm:$0x1]
  %v48 = vlaneseq
  %v49 = vshrl.u32 %v48, 7
  %v50 = vsub.s32 0, %v49
  %v51 = vrot.slane %v46, %v50
  %v53 = vmul.f32 %v30, %v51
  %v54 = vmul.f32 %v31, %v51
  %v55 = vmul.f32 %v32, %v51
  %v56 = vmul.f32 %v33, %v51
  %v57 = vmul.f32 %v34, %v51
  %v58 = vmul.f32 %v35, %v51
  %v59 = vmul.f32 %v36, %v51
  %v60 = vmul.f32 %v37, %v51
  %v61 = vmul.f32 %v38, %v51
  %v62 = vmul.f32 %v39, %v51
  %v63 = vmul.f32 %v40, %v51
  %v64 = vmul.f32 %v41, %v51
  %v65 = vmul.f32 %v42, %v51
  %v66 = vmul.f32 %v43, %v51
  %v67 = vmul.f32 %v44, %v51
  %v68 = vmul.f32 %v45, %v51
  %v69 = vld [vmem:[%s2] sm:$0x1]
  %v71 = vlaneseq
  %v72 = vshrl.u32 %v71, 7
  %v73 = vsub.s32 0, %v72
  %v74 = vrot.slane %v69, %v73
  %v76 = vadd.f32 %v53, %v74
  %v77 = vadd.f32 %v54, %v74
  %v78 = vadd.f32 %v55, %v74
  %v79 = vadd.f32 %v56, %v74
  %v80 = vadd.f32 %v57, %v74
  %v81 = vadd.f32 %v58, %v74
  %v82 = vadd.f32 %v59, %v74
  %v83 = vadd.f32 %v60, %v74
  %v84 = vadd.f32 %v61, %v74
  %v85 = vadd.f32 %v62, %v74
  %v86 = vadd.f32 %v63, %v74
  %v87 = vadd.f32 %v64, %v74
  %v88 = vadd.f32 %v65, %v74
  %v89 = vadd.f32 %v66, %v74
  %v90 = vadd.f32 %v67, %v74
  %v91 = vadd.f32 %v68, %v74
  %vm92 = vcmp.gt.f32.partialorder %v76, 0.0
  %vm93 = vcmp.gt.f32.partialorder %v77, 0.0
  %vm94 = vcmp.gt.f32.partialorder %v78, 0.0
  %vm95 = vcmp.gt.f32.partialorder %v79, 0.0
  %vm96 = vcmp.gt.f32.partialorder %v80, 0.0
  %vm97 = vcmp.gt.f32.partialorder %v81, 0.0
  %vm98 = vcmp.gt.f32.partialorder %v82, 0.0
  %vm99 = vcmp.gt.f32.partialorder %v83, 0.0
  %vm100 = vcmp.gt.f32.partialorder %v84, 0.0
  %vm101 = vcmp.gt.f32.partialorder %v85, 0.0
  %vm102 = vcmp.gt.f32.partialorder %v86, 0.0
  %vm103 = vcmp.gt.f32.partialorder %v87, 0.0
  %vm104 = vcmp.gt.f32.partialorder %v88, 0.0
  %vm105 = vcmp.gt.f32.partialorder %v89, 0.0
  %vm106 = vcmp.gt.f32.partialorder %v90, 0.0
  %vm107 = vcmp.gt.f32.partialorder %v91, 0.0
  %v108 = vmul.f32 %v76, 0.2
  %v109 = vmul.f32 %v77, 0.2
  %v110 = vmul.f32 %v78, 0.2
  %v111 = vmul.f32 %v79, 0.2
  %v112 = vmul.f32 %v80, 0.2
  %v113 = vmul.f32 %v81, 0.2
  %v114 = vmul.f32 %v82, 0.2
  %v115 = vmul.f32 %v83, 0.2
  %v116 = vmul.f32 %v84, 0.2
  %v117 = vmul.f32 %v85, 0.2
  %v118 = vmul.f32 %v86, 0.2
  %v119 = vmul.f32 %v87, 0.2
  %v120 = vmul.f32 %v88, 0.2
  %v121 = vmul.f32 %v89, 0.2
  %v122 = vmul.f32 %v90, 0.2
  %v123 = vmul.f32 %v91, 0.2
  %v124 = vsel %vm92, %v76, %v108
  %v125 = vsel %vm93, %v77, %v109
  %v126 = vsel %vm94, %v78, %v110
  %v127 = vsel %vm95, %v79, %v111
  %v128 = vsel %vm96, %v80, %v112
  %v129 = vsel %vm97, %v81, %v113
  %v130 = vsel %vm98, %v82, %v114
  %v131 = vsel %vm99, %v83, %v115
  %v132 = vsel %vm100, %v84, %v116
  %v133 = vsel %vm101, %v85, %v117
  %v134 = vsel %vm102, %v86, %v118
  %v135 = vsel %vm103, %v87, %v119
  %v136 = vsel %vm104, %v88, %v120
  %v137 = vsel %vm105, %v89, %v121
  %v138 = vsel %vm106, %v90, %v122
  %v139 = vsel %vm107, %v91, %v123
  %v140 = vpack.c.bf16 %v125, %v124
  %v141 = vpack.c.bf16 %v127, %v126
  %v142 = vpack.c.bf16 %v129, %v128
  %v143 = vpack.c.bf16 %v131, %v130
  %v144 = vpack.c.bf16 %v133, %v132
  %v145 = vpack.c.bf16 %v135, %v134
  %v146 = vpack.c.bf16 %v137, %v136
  %v147 = vpack.c.bf16 %v139, %v138
  %v156 = vunpack.c.l.b16 %v140
  %v157 = vunpack.c.h.b16 %v140
  %v158 = vunpack.c.l.b16 %v141
  %v159 = vunpack.c.h.b16 %v141
  %v160 = vunpack.c.l.b16 %v142
  %v161 = vunpack.c.h.b16 %v142
  %v162 = vunpack.c.l.b16 %v143
  %v163 = vunpack.c.h.b16 %v143
  %v164 = vunpack.c.l.b16 %v144
  %v165 = vunpack.c.h.b16 %v144
  %v166 = vunpack.c.l.b16 %v145
  %v167 = vunpack.c.h.b16 %v145
  %v168 = vunpack.c.l.b16 %v146
  %v169 = vunpack.c.h.b16 %v146
  %v170 = vunpack.c.l.b16 %v147
  %v171 = vunpack.c.h.b16 %v147
  %v172 = vpack.c.b16 %v156, %v156
  %v173 = vpack.c.b16 %v157, %v157
  %v174 = vpack.c.b16 %v158, %v158
  %v175 = vpack.c.b16 %v159, %v159
  %v176 = vpack.c.b16 %v160, %v160
  %v177 = vpack.c.b16 %v161, %v161
  %v178 = vpack.c.b16 %v162, %v162
  %v179 = vpack.c.b16 %v163, %v163
  %v180 = vpack.c.b16 %v164, %v164
  %v181 = vpack.c.b16 %v165, %v165
  %v182 = vpack.c.b16 %v166, %v166
  %v183 = vpack.c.b16 %v167, %v167
  %v184 = vpack.c.b16 %v168, %v168
  %v185 = vpack.c.b16 %v169, %v169
  %v186 = vpack.c.b16 %v170, %v170
  %v187 = vpack.c.b16 %v171, %v171
  %204 = vst [vmem:[%s3] sm:$0xf] %v172
  %205 = vst [vmem:[%s3 + $0x4] sm:$0xf] %v173
  %206 = vst [vmem:[%s3 + $0x8] sm:$0xf] %v174
  %207 = vst [vmem:[%s3 + $0xc] sm:$0xf] %v175
  %208 = vst [vmem:[%s3 + $0x10] sm:$0xf] %v176
  %209 = vst [vmem:[%s3 + $0x14] sm:$0xf] %v177
  %210 = vst [vmem:[%s3 + $0x18] sm:$0xf] %v178
  %211 = vst [vmem:[%s3 + $0x1c] sm:$0xf] %v179
  %212 = vst [vmem:[%s3 + $0x20] sm:$0xf] %v180
  %213 = vst [vmem:[%s3 + $0x24] sm:$0xf] %v181
  %214 = vst [vmem:[%s3 + $0x28] sm:$0xf] %v182
  %215 = vst [vmem:[%s3 + $0x2c] sm:$0xf] %v183
  %216 = vst [vmem:[%s3 + $0x30] sm:$0xf] %v184
  %217 = vst [vmem:[%s3 + $0x34] sm:$0xf] %v185
  %218 = vst [vmem:[%s3 + $0x38] sm:$0xf] %v186
  %219 = vst [vmem:[%s3 + $0x3c] sm:$0xf] %v187
  // Predicated region
  $region14: #{netg_forward.14} parent=0 // pred_check
    _
  $region15: #{netg_forward.14} parent=0 // pred_check_branch
    %221 = sbr.rel (0) target = $region17
  $region16: #{netg_forward.14} parent=0 // pred_region
    _
  $region17: #{netg_forward.14} parent=0 // pred_fallthru
    _
  // Predicated region
  $region18: #{netg_forward.14} parent=0 // pred_check
    _
  $region19: #{netg_forward.14} parent=0 // pred_check_branch
    %223 = sbr.rel (0) target = $region21
  $region20: #{netg_forward.14} parent=0 // pred_region
    _
  $region21: #{netg_forward.14} parent=0 // pred_fallthru
    _

// kernel: netg_forward.13
$region0: #{netg_forward.13}
  #allocation0 [shape = 'u32[]', space=smem, size = 0x4, offset = 0x4, fixed_abs, tag = 'smem constant byte address 0x4 - core index']
  #allocation1 [shape = 'u32[144,128]{1,0:T(1,128)}', space=vmem, size = 0x12000, scoped, tag = 'internal scratch']
  %s0 = inlined_call_operand.vmem [shape: bf16[128,128], index: 0, kind: input, shape index: {}]
  %s1 = inlined_call_operand.vmem [shape: bf16[128,128], index: 1, kind: input, shape index: {}]
  %s2 = inlined_call_operand.vmem [shape: bf16[128,128], index: 2, kind: output, shape index: {0}]
  %s3 = inlined_call_operand.vmem [shape: f32[8,128], index: 3, kind: output, shape index: {1}]
  %s4 = inlined_call_operand.vmem [shape: f32[8,128], index: 4, kind: output, shape index: {2}]
  %5 = xla_tuple %s2, %s3, %s4
  %s6 = sld [smem:[#allocation0]]
  $region38: #{netg_forward.13} parent=0
    _
  %s8 = ssub.s32 1, %s6
  %s9 = scalar_select 0, %s8, %s6
  // Predicated region
  $region2: #{netg_forward.13} parent=0 // pred_check
    _
  $region3: #{netg_forward.13} parent=0 // pred_check_branch
    %11 = sbr.rel (0) target = $region5
  $region4: #{netg_forward.13} parent=0 // pred_region
    _
  $region5: #{netg_forward.13} parent=0 // pred_fallthru
    _
  // Predicated region
  $region6: #{netg_forward.13} parent=0 // pred_check
    _
  $region7: #{netg_forward.13} parent=0 // pred_check_branch
    %13 = sbr.rel (0) target = $region9
  $region8: #{netg_forward.13} parent=0 // pred_region
    _
  $region9: #{netg_forward.13} parent=0 // pred_fallthru
    _
  %v15 = vld [vmem:[%s0] sm:$0xf]
  %v16 = vld [vmem:[%s0 + $0x4] sm:$0xf]
  %v17 = vld [vmem:[%s0 + $0x8] sm:$0xf]
  %v18 = vld [vmem:[%s0 + $0xc] sm:$0xf]
  %v19 = vld [vmem:[%s0 + $0x10] sm:$0xf]
  %v20 = vld [vmem:[%s0 + $0x14] sm:$0xf]
  %v21 = vld [vmem:[%s0 + $0x18] sm:$0xf]
  %v22 = vld [vmem:[%s0 + $0x1c] sm:$0xf]
  %v23 = vld [vmem:[%s0 + $0x20] sm:$0xf]
  %v24 = vld [vmem:[%s0 + $0x24] sm:$0xf]
  %v25 = vld [vmem:[%s0 + $0x28] sm:$0xf]
  %v26 = vld [vmem:[%s0 + $0x2c] sm:$0xf]
  %v27 = vld [vmem:[%s0 + $0x30] sm:$0xf]
  %v28 = vld [vmem:[%s0 + $0x34] sm:$0xf]
  %v29 = vld [vmem:[%s0 + $0x38] sm:$0xf]
  %v30 = vld [vmem:[%s0 + $0x3c] sm:$0xf]
  %v31 = vld [vmem:[%s1] sm:$0xf]
  %v32 = vld [vmem:[%s1 + $0x4] sm:$0xf]
  %v33 = vld [vmem:[%s1 + $0x8] sm:$0xf]
  %v34 = vld [vmem:[%s1 + $0xc] sm:$0xf]
  %v35 = vld [vmem:[%s1 + $0x10] sm:$0xf]
  %v36 = vld [vmem:[%s1 + $0x14] sm:$0xf]
  %v37 = vld [vmem:[%s1 + $0x18] sm:$0xf]
  %v38 = vld [vmem:[%s1 + $0x1c] sm:$0xf]
  %v39 = vld [vmem:[%s1 + $0x20] sm:$0xf]
  %v40 = vld [vmem:[%s1 + $0x24] sm:$0xf]
  %v41 = vld [vmem:[%s1 + $0x28] sm:$0xf]
  %v42 = vld [vmem:[%s1 + $0x2c] sm:$0xf]
  %v43 = vld [vmem:[%s1 + $0x30] sm:$0xf]
  %v44 = vld [vmem:[%s1 + $0x34] sm:$0xf]
  %v45 = vld [vmem:[%s1 + $0x38] sm:$0xf]
  %v46 = vld [vmem:[%s1 + $0x3c] sm:$0xf]
  %v63 = vunpack.c.l.b16 %v15
  %v64 = vunpack.c.l.b16 %v16
  %v65 = vunpack.c.l.b16 %v17
  %v66 = vunpack.c.l.b16 %v18
  %v67 = vunpack.c.l.b16 %v19
  %v68 = vunpack.c.l.b16 %v20
  %v69 = vunpack.c.l.b16 %v21
  %v70 = vunpack.c.l.b16 %v22
  %v71 = vunpack.c.l.b16 %v23
  %v72 = vunpack.c.l.b16 %v24
  %v73 = vunpack.c.l.b16 %v25
  %v74 = vunpack.c.l.b16 %v26
  %v75 = vunpack.c.l.b16 %v27
  %v76 = vunpack.c.l.b16 %v28
  %v77 = vunpack.c.l.b16 %v29
  %v78 = vunpack.c.l.b16 %v30
  %v79 = vpack.c.b16 %v64, %v63
  %v80 = vpack.c.b16 %v66, %v65
  %v81 = vpack.c.b16 %v68, %v67
  %v82 = vpack.c.b16 %v70, %v69
  %v83 = vpack.c.b16 %v72, %v71
  %v84 = vpack.c.b16 %v74, %v73
  %v85 = vpack.c.b16 %v76, %v75
  %v86 = vpack.c.b16 %v78, %v77
  %v111 = vunpack.c.l.b16 %v31
  %v112 = vunpack.c.l.b16 %v32
  %v113 = vunpack.c.l.b16 %v33
  %v114 = vunpack.c.l.b16 %v34
  %v115 = vunpack.c.l.b16 %v35
  %v116 = vunpack.c.l.b16 %v36
  %v117 = vunpack.c.l.b16 %v37
  %v118 = vunpack.c.l.b16 %v38
  %v119 = vunpack.c.l.b16 %v39
  %v120 = vunpack.c.l.b16 %v40
  %v121 = vunpack.c.l.b16 %v41
  %v122 = vunpack.c.l.b16 %v42
  %v123 = vunpack.c.l.b16 %v43
  %v124 = vunpack.c.l.b16 %v44
  %v125 = vunpack.c.l.b16 %v45
  %v126 = vunpack.c.l.b16 %v46
  %v127 = vpack.c.b16 %v112, %v111
  %v128 = vpack.c.b16 %v114, %v113
  %v129 = vpack.c.b16 %v116, %v115
  %v130 = vpack.c.b16 %v118, %v117
  %v131 = vpack.c.b16 %v120, %v119
  %v132 = vpack.c.b16 %v122, %v121
  %v133 = vpack.c.b16 %v124, %v123
  %v134 = vpack.c.b16 %v126, %v125
  %143 = vmatprep.subr.bf16.mxu0 0
  %144 = vmatpush1.bf16.msra.mxu0 %v134
  %145 = vmatprep.subr.bf16.mxu0 0
  %146 = vmatpush1.bf16.msra.mxu0 %v133
  %147 = vmatprep.subr.bf16.mxu0 0
  %148 = vmatpush1.bf16.msra.mxu0 %v132
  %149 = vmatprep.subr.bf16.mxu0 0
  %150 = vmatpush1.bf16.msra.mxu0 %v131
  %151 = vmatprep.subr.bf16.mxu0 0
  %152 = vmatpush1.bf16.msra.mxu0 %v130
  %153 = vmatprep.subr.bf16.mxu0 0
  %154 = vmatpush1.bf16.msra.mxu0 %v129
  %155 = vmatprep.subr.bf16.mxu0 0
  %156 = vmatpush1.bf16.msra.mxu0 %v128
  %157 = vmatprep.subr.bf16.mxu0 0
  %158 = vmatpush1.bf16.msra.mxu0 %v127
  %159 = vmatprep.subr.bf16.mxu0 0
  %160 = vmatpush2.bf16.msra.mxu0 0
  %161 = vmatprep.subr.bf16.mxu0 0
  %162 = vmatpush2.bf16.msra.mxu0 0
  %163 = vmatprep.subr.bf16.mxu0 0
  %164 = vmatpush2.bf16.msra.mxu0 0
  %165 = vmatprep.subr.bf16.mxu0 0
  %166 = vmatpush2.bf16.msra.mxu0 0
  %167 = vmatprep.subr.bf16.mxu0 0
  %168 = vmatpush2.bf16.msra.mxu0 0
  %169 = vmatprep.subr.bf16.mxu0 0
  %170 = vmatpush2.bf16.msra.mxu0 0
  %171 = vmatprep.subr.bf16.mxu0 0
  %172 = vmatpush2.bf16.msra.mxu0 0
  %173 = vmatprep.subr.bf16.mxu0 0
  %174 = vmatpush2.bf16.msra.mxu0 0
  %175 = vmatprep.mubr.bf16.mxu0 0
  %176 = vmatmul.mubr.bf16.gmra.mxu0 %v79
  %v177 = vpop.f32.mrf.mxu0
  %v178 = vadd.f32 0.0, %v177
  %v179 = vpop.f32.mrf.mxu0
  %v180 = vpop.f32.mrf.mxu0
  %v181 = vadd.f32 0.0, %v180
  %v182 = vpop.f32.mrf.mxu0
  %183 = vmatprep.mubr.bf16.mxu0 0
  %184 = vmatmul.mubr.bf16.gmra.mxu0 %v80
  %v185 = vpop.f32.mrf.mxu0
  %v186 = vadd.f32 0.0, %v185
  %v187 = vpop.f32.mrf.mxu0
  %v188 = vpop.f32.mrf.mxu0
  %v189 = vadd.f32 0.0, %v188
  %v190 = vpop.f32.mrf.mxu0
  %191 = vmatprep.mubr.bf16.mxu0 0
  %192 = vmatmul.mubr.bf16.gmra.mxu0 %v81
  %v193 = vpop.f32.mrf.mxu0
  %v194 = vadd.f32 0.0, %v193
  %v195 = vpop.f32.mrf.mxu0
  %v196 = vpop.f32.mrf.mxu0
  %v197 = vadd.f32 0.0, %v196
  %v198 = vpop.f32.mrf.mxu0
  %199 = vmatprep.mubr.bf16.mxu0 0
  %200 = vmatmul.mubr.bf16.gmra.mxu0 %v82
  %v201 = vpop.f32.mrf.mxu0
  %v202 = vadd.f32 0.0, %v201
  %v203 = vpop.f32.mrf.mxu0
  %v204 = vpop.f32.mrf.mxu0
  %v205 = vadd.f32 0.0, %v204
  %v206 = vpop.f32.mrf.mxu0
  %207 = vmatprep.mubr.bf16.mxu0 0
  %208 = vmatmul.mubr.bf16.gmra.mxu0 %v83
  %v209 = vpop.f32.mrf.mxu0
  %v210 = vadd.f32 0.0, %v209
  %v211 = vpop.f32.mrf.mxu0
  %v212 = vpop.f32.mrf.mxu0
  %v213 = vadd.f32 0.0, %v212
  %v214 = vpop.f32.mrf.mxu0
  %215 = vmatprep.mubr.bf16.mxu0 0
  %216 = vmatmul.mubr.bf16.gmra.mxu0 %v84
  %v217 = vpop.f32.mrf.mxu0
  %v218 = vadd.f32 0.0, %v217
  %v219 = vpop.f32.mrf.mxu0
  %v220 = vpop.f32.mrf.mxu0
  %v221 = vadd.f32 0.0, %v220
  %v222 = vpop.f32.mrf.mxu0
  %223 = vmatprep.mubr.bf16.mxu0 0
  %224 = vmatmul.mubr.bf16.gmra.mxu0 %v85
  %v225 = vpop.f32.mrf.mxu0
  %v226 = vadd.f32 0.0, %v225
  %v227 = vpop.f32.mrf.mxu0
  %v228 = vpop.f32.mrf.mxu0
  %v229 = vadd.f32 0.0, %v228
  %v230 = vpop.f32.mrf.mxu0
  %231 = vmatprep.mubr.bf16.mxu0 0
  %232 = vmatmul.mubr.bf16.gmra.mxu0 %v86
  %v233 = vpop.f32.mrf.mxu0
  %v234 = vadd.f32 0.0, %v233
  %v235 = vpop.f32.mrf.mxu0
  %v236 = vpop.f32.mrf.mxu0
  %v237 = vadd.f32 0.0, %v236
  %v238 = vpop.f32.mrf.mxu0
  %239 = vdwg.mxu0
  %v240 = vpack.c.bf16 %v181, %v178
  %v241 = vpack.c.bf16 %v189, %v186
  %v242 = vpack.c.bf16 %v197, %v194
  %v243 = vpack.c.bf16 %v205, %v202
  %v244 = vpack.c.bf16 %v213, %v210
  %v245 = vpack.c.bf16 %v221, %v218
  %v246 = vpack.c.bf16 %v229, %v226
  %v247 = vpack.c.bf16 %v237, %v234
  %v256 = vunpack.c.l.b16 %v240
  %v257 = vunpack.c.h.b16 %v240
  %v258 = vunpack.c.l.b16 %v241
  %v259 = vunpack.c.h.b16 %v241
  %v260 = vunpack.c.l.b16 %v242
  %v261 = vunpack.c.h.b16 %v242
  %v262 = vunpack.c.l.b16 %v243
  %v263 = vunpack.c.h.b16 %v243
  %v264 = vunpack.c.l.b16 %v244
  %v265 = vunpack.c.h.b16 %v244
  %v266 = vunpack.c.l.b16 %v245
  %v267 = vunpack.c.h.b16 %v245
  %v268 = vunpack.c.l.b16 %v246
  %v269 = vunpack.c.h.b16 %v246
  %v270 = vunpack.c.l.b16 %v247
  %v271 = vunpack.c.h.b16 %v247
  %v272 = vpack.c.b16 %v256, %v256
  %v273 = vpack.c.b16 %v257, %v257
  %v274 = vpack.c.b16 %v258, %v258
  %v275 = vpack.c.b16 %v259, %v259
  %v276 = vpack.c.b16 %v260, %v260
  %v277 = vpack.c.b16 %v261, %v261
  %v278 = vpack.c.b16 %v262, %v262
  %v279 = vpack.c.b16 %v263, %v263
  %v280 = vpack.c.b16 %v264, %v264
  %v281 = vpack.c.b16 %v265, %v265
  %v282 = vpack.c.b16 %v266, %v266
  %v283 = vpack.c.b16 %v267, %v267
  %v284 = vpack.c.b16 %v268, %v268
  %v285 = vpack.c.b16 %v269, %v269
  %v286 = vpack.c.b16 %v270, %v270
  %v287 = vpack.c.b16 %v271, %v271
  %304 = vst [vmem:[%s2] sm:$0xf] %v272
  %305 = vst [vmem:[%s2 + $0x4] sm:$0xf] %v273
  %306 = vst [vmem:[%s2 + $0x8] sm:$0xf] %v274
  %307 = vst [vmem:[%s2 + $0xc] sm:$0xf] %v275
  %308 = vst [vmem:[%s2 + $0x10] sm:$0xf] %v276
  %309 = vst [vmem:[%s2 + $0x14] sm:$0xf] %v277
  %310 = vst [vmem:[%s2 + $0x18] sm:$0xf] %v278
  %311 = vst [vmem:[%s2 + $0x1c] sm:$0xf] %v279
  %312 = vst [vmem:[%s2 + $0x20] sm:$0xf] %v280
  %313 = vst [vmem:[%s2 + $0x24] sm:$0xf] %v281
  %314 = vst [vmem:[%s2 + $0x28] sm:$0xf] %v282
  %315 = vst [vmem:[%s2 + $0x2c] sm:$0xf] %v283
  %316 = vst [vmem:[%s2 + $0x30] sm:$0xf] %v284
  %317 = vst [vmem:[%s2 + $0x34] sm:$0xf] %v285
  %318 = vst [vmem:[%s2 + $0x38] sm:$0xf] %v286
  %319 = vst [vmem:[%s2 + $0x3c] sm:$0xf] %v287
  %p320 = scmp.eq.s32.totalorder 0, 0
  // Predicated region
  $region10: #{netg_forward.13} parent=0 // pred_check
    %p321 = pneg %p320
  $region11: #{netg_forward.13} parent=0 // pred_check_branch
    %323 = sbr.rel (%p321) target = $region13
  $region12: #{netg_forward.13} parent=0 // pred_region
    %324 = vst [vmem:[%s3] sm:$0xff] 0.0
    %325 = vst [vmem:[%s4] sm:$0xff] 0.0
  $region13: #{netg_forward.13} parent=0 // pred_fallthru
    _
  %v326 = vld [vmem:[%s3] sm:$0xff]
  %v327 = vadd.f32 %v178, %v181
  %v328 = vadd.f32 %v327, %v186
  %v329 = vadd.f32 %v328, %v189
  %v330 = vadd.f32 %v329, %v194
  %v331 = vadd.f32 %v330, %v197
  %v332 = vadd.f32 %v331, %v202
  %v333 = vadd.f32 %v332, %v205
  %v334 = vadd.f32 %v333, %v210
  %v335 = vadd.f32 %v334, %v213
  %v336 = vadd.f32 %v335, %v218
  %v337 = vadd.f32 %v336, %v221
  %v338 = vadd.f32 %v337, %v226
  %v339 = vadd.f32 %v338, %v229
  %v340 = vadd.f32 %v339, %v234
  %v341 = vadd.f32 %v340, %v237
  %v342 = vrot.slane %v341, 4
  %v343 = vadd.f32 %v341, %v342
  %v344 = vrot.slane %v343, 2
  %v345 = vadd.f32 %v343, %v344
  %v346 = vrot.slane %v345, 1
  %v347 = vadd.f32 %v345, %v346
  %v348 = vadd.f32 %v326, %v347
  %349 = vst [vmem:[%s3] sm:$0xff] %v348
  %v350 = vld [vmem:[%s4] sm:$0xff]
  %v351 = vmul.f32 %v178, %v178
  %v352 = vmul.f32 %v181, %v181
  %v353 = vmul.f32 %v186, %v186
  %v354 = vmul.f32 %v189, %v189
  %v355 = vmul.f32 %v194, %v194
  %v356 = vmul.f32 %v197, %v197
  %v357 = vmul.f32 %v202, %v202
  %v358 = vmul.f32 %v205, %v205
  %v359 = vmul.f32 %v210, %v210
  %v360 = vmul.f32 %v213, %v213
  %v361 = vmul.f32 %v218, %v218
  %v362 = vmul.f32 %v221, %v221
  %v363 = vmul.f32 %v226, %v226
  %v364 = vmul.f32 %v229, %v229
  %v365 = vmul.f32 %v234, %v234
  %v366 = vmul.f32 %v237, %v237
  %v367 = vadd.f32 %v351, %v352
  %v368 = vadd.f32 %v367, %v353
  %v369 = vadd.f32 %v368, %v354
  %v370 = vadd.f32 %v369, %v355
  %v371 = vadd.f32 %v370, %v356
  %v372 = vadd.f32 %v371, %v357
  %v373 = vadd.f32 %v372, %v358
  %v374 = vadd.f32 %v373, %v359
  %v375 = vadd.f32 %v374, %v360
  %v376 = vadd.f32 %v375, %v361
  %v377 = vadd.f32 %v376, %v362
  %v378 = vadd.f32 %v377, %v363
  %v379 = vadd.f32 %v378, %v364
  %v380 = vadd.f32 %v379, %v365
  %v381 = vadd.f32 %v380, %v366
  %v382 = vrot.slane %v381, 4
  %v383 = vadd.f32 %v381, %v382
  %v384 = vrot.slane %v383, 2
  %v385 = vadd.f32 %v383, %v384
  %v386 = vrot.slane %v385, 1
  %v387 = vadd.f32 %v385, %v386
  %v388 = vadd.f32 %v350, %v387
  %389 = vst [vmem:[%s4] sm:$0xff] %v388
  // Predicated region
  $region14: #{netg_forward.13} parent=0 // pred_check
    _
  $region15: #{netg_forward.13} parent=0 // pred_check_branch
    %391 = sbr.rel (0) target = $region17
  $region16: #{netg_forward.13} parent=0 // pred_region
    _
  $region17: #{netg_forward.13} parent=0 // pred_fallthru
    _
  // Predicated region
  $region18: #{netg_forward.13} parent=0 // pred_check
    _
  $region19: #{netg_forward.13} parent=0 // pred_check_branch
    %393 = sbr.rel (0) target = $region21
  $region20: #{netg_forward.13} parent=0 // pred_region
    _
  $region21: #{netg_forward.13} parent=0 // pred_fallthru
    _
  // Predicated region
  $region22: #{netg_forward.13} parent=0 // pred_check
    _
  $region23: #{netg_forward.13} parent=0 // pred_check_branch
    %395 = sbr.rel (0) target = $region25
  $region24: #{netg_forward.13} parent=0 // pred_region
    _
  $region25: #{netg_forward.13} parent=0 // pred_fallthru
    _
  // Predicated region
  $region26: #{netg_forward.13} parent=0 // pred_check
    _
  $region27: #{netg_forward.13} parent=0 // pred_check_branch
    %397 = sbr.rel (0) target = $region29
  $region28: #{netg_forward.13} parent=0 // pred_region
    _
  $region29: #{netg_forward.13} parent=0 // pred_fallthru
    _
  // Predicated region
  $region30: #{netg_forward.13} parent=0 // pred_check
    _
  $region31: #{netg_forward.13} parent=0 // pred_check_branch
    %399 = sbr.rel (0) target = $region33
  $region32: #{netg_forward.13} parent=0 // pred_region
    _
  $region33: #{netg_forward.13} parent=0 // pred_fallthru
    _
  // Predicated region
  $region34: #{netg_forward.13} parent=0 // pred_check
    _
  $region35: #{netg_forward.13} parent=0 // pred_check_branch
    %401 = sbr.rel (0) target = $region37
  $region36: #{netg_forward.13} parent=0 // pred_region
    _
  $region37: #{netg_forward.13} parent=0 // pred_fallthru
    _

// kernel: netg_forward.16
$region0: #{netg_forward.16}
  #allocation0 [shape = 'u32[]', space=smem, size = 0x4, offset = 0x4, fixed_abs, tag = 'smem constant byte address 0x4 - core index']
  #allocation1 [shape = 'u32[144,128]{1,0:T(1,128)}', space=vmem, size = 0x12000, scoped, tag = 'internal scratch']
  #allocation2 [shape = 'f32[128,256]{1,0:T(8,128)}', space=vmem, size = 0x20000, scoped, tag = 'scratch operand']
  %s0 = inlined_call_operand.vmem [shape: bf16[128,128], index: 0, kind: input, shape index: {}]
  %s1 = inlined_call_operand.vmem [shape: bf16[128,256], index: 1, kind: input, shape index: {}]
  %s2 = inlined_call_operand.vmem [shape: f32[1,256], index: 2, kind: input, shape index: {}]
  %s3 = inlined_call_operand.vmem [shape: f32[1,256], index: 3, kind: input, shape index: {}]
  %s4 = inlined_call_operand.vmem [shape: bf16[128,256], index: 4, kind: output, shape index: {}]
  %s5 = sld [smem:[#allocation0]]
  $region34: #{netg_forward.16} parent=0
    _
  %s7 = ssub.s32 1, %s5
  %s8 = scalar_select 0, %s7, %s5
  // Predicated region
  $region2: #{netg_forward.16} parent=0 // pred_check
    _
  $region3: #{netg_forward.16} parent=0 // pred_check_branch
    %10 = sbr.rel (0) target = $region5
  $region4: #{netg_forward.16} parent=0 // pred_region
    _
  $region5: #{netg_forward.16} parent=0 // pred_fallthru
    _
  // Predicated region
  $region6: #{netg_forward.16} parent=0 // pred_check
    _
  $region7: #{netg_forward.16} parent=0 // pred_check_branch
    %12 = sbr.rel (0) target = $region9
  $region8: #{netg_forward.16} parent=0 // pred_region
    _
  $region9: #{netg_forward.16} parent=0 // pred_fallthru
    _
  // Predicated region
  $region10: #{netg_forward.16} parent=0 // pred_check
    _
  $region11: #{netg_forward.16} parent=0 // pred_check_branch
    %14 = sbr.rel (0) target = $region13
  $region12: #{netg_forward.16} parent=0 // pred_region
    _
  $region13: #{netg_forward.16} parent=0 // pred_fallthru
    _
  // Predicated region
  $region14: #{netg_forward.16} parent=0 // pred_check
    _
  $region15: #{netg_forward.16} parent=0 // pred_check_branch
    %16 = sbr.rel (0) target = $region17
  $region16: #{netg_forward.16} parent=0 // pred_region
    _
  $region17: #{netg_forward.16} parent=0 // pred_fallthru
    _
  %p18 = scmp.eq.s32.totalorder 0, 0
  // Predicated region
  $region18: #{netg_forward.16} parent=0 // pred_check
    %p19 = pneg %p18
  $region19: #{netg_forward.16} parent=0 // pred_check_branch
    %21 = sbr.rel (%p19) target = $region21
  $region20: #{netg_forward.16} parent=0 // pred_region
    %22 = vst [vmem:[#allocation2] sm:$0xff] 0.0
    %23 = vst [vmem:[#allocation2 + $0x8] sm:$0xff] 0.0
    %24 = vst [vmem:[#allocation2 + $0x10] sm:$0xff] 0.0
    %25 = vst [vmem:[#allocation2 + $0x18] sm:$0xff] 0.0
    %26 = vst [vmem:[#allocation2 + $0x20] sm:$0xff] 0.0
    %27 = vst [vmem:[#allocation2 + $0x28] sm:$0xff] 0.0
    %28 = vst [vmem:[#allocation2 + $0x30] sm:$0xff] 0.0
    %29 = vst [vmem:[#allocation2 + $0x38] sm:$0xff] 0.0
    %30 = vst [vmem:[#allocation2 + $0x40] sm:$0xff] 0.0
    %31 = vst [vmem:[#allocation2 + $0x48] sm:$0xff] 0.0
    %32 = vst [vmem:[#allocation2 + $0x50] sm:$0xff] 0.0
    %33 = vst [vmem:[#allocation2 + $0x58] sm:$0xff] 0.0
    %34 = vst [vmem:[#allocation2 + $0x60] sm:$0xff] 0.0
    %35 = vst [vmem:[#allocation2 + $0x68] sm:$0xff] 0.0
    %36 = vst [vmem:[#allocation2 + $0x70] sm:$0xff] 0.0
    %37 = vst [vmem:[#allocation2 + $0x78] sm:$0xff] 0.0
    %38 = vst [vmem:[#allocation2 + $0x80] sm:$0xff] 0.0
    %39 = vst [vmem:[#allocation2 + $0x88] sm:$0xff] 0.0
    %40 = vst [vmem:[#allocation2 + $0x90] sm:$0xff] 0.0
    %41 = vst [vmem:[#allocation2 + $0x98] sm:$0xff] 0.0
    %42 = vst [vmem:[#allocation2 + $0xa0] sm:$0xff] 0.0
    %43 = vst [vmem:[#allocation2 + $0xa8] sm:$0xff] 0.0
    %44 = vst [vmem:[#allocation2 + $0xb0] sm:$0xff] 0.0
    %45 = vst [vmem:[#allocation2 + $0xb8] sm:$0xff] 0.0
    %46 = vst [vmem:[#allocation2 + $0xc0] sm:$0xff] 0.0
    %47 = vst [vmem:[#allocation2 + $0xc8] sm:$0xff] 0.0
    %48 = vst [vmem:[#allocation2 + $0xd0] sm:$0xff] 0.0
    %49 = vst [vmem:[#allocation2 + $0xd8] sm:$0xff] 0.0
    %50 = vst [vmem:[#allocation2 + $0xe0] sm:$0xff] 0.0
    %51 = vst [vmem:[#allocation2 + $0xe8] sm:$0xff] 0.0
    %52 = vst [vmem:[#allocation2 + $0xf0] sm:$0xff] 0.0
    %53 = vst [vmem:[#allocation2 + $0xf8] sm:$0xff] 0.0
  $region21: #{netg_forward.16} parent=0 // pred_fallthru
    _
  %v54 = vld [vmem:[#allocation2] sm:$0xff]
  %v55 = vld [vmem:[#allocation2 + $0x8] sm:$0xff]
  %v56 = vld [vmem:[#allocation2 + $0x10] sm:$0xff]
  %v57 = vld [vmem:[#allocation2 + $0x18] sm:$0xff]
  %v58 = vld [vmem:[#allocation2 + $0x20] sm:$0xff]
  %v59 = vld [vmem:[#allocation2 + $0x28] sm:$0xff]
  %v60 = vld [vmem:[#allocation2 + $0x30] sm:$0xff]
  %v61 = vld [vmem:[#allocation2 + $0x38] sm:$0xff]
  %v62 = vld [vmem:[#allocation2 + $0x40] sm:$0xff]
  %v63 = vld [vmem:[#allocation2 + $0x48] sm:$0xff]
  %v64 = vld [vmem:[#allocation2 + $0x50] sm:$0xff]
  %v65 = vld [vmem:[#allocation2 + $0x58] sm:$0xff]
  %v66 = vld [vmem:[#allocation2 + $0x60] sm:$0xff]
  %v67 = vld [vmem:[#allocation2 + $0x68] sm:$0xff]
  %v68 = vld [vmem:[#allocation2 + $0x70] sm:$0xff]
  %v69 = vld [vmem:[#allocation2 + $0x78] sm:$0xff]
  %v70 = vld [vmem:[#allocation2 + $0x80] sm:$0xff]
  %v71 = vld [vmem:[#allocation2 + $0x88] sm:$0xff]
  %v72 = vld [vmem:[#allocation2 + $0x90] sm:$0xff]
  %v73 = vld [vmem:[#allocation2 + $0x98] sm:$0xff]
  %v74 = vld [vmem:[#allocation2 + $0xa0] sm:$0xff]
  %v75 = vld [vmem:[#allocation2 + $0xa8] sm:$0xff]
  %v76 = vld [vmem:[#allocation2 + $0xb0] sm:$0xff]
  %v77 = vld [vmem:[#allocation2 + $0xb8] sm:$0xff]
  %v78 = vld [vmem:[#allocation2 + $0xc0] sm:$0xff]
  %v79 = vld [vmem:[#allocation2 + $0xc8] sm:$0xff]
  %v80 = vld [vmem:[#allocation2 + $0xd0] sm:$0xff]
  %v81 = vld [vmem:[#allocation2 + $0xd8] sm:$0xff]
  %v82 = vld [vmem:[#allocation2 + $0xe0] sm:$0xff]
  %v83 = vld [vmem:[#allocation2 + $0xe8] sm:$0xff]
  %v84 = vld [vmem:[#allocation2 + $0xf0] sm:$0xff]
  %v85 = vld [vmem:[#allocation2 + $0xf8] sm:$0xff]
  %v86 = vld [vmem:[%s0] sm:$0xf]
  %v87 = vld [vmem:[%s0 + $0x4] sm:$0xf]
  %v88 = vld [vmem:[%s0 + $0x8] sm:$0xf]
  %v89 = vld [vmem:[%s0 + $0xc] sm:$0xf]
  %v90 = vld [vmem:[%s0 + $0x10] sm:$0xf]
  %v91 = vld [vmem:[%s0 + $0x14] sm:$0xf]
  %v92 = vld [vmem:[%s0 + $0x18] sm:$0xf]
  %v93 = vld [vmem:[%s0 + $0x1c] sm:$0xf]
  %v94 = vld [vmem:[%s0 + $0x20] sm:$0xf]
  %v95 = vld [vmem:[%s0 + $0x24] sm:$0xf]
  %v96 = vld [vmem:[%s0 + $0x28] sm:$0xf]
  %v97 = vld [vmem:[%s0 + $0x2c] sm:$0xf]
  %v98 = vld [vmem:[%s0 + $0x30] sm:$0xf]
  %v99 = vld [vmem:[%s0 + $0x34] sm:$0xf]
  %v100 = vld [vmem:[%s0 + $0x38] sm:$0xf]
  %v101 = vld [vmem:[%s0 + $0x3c] sm:$0xf]
  %v102 = vld [vmem:[%s1] sm:$0xff]
  %v103 = vld [vmem:[%s1 + $0x8] sm:$0xff]
  %v104 = vld [vmem:[%s1 + $0x10] sm:$0xff]
  %v105 = vld [vmem:[%s1 + $0x18] sm:$0xff]
  %v106 = vld [vmem:[%s1 + $0x20] sm:$0xff]
  %v107 = vld [vmem:[%s1 + $0x28] sm:$0xff]
  %v108 = vld [vmem:[%s1 + $0x30] sm:$0xff]
  %v109 = vld [vmem:[%s1 + $0x38] sm:$0xff]
  %v110 = vld [vmem:[%s1 + $0x40] sm:$0xff]
  %v111 = vld [vmem:[%s1 + $0x48] sm:$0xff]
  %v112 = vld [vmem:[%s1 + $0x50] sm:$0xff]
  %v113 = vld [vmem:[%s1 + $0x58] sm:$0xff]
  %v114 = vld [vmem:[%s1 + $0x60] sm:$0xff]
  %v115 = vld [vmem:[%s1 + $0x68] sm:$0xff]
  %v116 = vld [vmem:[%s1 + $0x70] sm:$0xff]
  %v117 = vld [vmem:[%s1 + $0x78] sm:$0xff]
  %v134 = vunpack.c.l.b16 %v86
  %v135 = vunpack.c.l.b16 %v87
  %v136 = vunpack.c.l.b16 %v88
  %v137 = vunpack.c.l.b16 %v89
  %v138 = vunpack.c.l.b16 %v90
  %v139 = vunpack.c.l.b16 %v91
  %v140 = vunpack.c.l.b16 %v92
  %v141 = vunpack.c.l.b16 %v93
  %v142 = vunpack.c.l.b16 %v94
  %v143 = vunpack.c.l.b16 %v95
  %v144 = vunpack.c.l.b16 %v96
  %v145 = vunpack.c.l.b16 %v97
  %v146 = vunpack.c.l.b16 %v98
  %v147 = vunpack.c.l.b16 %v99
  %v148 = vunpack.c.l.b16 %v100
  %v149 = vunpack.c.l.b16 %v101
  %v150 = vpack.c.b16 %v135, %v134
  %v151 = vpack.c.b16 %v137, %v136
  %v152 = vpack.c.b16 %v139, %v138
  %v153 = vpack.c.b16 %v141, %v140
  %v154 = vpack.c.b16 %v143, %v142
  %v155 = vpack.c.b16 %v145, %v144
  %v156 = vpack.c.b16 %v147, %v146
  %v157 = vpack.c.b16 %v149, %v148
  %v182 = vunpack.c.l.b16 %v102
  %v183 = vunpack.c.h.b16 %v102
  %v184 = vunpack.c.l.b16 %v103
  %v185 = vunpack.c.h.b16 %v103
  %v186 = vunpack.c.l.b16 %v104
  %v187 = vunpack.c.h.b16 %v104
  %v188 = vunpack.c.l.b16 %v105
  %v189 = vunpack.c.h.b16 %v105
  %v190 = vunpack.c.l.b16 %v106
  %v191 = vunpack.c.h.b16 %v106
  %v192 = vunpack.c.l.b16 %v107
  %v193 = vunpack.c.h.b16 %v107
  %v194 = vunpack.c.l.b16 %v108
  %v195 = vunpack.c.h.b16 %v108
  %v196 = vunpack.c.l.b16 %v109
  %v197 = vunpack.c.h.b16 %v109
  %v198 = vunpack.c.l.b16 %v110
  %v199 = vunpack.c.h.b16 %v110
  %v200 = vunpack.c.l.b16 %v111
  %v201 = vunpack.c.h.b16 %v111
  %v202 = vunpack.c.l.b16 %v112
  %v203 = vunpack.c.h.b16 %v112
  %v204 = vunpack.c.l.b16 %v113
  %v205 = vunpack.c.h.b16 %v113
  %v206 = vunpack.c.l.b16 %v114
  %v207 = vunpack.c.h.b16 %v114
  %v208 = vunpack.c.l.b16 %v115
  %v209 = vunpack.c.h.b16 %v115
  %v210 = vunpack.c.l.b16 %v116
  %v211 = vunpack.c.h.b16 %v116
  %v212 = vunpack.c.l.b16 %v117
  %v213 = vunpack.c.h.b16 %v117
  %v214 = vpack.c.b16 %v184, %v182
  %v215 = vpack.c.b16 %v185, %v183
  %v216 = vpack.c.b16 %v188, %v186
  %v217 = vpack.c.b16 %v189, %v187
  %v218 = vpack.c.b16 %v192, %v190
  %v219 = vpack.c.b16 %v193, %v191
  %v220 = vpack.c.b16 %v196, %v194
  %v221 = vpack.c.b16 %v197, %v195
  %v222 = vpack.c.b16 %v200, %v198
  %v223 = vpack.c.b16 %v201, %v199
  %v224 = vpack.c.b16 %v204, %v202
  %v225 = vpack.c.b16 %v205, %v203
  %v226 = vpack.c.b16 %v208, %v206
  %v227 = vpack.c.b16 %v209, %v207
  %v228 = vpack.c.b16 %v212, %v210
  %v229 = vpack.c.b16 %v213, %v211
  %246 = vmatprep.subr.bf16.mxu0 %v229
  %247 = vmatpush1.bf16.msra.mxu0 %v228
  %248 = vmatprep.subr.bf16.mxu0 %v227
  %249 = vmatpush1.bf16.msra.mxu0 %v226
  %250 = vmatprep.subr.bf16.mxu0 %v225
  %251 = vmatpush1.bf16.msra.mxu0 %v224
  %252 = vmatprep.subr.bf16.mxu0 %v223
  %253 = vmatpush1.bf16.msra.mxu0 %v222
  %254 = vmatprep.subr.bf16.mxu0 %v221
  %255 = vmatpush1.bf16.msra.mxu0 %v220
  %256 = vmatprep.subr.bf16.mxu0 %v219
  %257 = vmatpush1.bf16.msra.mxu0 %v218
  %258 = vmatprep.subr.bf16.mxu0 %v217
  %259 = vmatpush1.bf16.msra.mxu0 %v216
  %260 = vmatprep.subr.bf16.mxu0 %v215
  %261 = vmatpush1.bf16.msra.mxu0 %v214
  %262 = vmatprep.subr.bf16.mxu0 0
  %263 = vmatpush2.bf16.msra.mxu0 0
  %264 = vmatprep.subr.bf16.mxu0 0
  %265 = vmatpush2.bf16.msra.mxu0 0
  %266 = vmatprep.subr.bf16.mxu0 0
  %267 = vmatpush2.bf16.msra.mxu0 0
  %268 = vmatprep.subr.bf16.mxu0 0
  %269 = vmatpush2.bf16.msra.mxu0 0
  %270 = vmatprep.subr.bf16.mxu0 0
  %271 = vmatpush2.bf16.msra.mxu0 0
  %272 = vmatprep.subr.bf16.mxu0 0
  %273 = vmatpush2.bf16.msra.mxu0 0
  %274 = vmatprep.subr.bf16.mxu0 0
  %275 = vmatpush2.bf16.msra.mxu0 0
  %276 = vmatprep.subr.bf16.mxu0 0
  %277 = vmatpush2.bf16.msra.mxu0 0
  %278 = vmatprep.mubr.bf16.mxu0 0
  %279 = vmatmul.mubr.bf16.gmra.mxu0 %v150
  %v280 = vpop.f32.mrf.mxu0
  %v281 = vadd.f32 0.0, %v280
  %v282 = vpop.f32.mrf.mxu0
  %v283 = vadd.f32 0.0, %v282
  %v284 = vpop.f32.mrf.mxu0
  %v285 = vadd.f32 0.0, %v284
  %v286 = vpop.f32.mrf.mxu0
  %v287 = vadd.f32 0.0, %v286
  %288 = vmatprep.mubr.bf16.mxu0 0
  %289 = vmatmul.mubr.bf16.gmra.mxu0 %v151
  %v290 = vpop.f32.mrf.mxu0
  %v291 = vadd.f32 0.0, %v290
  %v292 = vpop.f32.mrf.mxu0
  %v293 = vadd.f32 0.0, %v292
  %v294 = vpop.f32.mrf.mxu0
  %v295 = vadd.f32 0.0, %v294
  %v296 = vpop.f32.mrf.mxu0
  %v297 = vadd.f32 0.0, %v296
  %298 = vmatprep.mubr.bf16.mxu0 0
  %299 = vmatmul.mubr.bf16.gmra.mxu0 %v152
  %v300 = vpop.f32.mrf.mxu0
  %v301 = vadd.f32 0.0, %v300
  %v302 = vpop.f32.mrf.mxu0
  %v303 = vadd.f32 0.0, %v302
  %v304 = vpop.f32.mrf.mxu0
  %v305 = vadd.f32 0.0, %v304
  %v306 = vpop.f32.mrf.mxu0
  %v307 = vadd.f32 0.0, %v306
  %308 = vmatprep.mubr.bf16.mxu0 0
  %309 = vmatmul.mubr.bf16.gmra.mxu0 %v153
  %v310 = vpop.f32.mrf.mxu0
  %v311 = vadd.f32 0.0, %v310
  %v312 = vpop.f32.mrf.mxu0
  %v313 = vadd.f32 0.0, %v312
  %v314 = vpop.f32.mrf.mxu0
  %v315 = vadd.f32 0.0, %v314
  %v316 = vpop.f32.mrf.mxu0
  %v317 = vadd.f32 0.0, %v316
  %318 = vmatprep.mubr.bf16.mxu0 0
  %319 = vmatmul.mubr.bf16.gmra.mxu0 %v154
  %v320 = vpop.f32.mrf.mxu0
  %v321 = vadd.f32 0.0, %v320
  %v322 = vpop.f32.mrf.mxu0
  %v323 = vadd.f32 0.0, %v322
  %v324 = vpop.f32.mrf.mxu0
  %v325 = vadd.f32 0.0, %v324
  %v326 = vpop.f32.mrf.mxu0
  %v327 = vadd.f32 0.0, %v326
  %328 = vmatprep.mubr.bf16.mxu0 0
  %329 = vmatmul.mubr.bf16.gmra.mxu0 %v155
  %v330 = vpop.f32.mrf.mxu0
  %v331 = vadd.f32 0.0, %v330
  %v332 = vpop.f32.mrf.mxu0
  %v333 = vadd.f32 0.0, %v332
  %v334 = vpop.f32.mrf.mxu0
  %v335 = vadd.f32 0.0, %v334
  %v336 = vpop.f32.mrf.mxu0
  %v337 = vadd.f32 0.0, %v336
  %338 = vmatprep.mubr.bf16.mxu0 0
  %339 = vmatmul.mubr.bf16.gmra.mxu0 %v156
  %v340 = vpop.f32.mrf.mxu0
  %v341 = vadd.f32 0.0, %v340
  %v342 = vpop.f32.mrf.mxu0
  %v343 = vadd.f32 0.0, %v342
  %v344 = vpop.f32.mrf.mxu0
  %v345 = vadd.f32 0.0, %v344
  %v346 = vpop.f32.mrf.mxu0
  %v347 = vadd.f32 0.0, %v346
  %348 = vmatprep.mubr.bf16.mxu0 0
  %349 = vmatmul.mubr.bf16.gmra.mxu0 %v157
  %v350 = vpop.f32.mrf.mxu0
  %v351 = vadd.f32 0.0, %v350
  %v352 = vpop.f32.mrf.mxu0
  %v353 = vadd.f32 0.0, %v352
  %v354 = vpop.f32.mrf.mxu0
  %v355 = vadd.f32 0.0, %v354
  %v356 = vpop.f32.mrf.mxu0
  %v357 = vadd.f32 0.0, %v356
  %358 = vdwg.mxu0
  %v359 = vadd.f32 %v54, %v281
  %v360 = vadd.f32 %v55, %v283
  %v361 = vadd.f32 %v56, %v285
  %v362 = vadd.f32 %v57, %v287
  %v363 = vadd.f32 %v58, %v291
  %v364 = vadd.f32 %v59, %v293
  %v365 = vadd.f32 %v60, %v295
  %v366 = vadd.f32 %v61, %v297
  %v367 = vadd.f32 %v62, %v301
  %v368 = vadd.f32 %v63, %v303
  %v369 = vadd.f32 %v64, %v305
  %v370 = vadd.f32 %v65, %v307
  %v371 = vadd.f32 %v66, %v311
  %v372 = vadd.f32 %v67, %v313
  %v373 = vadd.f32 %v68, %v315
  %v374 = vadd.f32 %v69, %v317
  %v375 = vadd.f32 %v70, %v321
  %v376 = vadd.f32 %v71, %v323
  %v377 = vadd.f32 %v72, %v325
  %v378 = vadd.f32 %v73, %v327
  %v379 = vadd.f32 %v74, %v331
  %v380 = vadd.f32 %v75, %v333
  %v381 = vadd.f32 %v76, %v335
  %v382 = vadd.f32 %v77, %v337
  %v383 = vadd.f32 %v78, %v341
  %v384 = vadd.f32 %v79, %v343
  %v385 = vadd.f32 %v80, %v345
  %v386 = vadd.f32 %v81, %v347
  %v387 = vadd.f32 %v82, %v351
  %v388 = vadd.f32 %v83, %v353
  %v389 = vadd.f32 %v84, %v355
  %v390 = vadd.f32 %v85, %v357
  %391 = vst [vmem:[#allocation2] sm:$0xff] %v359
  %392 = vst [vmem:[#allocation2 + $0x8] sm:$0xff] %v360
  %393 = vst [vmem:[#allocation2 + $0x10] sm:$0xff] %v361
  %394 = vst [vmem:[#allocation2 + $0x18] sm:$0xff] %v362
  %395 = vst [vmem:[#allocation2 + $0x20] sm:$0xff] %v363
  %396 = vst [vmem:[#allocation2 + $0x28] sm:$0xff] %v364
  %397 = vst [vmem:[#allocation2 + $0x30] sm:$0xff] %v365
  %398 = vst [vmem:[#allocation2 + $0x38] sm:$0xff] %v366
  %399 = vst [vmem:[#allocation2 + $0x40] sm:$0xff] %v367
  %400 = vst [vmem:[#allocation2 + $0x48] sm:$0xff] %v368
  %401 = vst [vmem:[#allocation2 + $0x50] sm:$0xff] %v369
  %402 = vst [vmem:[#allocation2 + $0x58] sm:$0xff] %v370
  %403 = vst [vmem:[#allocation2 + $0x60] sm:$0xff] %v371
  %404 = vst [vmem:[#allocation2 + $0x68] sm:$0xff] %v372
  %405 = vst [vmem:[#allocation2 + $0x70] sm:$0xff] %v373
  %406 = vst [vmem:[#allocation2 + $0x78] sm:$0xff] %v374
  %407 = vst [vmem:[#allocation2 + $0x80] sm:$0xff] %v375
  %408 = vst [vmem:[#allocation2 + $0x88] sm:$0xff] %v376
  %409 = vst [vmem:[#allocation2 + $0x90] sm:$0xff] %v377
  %410 = vst [vmem:[#allocation2 + $0x98] sm:$0xff] %v378
  %411 = vst [vmem:[#allocation2 + $0xa0] sm:$0xff] %v379
  %412 = vst [vmem:[#allocation2 + $0xa8] sm:$0xff] %v380
  %413 = vst [vmem:[#allocation2 + $0xb0] sm:$0xff] %v381
  %414 = vst [vmem:[#allocation2 + $0xb8] sm:$0xff] %v382
  %415 = vst [vmem:[#allocation2 + $0xc0] sm:$0xff] %v383
  %416 = vst [vmem:[#allocation2 + $0xc8] sm:$0xff] %v384
  %417 = vst [vmem:[#allocation2 + $0xd0] sm:$0xff] %v385
  %418 = vst [vmem:[#allocation2 + $0xd8] sm:$0xff] %v386
  %419 = vst [vmem:[#allocation2 + $0xe0] sm:$0xff] %v387
  %420 = vst [vmem:[#allocation2 + $0xe8] sm:$0xff] %v388
  %421 = vst [vmem:[#allocation2 + $0xf0] sm:$0xff] %v389
  %422 = vst [vmem:[#allocation2 + $0xf8] sm:$0xff] %v390
  // Predicated region
  $region22: #{netg_forward.16} parent=0 // pred_check
    %p423 = pneg %p18
  $region23: #{netg_forward.16} parent=0 // pred_check_branch
    %425 = sbr.rel (%p423) target = $region25
  $region24: #{netg_forward.16} parent=0 // pred_region
    %v426 = vld [vmem:[#allocation2] sm:$0xff]
    %v427 = vld [vmem:[#allocation2 + $0x8] sm:$0xff]
    %v428 = vld [vmem:[#allocation2 + $0x10] sm:$0xff]
    %v429 = vld [vmem:[#allocation2 + $0x18] sm:$0xff]
    %v430 = vld [vmem:[#allocation2 + $0x20] sm:$0xff]
    %v431 = vld [vmem:[#allocation2 + $0x28] sm:$0xff]
    %v432 = vld [vmem:[#allocation2 + $0x30] sm:$0xff]
    %v433 = vld [vmem:[#allocation2 + $0x38] sm:$0xff]
    %v434 = vld [vmem:[#allocation2 + $0x40] sm:$0xff]
    %v435 = vld [vmem:[#allocation2 + $0x48] sm:$0xff]
    %v436 = vld [vmem:[#allocation2 + $0x50] sm:$0xff]
    %v437 = vld [vmem:[#allocation2 + $0x58] sm:$0xff]
    %v438 = vld [vmem:[#allocation2 + $0x60] sm:$0xff]
    %v439 = vld [vmem:[#allocation2 + $0x68] sm:$0xff]
    %v440 = vld [vmem:[#allocation2 + $0x70] sm:$0xff]
    %v441 = vld [vmem:[#allocation2 + $0x78] sm:$0xff]
    %v442 = vld [vmem:[#allocation2 + $0x80] sm:$0xff]
    %v443 = vld [vmem:[#allocation2 + $0x88] sm:$0xff]
    %v444 = vld [vmem:[#allocation2 + $0x90] sm:$0xff]
    %v445 = vld [vmem:[#allocation2 + $0x98] sm:$0xff]
    %v446 = vld [vmem:[#allocation2 + $0xa0] sm:$0xff]
    %v447 = vld [vmem:[#allocation2 + $0xa8] sm:$0xff]
    %v448 = vld [vmem:[#allocation2 + $0xb0] sm:$0xff]
    %v449 = vld [vmem:[#allocation2 + $0xb8] sm:$0xff]
    %v450 = vld [vmem:[#allocation2 + $0xc0] sm:$0xff]
    %v451 = vld [vmem:[#allocation2 + $0xc8] sm:$0xff]
    %v452 = vld [vmem:[#allocation2 + $0xd0] sm:$0xff]
    %v453 = vld [vmem:[#allocation2 + $0xd8] sm:$0xff]
    %v454 = vld [vmem:[#allocation2 + $0xe0] sm:$0xff]
    %v455 = vld [vmem:[#allocation2 + $0xe8] sm:$0xff]
    %v456 = vld [vmem:[#allocation2 + $0xf0] sm:$0xff]
    %v457 = vld [vmem:[#allocation2 + $0xf8] sm:$0xff]
    %v458 = vld [vmem:[%s2] sm:$0x3]
    %v460 = vlaneseq
    %v461 = vshrl.u32 %v460, 7
    %v462 = vsub.s32 0, %v461
    %v463 = vrot.slane %v458, %v462
    %v464 = vlaneseq
    %v465 = vshrl.u32 %v464, 7
    %v466 = vsub.s32 1, %v465
    %v467 = vrot.slane %v458, %v466
    %v470 = vmul.f32 %v426, %v463
    %v471 = vmul.f32 %v427, %v467
    %v472 = vmul.f32 %v428, %v463
    %v473 = vmul.f32 %v429, %v467
    %v474 = vmul.f32 %v430, %v463
    %v475 = vmul.f32 %v431, %v467
    %v476 = vmul.f32 %v432, %v463
    %v477 = vmul.f32 %v433, %v467
    %v478 = vmul.f32 %v434, %v463
    %v479 = vmul.f32 %v435, %v467
    %v480 = vmul.f32 %v436, %v463
    %v481 = vmul.f32 %v437, %v467
    %v482 = vmul.f32 %v438, %v463
    %v483 = vmul.f32 %v439, %v467
    %v484 = vmul.f32 %v440, %v463
    %v485 = vmul.f32 %v441, %v467
    %v486 = vmul.f32 %v442, %v463
    %v487 = vmul.f32 %v443, %v467
    %v488 = vmul.f32 %v444, %v463
    %v489 = vmul.f32 %v445, %v467
    %v490 = vmul.f32 %v446, %v463
    %v491 = vmul.f32 %v447, %v467
    %v492 = vmul.f32 %v448, %v463
    %v493 = vmul.f32 %v449, %v467
    %v494 = vmul.f32 %v450, %v463
    %v495 = vmul.f32 %v451, %v467
    %v496 = vmul.f32 %v452, %v463
    %v497 = vmul.f32 %v453, %v467
    %v498 = vmul.f32 %v454, %v463
    %v499 = vmul.f32 %v455, %v467
    %v500 = vmul.f32 %v456, %v463
    %v501 = vmul.f32 %v457, %v467
    %v502 = vld [vmem:[%s3] sm:$0x3]
    %v504 = vlaneseq
    %v505 = vshrl.u32 %v504, 7
    %v506 = vsub.s32 0, %v505
    %v507 = vrot.slane %v502, %v506
    %v508 = vlaneseq
    %v509 = vshrl.u32 %v508, 7
    %v510 = vsub.s32 1, %v509
    %v511 = vrot.slane %v502, %v510
    %v514 = vadd.f32 %v470, %v507
    %v515 = vadd.f32 %v471, %v511
    %v516 = vadd.f32 %v472, %v507
    %v517 = vadd.f32 %v473, %v511
    %v518 = vadd.f32 %v474, %v507
    %v519 = vadd.f32 %v475, %v511
    %v520 = vadd.f32 %v476, %v507
    %v521 = vadd.f32 %v477, %v511
    %v522 = vadd.f32 %v478, %v507
    %v523 = vadd.f32 %v479, %v511
    %v524 = vadd.f32 %v480, %v507
    %v525 = vadd.f32 %v481, %v511
    %v526 = vadd.f32 %v482, %v507
    %v527 = vadd.f32 %v483, %v511
    %v528 = vadd.f32 %v484, %v507
    %v529 = vadd.f32 %v485, %v511
    %v530 = vadd.f32 %v486, %v507
    %v531 = vadd.f32 %v487, %v511
    %v532 = vadd.f32 %v488, %v507
    %v533 = vadd.f32 %v489, %v511
    %v534 = vadd.f32 %v490, %v507
    %v535 = vadd.f32 %v491, %v511
    %v536 = vadd.f32 %v492, %v507
    %v537 = vadd.f32 %v493, %v511
    %v538 = vadd.f32 %v494, %v507
    %v539 = vadd.f32 %v495, %v511
    %v540 = vadd.f32 %v496, %v507
    %v541 = vadd.f32 %v497, %v511
    %v542 = vadd.f32 %v498, %v507
    %v543 = vadd.f32 %v499, %v511
    %v544 = vadd.f32 %v500, %v507
    %v545 = vadd.f32 %v501, %v511
    %v546 = vpack.c.bf16 %v516, %v514
    %v547 = vpack.c.bf16 %v517, %v515
    %v548 = vpack.c.bf16 %v520, %v518
    %v549 = vpack.c.bf16 %v521, %v519
    %v550 = vpack.c.bf16 %v524, %v522
    %v551 = vpack.c.bf16 %v525, %v523
    %v552 = vpack.c.bf16 %v528, %v526
    %v553 = vpack.c.bf16 %v529, %v527
    %v554 = vpack.c.bf16 %v532, %v530
    %v555 = vpack.c.bf16 %v533, %v531
    %v556 = vpack.c.bf16 %v536, %v534
    %v557 = vpack.c.bf16 %v537, %v535
    %v558 = vpack.c.bf16 %v540, %v538
    %v559 = vpack.c.bf16 %v541, %v539
    %v560 = vpack.c.bf16 %v544, %v542
    %v561 = vpack.c.bf16 %v545, %v543
    %v578 = vunpack.c.l.b16 %v546
    %v579 = vunpack.c.l.b16 %v547
    %v580 = vunpack.c.h.b16 %v546
    %v581 = vunpack.c.h.b16 %v547
    %v582 = vunpack.c.l.b16 %v548
    %v583 = vunpack.c.l.b16 %v549
    %v584 = vunpack.c.h.b16 %v548
    %v585 = vunpack.c.h.b16 %v549
    %v586 = vunpack.c.l.b16 %v550
    %v587 = vunpack.c.l.b16 %v551
    %v588 = vunpack.c.h.b16 %v550
    %v589 = vunpack.c.h.b16 %v551
    %v590 = vunpack.c.l.b16 %v552
    %v591 = vunpack.c.l.b16 %v553
    %v592 = vunpack.c.h.b16 %v552
    %v593 = vunpack.c.h.b16 %v553
    %v594 = vunpack.c.l.b16 %v554
    %v595 = vunpack.c.l.b16 %v555
    %v596 = vunpack.c.h.b16 %v554
    %v597 = vunpack.c.h.b16 %v555
    %v598 = vunpack.c.l.b16 %v556
    %v599 = vunpack.c.l.b16 %v557
    %v600 = vunpack.c.h.b16 %v556
    %v601 = vunpack.c.h.b16 %v557
    %v602 = vunpack.c.l.b16 %v558
    %v603 = vunpack.c.l.b16 %v559
    %v604 = vunpack.c.h.b16 %v558
    %v605 = vunpack.c.h.b16 %v559
    %v606 = vunpack.c.l.b16 %v560
    %v607 = vunpack.c.l.b16 %v561
    %v608 = vunpack.c.h.b16 %v560
    %v609 = vunpack.c.h.b16 %v561
    %v610 = vpack.c.b16 %v579, %v578
    %v611 = vpack.c.b16 %v581, %v580
    %v612 = vpack.c.b16 %v583, %v582
    %v613 = vpack.c.b16 %v585, %v584
    %v614 = vpack.c.b16 %v587, %v586
    %v615 = vpack.c.b16 %v589, %v588
    %v616 = vpack.c.b16 %v591, %v590
    %v617 = vpack.c.b16 %v593, %v592
    %v618 = vpack.c.b16 %v595, %v594
    %v619 = vpack.c.b16 %v597, %v596
    %v620 = vpack.c.b16 %v599, %v598
    %v621 = vpack.c.b16 %v601, %v600
    %v622 = vpack.c.b16 %v603, %v602
    %v623 = vpack.c.b16 %v605, %v604
    %v624 = vpack.c.b16 %v607, %v606
    %v625 = vpack.c.b16 %v609, %v608
    %642 = vst [vmem:[%s4] sm:$0xff] %v610
    %643 = vst [vmem:[%s4 + $0x8] sm:$0xff] %v611
    %644 = vst [vmem:[%s4 + $0x10] sm:$0xff] %v612
    %645 = vst [vmem:[%s4 + $0x18] sm:$0xff] %v613
    %646 = vst [vmem:[%s4 + $0x20] sm:$0xff] %v614
    %647 = vst [vmem:[%s4 + $0x28] sm:$0xff] %v615
    %648 = vst [vmem:[%s4 + $0x30] sm:$0xff] %v616
    %649 = vst [vmem:[%s4 + $0x38] sm:$0xff] %v617
    %650 = vst [vmem:[%s4 + $0x40] sm:$0xff] %v618
    %651 = vst [vmem:[%s4 + $0x48] sm:$0xff] %v619
    %652 = vst [vmem:[%s4 + $0x50] sm:$0xff] %v620
    %653 = vst [vmem:[%s4 + $0x58] sm:$0xff] %v621
    %654 = vst [vmem:[%s4 + $0x60] sm:$0xff] %v622
    %655 = vst [vmem:[%s4 + $0x68] sm:$0xff] %v623
    %656 = vst [vmem:[%s4 + $0x70] sm:$0xff] %v624
    %657 = vst [vmem:[%s4 + $0x78] sm:$0xff] %v625
  $region25: #{netg_forward.16} parent=0 // pred_fallthru
    _
  // Predicated region
  $region26: #{netg_forward.16} parent=0 // pred_check
    _
  $region27: #{netg_forward.16} parent=0 // pred_check_branch
    %659 = sbr.rel (0) target = $region29
  $region28: #{netg_forward.16} parent=0 // pred_region
    _
  $region29: #{netg_forward.16} parent=0 // pred_fallthru
    _
  // Predicated region
  $region30: #{netg_forward.16} parent=0 // pred_check
    _
  $region31: #{netg_forward.16} parent=0 // pred_check_branch
    %661 = sbr.rel (0) target = $region33
  $region32: #{netg_forward.16} parent=0 // pred_region
    _
  $region33: #{netg_forward.16} parent=0 // pred_fallthru
    _

// kernel: netg_forward.15
$region0: #{netg_forward.15}
  #allocation0 [shape = 'u32[]', space=smem, size = 0x4, offset = 0x4, fixed_abs, tag = 'smem constant byte address 0x4 - core index']
  #allocation1 [shape = 'u32[144,128]{1,0:T(1,128)}', space=vmem, size = 0x12000, scoped, tag = 'internal scratch']
  #allocation2 [shape = 'f32[128,128]{1,0:T(8,128)}', space=vmem, size = 0x10000, scoped, tag = 'scratch operand']
  %s0 = inlined_call_operand.vmem [shape: bf16[128,256], index: 0, kind: input, shape index: {}]
  %s1 = inlined_call_operand.vmem [shape: bf16[256,128], index: 1, kind: input, shape index: {}]
  %s2 = inlined_call_operand.vmem [shape: f32[1,128], index: 2, kind: input, shape index: {}]
  %s3 = inlined_call_operand.vmem [shape: f32[1,128], index: 3, kind: input, shape index: {}]
  %s4 = inlined_call_operand.vmem [shape: f32[128,128], index: 4, kind: output, shape index: {}]
  %s5 = sld [smem:[#allocation0]]
  $region34: #{netg_forward.15} parent=0
    _
  %s7 = ssub.s32 1, %s5
  %s8 = scalar_select 0, %s7, %s5
  // Predicated region
  $region2: #{netg_forward.15} parent=0 // pred_check
    _
  $region3: #{netg_forward.15} parent=0 // pred_check_branch
    %10 = sbr.rel (0) target = $region5
  $region4: #{netg_forward.15} parent=0 // pred_region
    _
  $region5: #{netg_forward.15} parent=0 // pred_fallthru
    _
  // Predicated region
  $region6: #{netg_forward.15} parent=0 // pred_check
    _
  $region7: #{netg_forward.15} parent=0 // pred_check_branch
    %12 = sbr.rel (0) target = $region9
  $region8: #{netg_forward.15} parent=0 // pred_region
    _
  $region9: #{netg_forward.15} parent=0 // pred_fallthru
    _
  // Predicated region
  $region10: #{netg_forward.15} parent=0 // pred_check
    _
  $region11: #{netg_forward.15} parent=0 // pred_check_branch
    %14 = sbr.rel (0) target = $region13
  $region12: #{netg_forward.15} parent=0 // pred_region
    _
  $region13: #{netg_forward.15} parent=0 // pred_fallthru
    _
  // Predicated region
  $region14: #{netg_forward.15} parent=0 // pred_check
    _
  $region15: #{netg_forward.15} parent=0 // pred_check_branch
    %16 = sbr.rel (0) target = $region17
  $region16: #{netg_forward.15} parent=0 // pred_region
    _
  $region17: #{netg_forward.15} parent=0 // pred_fallthru
    _
  %p18 = scmp.eq.s32.totalorder 0, 0
  // Predicated region
  $region18: #{netg_forward.15} parent=0 // pred_check
    %p19 = pneg %p18
  $region19: #{netg_forward.15} parent=0 // pred_check_branch
    %21 = sbr.rel (%p19) target = $region21
  $region20: #{netg_forward.15} parent=0 // pred_region
    %22 = vst [vmem:[#allocation2] sm:$0xff] 0.0
    %23 = vst [vmem:[#allocation2 + $0x8] sm:$0xff] 0.0
    %24 = vst [vmem:[#allocation2 + $0x10] sm:$0xff] 0.0
    %25 = vst [vmem:[#allocation2 + $0x18] sm:$0xff] 0.0
    %26 = vst [vmem:[#allocation2 + $0x20] sm:$0xff] 0.0
    %27 = vst [vmem:[#allocation2 + $0x28] sm:$0xff] 0.0
    %28 = vst [vmem:[#allocation2 + $0x30] sm:$0xff] 0.0
    %29 = vst [vmem:[#allocation2 + $0x38] sm:$0xff] 0.0
    %30 = vst [vmem:[#allocation2 + $0x40] sm:$0xff] 0.0
    %31 = vst [vmem:[#allocation2 + $0x48] sm:$0xff] 0.0
    %32 = vst [vmem:[#allocation2 + $0x50] sm:$0xff] 0.0
    %33 = vst [vmem:[#allocation2 + $0x58] sm:$0xff] 0.0
    %34 = vst [vmem:[#allocation2 + $0x60] sm:$0xff] 0.0
    %35 = vst [vmem:[#allocation2 + $0x68] sm:$0xff] 0.0
    %36 = vst [vmem:[#allocation2 + $0x70] sm:$0xff] 0.0
    %37 = vst [vmem:[#allocation2 + $0x78] sm:$0xff] 0.0
  $region21: #{netg_forward.15} parent=0 // pred_fallthru
    _
  %v38 = vld [vmem:[#allocation2] sm:$0xff]
  %v39 = vld [vmem:[#allocation2 + $0x8] sm:$0xff]
  %v40 = vld [vmem:[#allocation2 + $0x10] sm:$0xff]
  %v41 = vld [vmem:[#allocation2 + $0x18] sm:$0xff]
  %v42 = vld [vmem:[#allocation2 + $0x20] sm:$0xff]
  %v43 = vld [vmem:[#allocation2 + $0x28] sm:$0xff]
  %v44 = vld [vmem:[#allocation2 + $0x30] sm:$0xff]
  %v45 = vld [vmem:[#allocation2 + $0x38] sm:$0xff]
  %v46 = vld [vmem:[#allocation2 + $0x40] sm:$0xff]
  %v47 = vld [vmem:[#allocation2 + $0x48] sm:$0xff]
  %v48 = vld [vmem:[#allocation2 + $0x50] sm:$0xff]
  %v49 = vld [vmem:[#allocation2 + $0x58] sm:$0xff]
  %v50 = vld [vmem:[#allocation2 + $0x60] sm:$0xff]
  %v51 = vld [vmem:[#allocation2 + $0x68] sm:$0xff]
  %v52 = vld [vmem:[#allocation2 + $0x70] sm:$0xff]
  %v53 = vld [vmem:[#allocation2 + $0x78] sm:$0xff]
  %v54 = vld [vmem:[%s0] sm:$0xff]
  %v55 = vld [vmem:[%s0 + $0x8] sm:$0xff]
  %v56 = vld [vmem:[%s0 + $0x10] sm:$0xff]
  %v57 = vld [vmem:[%s0 + $0x18] sm:$0xff]
  %v58 = vld [vmem:[%s0 + $0x20] sm:$0xff]
  %v59 = vld [vmem:[%s0 + $0x28] sm:$0xff]
  %v60 = vld [vmem:[%s0 + $0x30] sm:$0xff]
  %v61 = vld [vmem:[%s0 + $0x38] sm:$0xff]
  %v62 = vld [vmem:[%s0 + $0x40] sm:$0xff]
  %v63 = vld [vmem:[%s0 + $0x48] sm:$0xff]
  %v64 = vld [vmem:[%s0 + $0x50] sm:$0xff]
  %v65 = vld [vmem:[%s0 + $0x58] sm:$0xff]
  %v66 = vld [vmem:[%s0 + $0x60] sm:$0xff]
  %v67 = vld [vmem:[%s0 + $0x68] sm:$0xff]
  %v68 = vld [vmem:[%s0 + $0x70] sm:$0xff]
  %v69 = vld [vmem:[%s0 + $0x78] sm:$0xff]
  %v70 = vld [vmem:[%s1] sm:$0xf]
  %v71 = vld [vmem:[%s1 + $0x4] sm:$0xf]
  %v72 = vld [vmem:[%s1 + $0x8] sm:$0xf]
  %v73 = vld [vmem:[%s1 + $0xc] sm:$0xf]
  %v74 = vld [vmem:[%s1 + $0x10] sm:$0xf]
  %v75 = vld [vmem:[%s1 + $0x14] sm:$0xf]
  %v76 = vld [vmem:[%s1 + $0x18] sm:$0xf]
  %v77 = vld [vmem:[%s1 + $0x1c] sm:$0xf]
  %v78 = vld [vmem:[%s1 + $0x20] sm:$0xf]
  %v79 = vld [vmem:[%s1 + $0x24] sm:$0xf]
  %v80 = vld [vmem:[%s1 + $0x28] sm:$0xf]
  %v81 = vld [vmem:[%s1 + $0x2c] sm:$0xf]
  %v82 = vld [vmem:[%s1 + $0x30] sm:$0xf]
  %v83 = vld [vmem:[%s1 + $0x34] sm:$0xf]
  %v84 = vld [vmem:[%s1 + $0x38] sm:$0xf]
  %v85 = vld [vmem:[%s1 + $0x3c] sm:$0xf]
  %v86 = vld [vmem:[%s1 + $0x40] sm:$0xf]
  %v87 = vld [vmem:[%s1 + $0x44] sm:$0xf]
  %v88 = vld [vmem:[%s1 + $0x48] sm:$0xf]
  %v89 = vld [vmem:[%s1 + $0x4c] sm:$0xf]
  %v90 = vld [vmem:[%s1 + $0x50] sm:$0xf]
  %v91 = vld [vmem:[%s1 + $0x54] sm:$0xf]
  %v92 = vld [vmem:[%s1 + $0x58] sm:$0xf]
  %v93 = vld [vmem:[%s1 + $0x5c] sm:$0xf]
  %v94 = vld [vmem:[%s1 + $0x60] sm:$0xf]
  %v95 = vld [vmem:[%s1 + $0x64] sm:$0xf]
  %v96 = vld [vmem:[%s1 + $0x68] sm:$0xf]
  %v97 = vld [vmem:[%s1 + $0x6c] sm:$0xf]
  %v98 = vld [vmem:[%s1 + $0x70] sm:$0xf]
  %v99 = vld [vmem:[%s1 + $0x74] sm:$0xf]
  %v100 = vld [vmem:[%s1 + $0x78] sm:$0xf]
  %v101 = vld [vmem:[%s1 + $0x7c] sm:$0xf]
  %v118 = vunpack.c.l.b16 %v54
  %v119 = vunpack.c.h.b16 %v54
  %v120 = vunpack.c.l.b16 %v55
  %v121 = vunpack.c.h.b16 %v55
  %v122 = vunpack.c.l.b16 %v56
  %v123 = vunpack.c.h.b16 %v56
  %v124 = vunpack.c.l.b16 %v57
  %v125 = vunpack.c.h.b16 %v57
  %v126 = vunpack.c.l.b16 %v58
  %v127 = vunpack.c.h.b16 %v58
  %v128 = vunpack.c.l.b16 %v59
  %v129 = vunpack.c.h.b16 %v59
  %v130 = vunpack.c.l.b16 %v60
  %v131 = vunpack.c.h.b16 %v60
  %v132 = vunpack.c.l.b16 %v61
  %v133 = vunpack.c.h.b16 %v61
  %v134 = vunpack.c.l.b16 %v62
  %v135 = vunpack.c.h.b16 %v62
  %v136 = vunpack.c.l.b16 %v63
  %v137 = vunpack.c.h.b16 %v63
  %v138 = vunpack.c.l.b16 %v64
  %v139 = vunpack.c.h.b16 %v64
  %v140 = vunpack.c.l.b16 %v65
  %v141 = vunpack.c.h.b16 %v65
  %v142 = vunpack.c.l.b16 %v66
  %v143 = vunpack.c.h.b16 %v66
  %v144 = vunpack.c.l.b16 %v67
  %v145 = vunpack.c.h.b16 %v67
  %v146 = vunpack.c.l.b16 %v68
  %v147 = vunpack.c.h.b16 %v68
  %v148 = vunpack.c.l.b16 %v69
  %v149 = vunpack.c.h.b16 %v69
  %v150 = vpack.c.b16 %v120, %v118
  %v151 = vpack.c.b16 %v121, %v119
  %v152 = vpack.c.b16 %v124, %v122
  %v153 = vpack.c.b16 %v125, %v123
  %v154 = vpack.c.b16 %v128, %v126
  %v155 = vpack.c.b16 %v129, %v127
  %v156 = vpack.c.b16 %v132, %v130
  %v157 = vpack.c.b16 %v133, %v131
  %v158 = vpack.c.b16 %v136, %v134
  %v159 = vpack.c.b16 %v137, %v135
  %v160 = vpack.c.b16 %v140, %v138
  %v161 = vpack.c.b16 %v141, %v139
  %v162 = vpack.c.b16 %v144, %v142
  %v163 = vpack.c.b16 %v145, %v143
  %v164 = vpack.c.b16 %v148, %v146
  %v165 = vpack.c.b16 %v149, %v147
  %v214 = vunpack.c.l.b16 %v70
  %v215 = vunpack.c.l.b16 %v71
  %v216 = vunpack.c.l.b16 %v72
  %v217 = vunpack.c.l.b16 %v73
  %v218 = vunpack.c.l.b16 %v74
  %v219 = vunpack.c.l.b16 %v75
  %v220 = vunpack.c.l.b16 %v76
  %v221 = vunpack.c.l.b16 %v77
  %v222 = vunpack.c.l.b16 %v78
  %v223 = vunpack.c.l.b16 %v79
  %v224 = vunpack.c.l.b16 %v80
  %v225 = vunpack.c.l.b16 %v81
  %v226 = vunpack.c.l.b16 %v82
  %v227 = vunpack.c.l.b16 %v83
  %v228 = vunpack.c.l.b16 %v84
  %v229 = vunpack.c.l.b16 %v85
  %v230 = vunpack.c.l.b16 %v86
  %v231 = vunpack.c.l.b16 %v87
  %v232 = vunpack.c.l.b16 %v88
  %v233 = vunpack.c.l.b16 %v89
  %v234 = vunpack.c.l.b16 %v90
  %v235 = vunpack.c.l.b16 %v91
  %v236 = vunpack.c.l.b16 %v92
  %v237 = vunpack.c.l.b16 %v93
  %v238 = vunpack.c.l.b16 %v94
  %v239 = vunpack.c.l.b16 %v95
  %v240 = vunpack.c.l.b16 %v96
  %v241 = vunpack.c.l.b16 %v97
  %v242 = vunpack.c.l.b16 %v98
  %v243 = vunpack.c.l.b16 %v99
  %v244 = vunpack.c.l.b16 %v100
  %v245 = vunpack.c.l.b16 %v101
  %v246 = vpack.c.b16 %v215, %v214
  %v247 = vpack.c.b16 %v217, %v216
  %v248 = vpack.c.b16 %v219, %v218
  %v249 = vpack.c.b16 %v221, %v220
  %v250 = vpack.c.b16 %v223, %v222
  %v251 = vpack.c.b16 %v225, %v224
  %v252 = vpack.c.b16 %v227, %v226
  %v253 = vpack.c.b16 %v229, %v228
  %v254 = vpack.c.b16 %v231, %v230
  %v255 = vpack.c.b16 %v233, %v232
  %v256 = vpack.c.b16 %v235, %v234
  %v257 = vpack.c.b16 %v237, %v236
  %v258 = vpack.c.b16 %v239, %v238
  %v259 = vpack.c.b16 %v241, %v240
  %v260 = vpack.c.b16 %v243, %v242
  %v261 = vpack.c.b16 %v245, %v244
  %278 = vmatprep.subr.bf16.mxu0 0
  %279 = vmatpush1.bf16.msra.mxu0 %v253
  %280 = vmatprep.subr.bf16.mxu0 0
  %281 = vmatpush1.bf16.msra.mxu0 %v252
  %282 = vmatprep.subr.bf16.mxu0 0
  %283 = vmatpush1.bf16.msra.mxu0 %v251
  %284 = vmatprep.subr.bf16.mxu0 0
  %285 = vmatpush1.bf16.msra.mxu0 %v250
  %286 = vmatprep.subr.bf16.mxu0 0
  %287 = vmatpush1.bf16.msra.mxu0 %v249
  %288 = vmatprep.subr.bf16.mxu0 0
  %289 = vmatpush1.bf16.msra.mxu0 %v248
  %290 = vmatprep.subr.bf16.mxu0 0
  %291 = vmatpush1.bf16.msra.mxu0 %v247
  %292 = vmatprep.subr.bf16.mxu0 0
  %293 = vmatpush1.bf16.msra.mxu0 %v246
  %294 = vmatprep.subr.bf16.mxu0 0
  %295 = vmatpush2.bf16.msra.mxu0 %v261
  %296 = vmatprep.subr.bf16.mxu0 0
  %297 = vmatpush2.bf16.msra.mxu0 %v260
  %298 = vmatprep.subr.bf16.mxu0 0
  %299 = vmatpush2.bf16.msra.mxu0 %v259
  %300 = vmatprep.subr.bf16.mxu0 0
  %301 = vmatpush2.bf16.msra.mxu0 %v258
  %302 = vmatprep.subr.bf16.mxu0 0
  %303 = vmatpush2.bf16.msra.mxu0 %v257
  %304 = vmatprep.subr.bf16.mxu0 0
  %305 = vmatpush2.bf16.msra.mxu0 %v256
  %306 = vmatprep.subr.bf16.mxu0 0
  %307 = vmatpush2.bf16.msra.mxu0 %v255
  %308 = vmatprep.subr.bf16.mxu0 0
  %309 = vmatpush2.bf16.msra.mxu0 %v254
  %310 = vmatprep.mubr.bf16.mxu0 %v151
  %311 = vmatmul.mubr.bf16.gmra.mxu0 %v150
  %v312 = vpop.f32.mrf.mxu0
  %v313 = vadd.f32 0.0, %v312
  %v314 = vpop.f32.mrf.mxu0
  %v315 = vpop.f32.mrf.mxu0
  %v316 = vadd.f32 0.0, %v315
  %v317 = vpop.f32.mrf.mxu0
  %318 = vmatprep.mubr.bf16.mxu0 %v153
  %319 = vmatmul.mubr.bf16.gmra.mxu0 %v152
  %v320 = vpop.f32.mrf.mxu0
  %v321 = vadd.f32 0.0, %v320
  %v322 = vpop.f32.mrf.mxu0
  %v323 = vpop.f32.mrf.mxu0
  %v324 = vadd.f32 0.0, %v323
  %v325 = vpop.f32.mrf.mxu0
  %326 = vmatprep.mubr.bf16.mxu0 %v155
  %327 = vmatmul.mubr.bf16.gmra.mxu0 %v154
  %v328 = vpop.f32.mrf.mxu0
  %v329 = vadd.f32 0.0, %v328
  %v330 = vpop.f32.mrf.mxu0
  %v331 = vpop.f32.mrf.mxu0
  %v332 = vadd.f32 0.0, %v331
  %v333 = vpop.f32.mrf.mxu0
  %334 = vmatprep.mubr.bf16.mxu0 %v157
  %335 = vmatmul.mubr.bf16.gmra.mxu0 %v156
  %v336 = vpop.f32.mrf.mxu0
  %v337 = vadd.f32 0.0, %v336
  %v338 = vpop.f32.mrf.mxu0
  %v339 = vpop.f32.mrf.mxu0
  %v340 = vadd.f32 0.0, %v339
  %v341 = vpop.f32.mrf.mxu0
  %342 = vmatprep.mubr.bf16.mxu0 %v159
  %343 = vmatmul.mubr.bf16.gmra.mxu0 %v158
  %v344 = vpop.f32.mrf.mxu0
  %v345 = vadd.f32 0.0, %v344
  %v346 = vpop.f32.mrf.mxu0
  %v347 = vpop.f32.mrf.mxu0
  %v348 = vadd.f32 0.0, %v347
  %v349 = vpop.f32.mrf.mxu0
  %350 = vmatprep.mubr.bf16.mxu0 %v161
  %351 = vmatmul.mubr.bf16.gmra.mxu0 %v160
  %v352 = vpop.f32.mrf.mxu0
  %v353 = vadd.f32 0.0, %v352
  %v354 = vpop.f32.mrf.mxu0
  %v355 = vpop.f32.mrf.mxu0
  %v356 = vadd.f32 0.0, %v355
  %v357 = vpop.f32.mrf.mxu0
  %358 = vmatprep.mubr.bf16.mxu0 %v163
  %359 = vmatmul.mubr.bf16.gmra.mxu0 %v162
  %v360 = vpop.f32.mrf.mxu0
  %v361 = vadd.f32 0.0, %v360
  %v362 = vpop.f32.mrf.mxu0
  %v363 = vpop.f32.mrf.mxu0
  %v364 = vadd.f32 0.0, %v363
  %v365 = vpop.f32.mrf.mxu0
  %366 = vmatprep.mubr.bf16.mxu0 %v165
  %367 = vmatmul.mubr.bf16.gmra.mxu0 %v164
  %v368 = vpop.f32.mrf.mxu0
  %v369 = vadd.f32 0.0, %v368
  %v370 = vpop.f32.mrf.mxu0
  %v371 = vpop.f32.mrf.mxu0
  %v372 = vadd.f32 0.0, %v371
  %v373 = vpop.f32.mrf.mxu0
  %374 = vdwg.mxu0
  %v375 = vadd.f32 %v38, %v313
  %v376 = vadd.f32 %v39, %v316
  %v377 = vadd.f32 %v40, %v321
  %v378 = vadd.f32 %v41, %v324
  %v379 = vadd.f32 %v42, %v329
  %v380 = vadd.f32 %v43, %v332
  %v381 = vadd.f32 %v44, %v337
  %v382 = vadd.f32 %v45, %v340
  %v383 = vadd.f32 %v46, %v345
  %v384 = vadd.f32 %v47, %v348
  %v385 = vadd.f32 %v48, %v353
  %v386 = vadd.f32 %v49, %v356
  %v387 = vadd.f32 %v50, %v361
  %v388 = vadd.f32 %v51, %v364
  %v389 = vadd.f32 %v52, %v369
  %v390 = vadd.f32 %v53, %v372
  %391 = vst [vmem:[#allocation2] sm:$0xff] %v375
  %392 = vst [vmem:[#allocation2 + $0x8] sm:$0xff] %v376
  %393 = vst [vmem:[#allocation2 + $0x10] sm:$0xff] %v377
  %394 = vst [vmem:[#allocation2 + $0x18] sm:$0xff] %v378
  %395 = vst [vmem:[#allocation2 + $0x20] sm:$0xff] %v379
  %396 = vst [vmem:[#allocation2 + $0x28] sm:$0xff] %v380
  %397 = vst [vmem:[#allocation2 + $0x30] sm:$0xff] %v381
  %398 = vst [vmem:[#allocation2 + $0x38] sm:$0xff] %v382
  %399 = vst [vmem:[#allocation2 + $0x40] sm:$0xff] %v383
  %400 = vst [vmem:[#allocation2 + $0x48] sm:$0xff] %v384
  %401 = vst [vmem:[#allocation2 + $0x50] sm:$0xff] %v385
  %402 = vst [vmem:[#allocation2 + $0x58] sm:$0xff] %v386
  %403 = vst [vmem:[#allocation2 + $0x60] sm:$0xff] %v387
  %404 = vst [vmem:[#allocation2 + $0x68] sm:$0xff] %v388
  %405 = vst [vmem:[#allocation2 + $0x70] sm:$0xff] %v389
  %406 = vst [vmem:[#allocation2 + $0x78] sm:$0xff] %v390
  // Predicated region
  $region22: #{netg_forward.15} parent=0 // pred_check
    %p407 = pneg %p18
  $region23: #{netg_forward.15} parent=0 // pred_check_branch
    %409 = sbr.rel (%p407) target = $region25
  $region24: #{netg_forward.15} parent=0 // pred_region
    %v410 = vld [vmem:[#allocation2] sm:$0xff]
    %v411 = vld [vmem:[#allocation2 + $0x8] sm:$0xff]
    %v412 = vld [vmem:[#allocation2 + $0x10] sm:$0xff]
    %v413 = vld [vmem:[#allocation2 + $0x18] sm:$0xff]
    %v414 = vld [vmem:[#allocation2 + $0x20] sm:$0xff]
    %v415 = vld [vmem:[#allocation2 + $0x28] sm:$0xff]
    %v416 = vld [vmem:[#allocation2 + $0x30] sm:$0xff]
    %v417 = vld [vmem:[#allocation2 + $0x38] sm:$0xff]
    %v418 = vld [vmem:[#allocation2 + $0x40] sm:$0xff]
    %v419 = vld [vmem:[#allocation2 + $0x48] sm:$0xff]
    %v420 = vld [vmem:[#allocation2 + $0x50] sm:$0xff]
    %v421 = vld [vmem:[#allocation2 + $0x58] sm:$0xff]
    %v422 = vld [vmem:[#allocation2 + $0x60] sm:$0xff]
    %v423 = vld [vmem:[#allocation2 + $0x68] sm:$0xff]
    %v424 = vld [vmem:[#allocation2 + $0x70] sm:$0xff]
    %v425 = vld [vmem:[#allocation2 + $0x78] sm:$0xff]
    %v426 = vld [vmem:[%s2] sm:$0x1]
    %v428 = vlaneseq
    %v429 = vshrl.u32 %v428, 7
    %v430 = vsub.s32 0, %v429
    %v431 = vrot.slane %v426, %v430
    %v433 = vmul.f32 %v410, %v431
    %v434 = vmul.f32 %v411, %v431
    %v435 = vmul.f32 %v412, %v431
    %v436 = vmul.f32 %v413, %v431
    %v437 = vmul.f32 %v414, %v431
    %v438 = vmul.f32 %v415, %v431
    %v439 = vmul.f32 %v416, %v431
    %v440 = vmul.f32 %v417, %v431
    %v441 = vmul.f32 %v418, %v431
    %v442 = vmul.f32 %v419, %v431
    %v443 = vmul.f32 %v420, %v431
    %v444 = vmul.f32 %v421, %v431
    %v445 = vmul.f32 %v422, %v431
    %v446 = vmul.f32 %v423, %v431
    %v447 = vmul.f32 %v424, %v431
    %v448 = vmul.f32 %v425, %v431
    %v449 = vld [vmem:[%s3] sm:$0x1]
    %v451 = vlaneseq
    %v452 = vshrl.u32 %v451, 7
    %v453 = vsub.s32 0, %v452
    %v454 = vrot.slane %v449, %v453
    %v456 = vadd.f32 %v433, %v454
    %v457 = vadd.f32 %v434, %v454
    %v458 = vadd.f32 %v435, %v454
    %v459 = vadd.f32 %v436, %v454
    %v460 = vadd.f32 %v437, %v454
    %v461 = vadd.f32 %v438, %v454
    %v462 = vadd.f32 %v439, %v454
    %v463 = vadd.f32 %v440, %v454
    %v464 = vadd.f32 %v441, %v454
    %v465 = vadd.f32 %v442, %v454
    %v466 = vadd.f32 %v443, %v454
    %v467 = vadd.f32 %v444, %v454
    %v468 = vadd.f32 %v445, %v454
    %v469 = vadd.f32 %v446, %v454
    %v470 = vadd.f32 %v447, %v454
    %v471 = vadd.f32 %v448, %v454
    %472 = vst [vmem:[%s4] sm:$0xff] %v456
    %473 = vst [vmem:[%s4 + $0x8] sm:$0xff] %v457
    %474 = vst [vmem:[%s4 + $0x10] sm:$0xff] %v458
    %475 = vst [vmem:[%s4 + $0x18] sm:$0xff] %v459
    %476 = vst [vmem:[%s4 + $0x20] sm:$0xff] %v460
    %477 = vst [vmem:[%s4 + $0x28] sm:$0xff] %v461
    %478 = vst [vmem:[%s4 + $0x30] sm:$0xff] %v462
    %479 = vst [vmem:[%s4 + $0x38] sm:$0xff] %v463
    %480 = vst [vmem:[%s4 + $0x40] sm:$0xff] %v464
    %481 = vst [vmem:[%s4 + $0x48] sm:$0xff] %v465
    %482 = vst [vmem:[%s4 + $0x50] sm:$0xff] %v466
    %483 = vst [vmem:[%s4 + $0x58] sm:$0xff] %v467
    %484 = vst [vmem:[%s4 + $0x60] sm:$0xff] %v468
    %485 = vst [vmem:[%s4 + $0x68] sm:$0xff] %v469
    %486 = vst [vmem:[%s4 + $0x70] sm:$0xff] %v470
    %487 = vst [vmem:[%s4 + $0x78] sm:$0xff] %v471
  $region25: #{netg_forward.15} parent=0 // pred_fallthru
    _
  // Predicated region
  $region26: #{netg_forward.15} parent=0 // pred_check
    _
  $region27: #{netg_forward.15} parent=0 // pred_check_branch
    %489 = sbr.rel (0) target = $region29
  $region28: #{netg_forward.15} parent=0 // pred_region
    _
  $region29: #{netg_forward.15} parent=0 // pred_fallthru
    _
  // Predicated region
  $region30: #{netg_forward.15} parent=0 // pred_check
    _
  $region31: #{netg_forward.15} parent=0 // pred_check_branch
    %491 = sbr.rel (0) target = $region33
  $region32: #{netg_forward.15} parent=0 // pred_region
    _
  $region33: #{netg_forward.15} parent=0 // pred_fallthru
    _

// kernel: netg_forward.17
$region0: #{netg_forward.17}
  #allocation0 [shape = 'u32[]', space=smem, size = 0x4, offset = 0x4, fixed_abs, tag = 'smem constant byte address 0x4 - core index']
  #allocation1 [shape = 'u32[144,128]{1,0:T(1,128)}', space=vmem, size = 0x12000, scoped, tag = 'internal scratch']
  %s0 = inlined_call_operand.vmem [shape: bf16[128,128], index: 0, kind: input, shape index: {}]
  %s1 = inlined_call_operand.vmem [shape: f32[8,128], index: 1, kind: output, shape index: {0}]
  %s2 = inlined_call_operand.vmem [shape: f32[8,128], index: 2, kind: output, shape index: {1}]
  %3 = xla_tuple %s1, %s2
  %s4 = sld [smem:[#allocation0]]
  $region26: #{netg_forward.17} parent=0
    _
  %s6 = ssub.s32 1, %s4
  %s7 = scalar_select 0, %s6, %s4
  // Predicated region
  $region2: #{netg_forward.17} parent=0 // pred_check
    _
  $region3: #{netg_forward.17} parent=0 // pred_check_branch
    %9 = sbr.rel (0) target = $region5
  $region4: #{netg_forward.17} parent=0 // pred_region
    _
  $region5: #{netg_forward.17} parent=0 // pred_fallthru
    _
  %v10 = vld [vmem:[%s0] sm:$0xf]
  %v11 = vld [vmem:[%s0 + $0x4] sm:$0xf]
  %v12 = vld [vmem:[%s0 + $0x8] sm:$0xf]
  %v13 = vld [vmem:[%s0 + $0xc] sm:$0xf]
  %v14 = vld [vmem:[%s0 + $0x10] sm:$0xf]
  %v15 = vld [vmem:[%s0 + $0x14] sm:$0xf]
  %v16 = vld [vmem:[%s0 + $0x18] sm:$0xf]
  %v17 = vld [vmem:[%s0 + $0x1c] sm:$0xf]
  %v18 = vld [vmem:[%s0 + $0x20] sm:$0xf]
  %v19 = vld [vmem:[%s0 + $0x24] sm:$0xf]
  %v20 = vld [vmem:[%s0 + $0x28] sm:$0xf]
  %v21 = vld [vmem:[%s0 + $0x2c] sm:$0xf]
  %v22 = vld [vmem:[%s0 + $0x30] sm:$0xf]
  %v23 = vld [vmem:[%s0 + $0x34] sm:$0xf]
  %v24 = vld [vmem:[%s0 + $0x38] sm:$0xf]
  %v25 = vld [vmem:[%s0 + $0x3c] sm:$0xf]
  %v26 = vunpack.c.l.bf16 %v10
  %v27 = vunpack.c.l.bf16 %v11
  %v28 = vunpack.c.l.bf16 %v12
  %v29 = vunpack.c.l.bf16 %v13
  %v30 = vunpack.c.l.bf16 %v14
  %v31 = vunpack.c.l.bf16 %v15
  %v32 = vunpack.c.l.bf16 %v16
  %v33 = vunpack.c.l.bf16 %v17
  %v34 = vunpack.c.l.bf16 %v18
  %v35 = vunpack.c.l.bf16 %v19
  %v36 = vunpack.c.l.bf16 %v20
  %v37 = vunpack.c.l.bf16 %v21
  %v38 = vunpack.c.l.bf16 %v22
  %v39 = vunpack.c.l.bf16 %v23
  %v40 = vunpack.c.l.bf16 %v24
  %v41 = vunpack.c.l.bf16 %v25
  %p42 = scmp.eq.s32.totalorder 0, 0
  // Predicated region
  $region6: #{netg_forward.17} parent=0 // pred_check
    %p43 = pneg %p42
  $region7: #{netg_forward.17} parent=0 // pred_check_branch
    %45 = sbr.rel (%p43) target = $region9
  $region8: #{netg_forward.17} parent=0 // pred_region
    %46 = vst [vmem:[%s1] sm:$0xff] 0.0
    %47 = vst [vmem:[%s2] sm:$0xff] 0.0
  $region9: #{netg_forward.17} parent=0 // pred_fallthru
    _
  %v48 = vld [vmem:[%s1] sm:$0xff]
  %v49 = vadd.f32 %v26, %v27
  %v50 = vadd.f32 %v49, %v28
  %v51 = vadd.f32 %v50, %v29
  %v52 = vadd.f32 %v51, %v30
  %v53 = vadd.f32 %v52, %v31
  %v54 = vadd.f32 %v53, %v32
  %v55 = vadd.f32 %v54, %v33
  %v56 = vadd.f32 %v55, %v34
  %v57 = vadd.f32 %v56, %v35
  %v58 = vadd.f32 %v57, %v36
  %v59 = vadd.f32 %v58, %v37
  %v60 = vadd.f32 %v59, %v38
  %v61 = vadd.f32 %v60, %v39
  %v62 = vadd.f32 %v61, %v40
  %v63 = vadd.f32 %v62, %v41
  %v64 = vrot.slane %v63, 4
  %v65 = vadd.f32 %v63, %v64
  %v66 = vrot.slane %v65, 2
  %v67 = vadd.f32 %v65, %v66
  %v68 = vrot.slane %v67, 1
  %v69 = vadd.f32 %v67, %v68
  %v70 = vadd.f32 %v48, %v69
  %71 = vst [vmem:[%s1] sm:$0xff] %v70
  %v72 = vld [vmem:[%s2] sm:$0xff]
  %v73 = vmul.f32 %v26, %v26
  %v74 = vmul.f32 %v27, %v27
  %v75 = vmul.f32 %v28, %v28
  %v76 = vmul.f32 %v29, %v29
  %v77 = vmul.f32 %v30, %v30
  %v78 = vmul.f32 %v31, %v31
  %v79 = vmul.f32 %v32, %v32
  %v80 = vmul.f32 %v33, %v33
  %v81 = vmul.f32 %v34, %v34
  %v82 = vmul.f32 %v35, %v35
  %v83 = vmul.f32 %v36, %v36
  %v84 = vmul.f32 %v37, %v37
  %v85 = vmul.f32 %v38, %v38
  %v86 = vmul.f32 %v39, %v39
  %v87 = vmul.f32 %v40, %v40
  %v88 = vmul.f32 %v41, %v41
  %v89 = vadd.f32 %v73, %v74
  %v90 = vadd.f32 %v89, %v75
  %v91 = vadd.f32 %v90, %v76
  %v92 = vadd.f32 %v91, %v77
  %v93 = vadd.f32 %v92, %v78
  %v94 = vadd.f32 %v93, %v79
  %v95 = vadd.f32 %v94, %v80
  %v96 = vadd.f32 %v95, %v81
  %v97 = vadd.f32 %v96, %v82
  %v98 = vadd.f32 %v97, %v83
  %v99 = vadd.f32 %v98, %v84
  %v100 = vadd.f32 %v99, %v85
  %v101 = vadd.f32 %v100, %v86
  %v102 = vadd.f32 %v101, %v87
  %v103 = vadd.f32 %v102, %v88
  %v104 = vrot.slane %v103, 4
  %v105 = vadd.f32 %v103, %v104
  %v106 = vrot.slane %v105, 2
  %v107 = vadd.f32 %v105, %v106
  %v108 = vrot.slane %v107, 1
  %v109 = vadd.f32 %v107, %v108
  %v110 = vadd.f32 %v72, %v109
  %111 = vst [vmem:[%s2] sm:$0xff] %v110
  // Predicated region
  $region10: #{netg_forward.17} parent=0 // pred_check
    _
  $region11: #{netg_forward.17} parent=0 // pred_check_branch
    %113 = sbr.rel (0) target = $region13
  $region12: #{netg_forward.17} parent=0 // pred_region
    _
  $region13: #{netg_forward.17} parent=0 // pred_fallthru
    _
  // Predicated region
  $region14: #{netg_forward.17} parent=0 // pred_check
    _
  $region15: #{netg_forward.17} parent=0 // pred_check_branch
    %115 = sbr.rel (0) target = $region17
  $region16: #{netg_forward.17} parent=0 // pred_region
    _
  $region17: #{netg_forward.17} parent=0 // pred_fallthru
    _
  // Predicated region
  $region18: #{netg_forward.17} parent=0 // pred_check
    _
  $region19: #{netg_forward.17} parent=0 // pred_check_branch
    %117 = sbr.rel (0) target = $region21
  $region20: #{netg_forward.17} parent=0 // pred_region
    _
  $region21: #{netg_forward.17} parent=0 // pred_fallthru
    _
  // Predicated region
  $region22: #{netg_forward.17} parent=0 // pred_check
    _
  $region23: #{netg_forward.17} parent=0 // pred_check_branch
    %119 = sbr.rel (0) target = $region25
  $region24: #{netg_forward.17} parent=0 // pred_region
    _
  $region25: #{netg_forward.17} parent=0 // pred_fallthru
    _

// kernel: netg_forward.19
$region0: #{netg_forward.19}
  #allocation0 [shape = 'u32[]', space=smem, size = 0x4, offset = 0x4, fixed_abs, tag = 'smem constant byte address 0x4 - core index']
  #allocation1 [shape = 'u32[144,128]{1,0:T(1,128)}', space=vmem, size = 0x12000, scoped, tag = 'internal scratch']
  #allocation2 [shape = 'f32[128,128]{1,0:T(8,128)}', space=vmem, size = 0x10000, scoped, tag = 'scratch operand']
  %s0 = inlined_call_operand.vmem [shape: bf16[128,128], index: 0, kind: input, shape index: {}]
  %s1 = inlined_call_operand.vmem [shape: bf16[128,128], index: 1, kind: input, shape index: {}]
  %s2 = inlined_call_operand.vmem [shape: f32[1,128], index: 2, kind: input, shape index: {}]
  %s3 = inlined_call_operand.vmem [shape: f32[1,128], index: 3, kind: input, shape index: {}]
  %s4 = inlined_call_operand.vmem [shape: bf16[128,128], index: 4, kind: output, shape index: {}]
  %s5 = sld [smem:[#allocation0]]
  $region34: #{netg_forward.19} parent=0
    _
  %s7 = ssub.s32 1, %s5
  %s8 = scalar_select 0, %s7, %s5
  // Predicated region
  $region2: #{netg_forward.19} parent=0 // pred_check
    _
  $region3: #{netg_forward.19} parent=0 // pred_check_branch
    %10 = sbr.rel (0) target = $region5
  $region4: #{netg_forward.19} parent=0 // pred_region
    _
  $region5: #{netg_forward.19} parent=0 // pred_fallthru
    _
  // Predicated region
  $region6: #{netg_forward.19} parent=0 // pred_check
    _
  $region7: #{netg_forward.19} parent=0 // pred_check_branch
    %12 = sbr.rel (0) target = $region9
  $region8: #{netg_forward.19} parent=0 // pred_region
    _
  $region9: #{netg_forward.19} parent=0 // pred_fallthru
    _
  // Predicated region
  $region10: #{netg_forward.19} parent=0 // pred_check
    _
  $region11: #{netg_forward.19} parent=0 // pred_check_branch
    %14 = sbr.rel (0) target = $region13
  $region12: #{netg_forward.19} parent=0 // pred_region
    _
  $region13: #{netg_forward.19} parent=0 // pred_fallthru
    _
  // Predicated region
  $region14: #{netg_forward.19} parent=0 // pred_check
    _
  $region15: #{netg_forward.19} parent=0 // pred_check_branch
    %16 = sbr.rel (0) target = $region17
  $region16: #{netg_forward.19} parent=0 // pred_region
    _
  $region17: #{netg_forward.19} parent=0 // pred_fallthru
    _
  %p18 = scmp.eq.s32.totalorder 0, 0
  // Predicated region
  $region18: #{netg_forward.19} parent=0 // pred_check
    %p19 = pneg %p18
  $region19: #{netg_forward.19} parent=0 // pred_check_branch
    %21 = sbr.rel (%p19) target = $region21
  $region20: #{netg_forward.19} parent=0 // pred_region
    %22 = vst [vmem:[#allocation2] sm:$0xff] 0.0
    %23 = vst [vmem:[#allocation2 + $0x8] sm:$0xff] 0.0
    %24 = vst [vmem:[#allocation2 + $0x10] sm:$0xff] 0.0
    %25 = vst [vmem:[#allocation2 + $0x18] sm:$0xff] 0.0
    %26 = vst [vmem:[#allocation2 + $0x20] sm:$0xff] 0.0
    %27 = vst [vmem:[#allocation2 + $0x28] sm:$0xff] 0.0
    %28 = vst [vmem:[#allocation2 + $0x30] sm:$0xff] 0.0
    %29 = vst [vmem:[#allocation2 + $0x38] sm:$0xff] 0.0
    %30 = vst [vmem:[#allocation2 + $0x40] sm:$0xff] 0.0
    %31 = vst [vmem:[#allocation2 + $0x48] sm:$0xff] 0.0
    %32 = vst [vmem:[#allocation2 + $0x50] sm:$0xff] 0.0
    %33 = vst [vmem:[#allocation2 + $0x58] sm:$0xff] 0.0
    %34 = vst [vmem:[#allocation2 + $0x60] sm:$0xff] 0.0
    %35 = vst [vmem:[#allocation2 + $0x68] sm:$0xff] 0.0
    %36 = vst [vmem:[#allocation2 + $0x70] sm:$0xff] 0.0
    %37 = vst [vmem:[#allocation2 + $0x78] sm:$0xff] 0.0
  $region21: #{netg_forward.19} parent=0 // pred_fallthru
    _
  %v38 = vld [vmem:[#allocation2] sm:$0xff]
  %v39 = vld [vmem:[#allocation2 + $0x8] sm:$0xff]
  %v40 = vld [vmem:[#allocation2 + $0x10] sm:$0xff]
  %v41 = vld [vmem:[#allocation2 + $0x18] sm:$0xff]
  %v42 = vld [vmem:[#allocation2 + $0x20] sm:$0xff]
  %v43 = vld [vmem:[#allocation2 + $0x28] sm:$0xff]
  %v44 = vld [vmem:[#allocation2 + $0x30] sm:$0xff]
  %v45 = vld [vmem:[#allocation2 + $0x38] sm:$0xff]
  %v46 = vld [vmem:[#allocation2 + $0x40] sm:$0xff]
  %v47 = vld [vmem:[#allocation2 + $0x48] sm:$0xff]
  %v48 = vld [vmem:[#allocation2 + $0x50] sm:$0xff]
  %v49 = vld [vmem:[#allocation2 + $0x58] sm:$0xff]
  %v50 = vld [vmem:[#allocation2 + $0x60] sm:$0xff]
  %v51 = vld [vmem:[#allocation2 + $0x68] sm:$0xff]
  %v52 = vld [vmem:[#allocation2 + $0x70] sm:$0xff]
  %v53 = vld [vmem:[#allocation2 + $0x78] sm:$0xff]
  %v54 = vld [vmem:[%s0] sm:$0xf]
  %v55 = vld [vmem:[%s0 + $0x4] sm:$0xf]
  %v56 = vld [vmem:[%s0 + $0x8] sm:$0xf]
  %v57 = vld [vmem:[%s0 + $0xc] sm:$0xf]
  %v58 = vld [vmem:[%s0 + $0x10] sm:$0xf]
  %v59 = vld [vmem:[%s0 + $0x14] sm:$0xf]
  %v60 = vld [vmem:[%s0 + $0x18] sm:$0xf]
  %v61 = vld [vmem:[%s0 + $0x1c] sm:$0xf]
  %v62 = vld [vmem:[%s0 + $0x20] sm:$0xf]
  %v63 = vld [vmem:[%s0 + $0x24] sm:$0xf]
  %v64 = vld [vmem:[%s0 + $0x28] sm:$0xf]
  %v65 = vld [vmem:[%s0 + $0x2c] sm:$0xf]
  %v66 = vld [vmem:[%s0 + $0x30] sm:$0xf]
  %v67 = vld [vmem:[%s0 + $0x34] sm:$0xf]
  %v68 = vld [vmem:[%s0 + $0x38] sm:$0xf]
  %v69 = vld [vmem:[%s0 + $0x3c] sm:$0xf]
  %v70 = vld [vmem:[%s1] sm:$0xf]
  %v71 = vld [vmem:[%s1 + $0x4] sm:$0xf]
  %v72 = vld [vmem:[%s1 + $0x8] sm:$0xf]
  %v73 = vld [vmem:[%s1 + $0xc] sm:$0xf]
  %v74 = vld [vmem:[%s1 + $0x10] sm:$0xf]
  %v75 = vld [vmem:[%s1 + $0x14] sm:$0xf]
  %v76 = vld [vmem:[%s1 + $0x18] sm:$0xf]
  %v77 = vld [vmem:[%s1 + $0x1c] sm:$0xf]
  %v78 = vld [vmem:[%s1 + $0x20] sm:$0xf]
  %v79 = vld [vmem:[%s1 + $0x24] sm:$0xf]
  %v80 = vld [vmem:[%s1 + $0x28] sm:$0xf]
  %v81 = vld [vmem:[%s1 + $0x2c] sm:$0xf]
  %v82 = vld [vmem:[%s1 + $0x30] sm:$0xf]
  %v83 = vld [vmem:[%s1 + $0x34] sm:$0xf]
  %v84 = vld [vmem:[%s1 + $0x38] sm:$0xf]
  %v85 = vld [vmem:[%s1 + $0x3c] sm:$0xf]
  %v102 = vunpack.c.l.b16 %v54
  %v103 = vunpack.c.l.b16 %v55
  %v104 = vunpack.c.l.b16 %v56
  %v105 = vunpack.c.l.b16 %v57
  %v106 = vunpack.c.l.b16 %v58
  %v107 = vunpack.c.l.b16 %v59
  %v108 = vunpack.c.l.b16 %v60
  %v109 = vunpack.c.l.b16 %v61
  %v110 = vunpack.c.l.b16 %v62
  %v111 = vunpack.c.l.b16 %v63
  %v112 = vunpack.c.l.b16 %v64
  %v113 = vunpack.c.l.b16 %v65
  %v114 = vunpack.c.l.b16 %v66
  %v115 = vunpack.c.l.b16 %v67
  %v116 = vunpack.c.l.b16 %v68
  %v117 = vunpack.c.l.b16 %v69
  %v118 = vpack.c.b16 %v103, %v102
  %v119 = vpack.c.b16 %v105, %v104
  %v120 = vpack.c.b16 %v107, %v106
  %v121 = vpack.c.b16 %v109, %v108
  %v122 = vpack.c.b16 %v111, %v110
  %v123 = vpack.c.b16 %v113, %v112
  %v124 = vpack.c.b16 %v115, %v114
  %v125 = vpack.c.b16 %v117, %v116
  %v150 = vunpack.c.l.b16 %v70
  %v151 = vunpack.c.l.b16 %v71
  %v152 = vunpack.c.l.b16 %v72
  %v153 = vunpack.c.l.b16 %v73
  %v154 = vunpack.c.l.b16 %v74
  %v155 = vunpack.c.l.b16 %v75
  %v156 = vunpack.c.l.b16 %v76
  %v157 = vunpack.c.l.b16 %v77
  %v158 = vunpack.c.l.b16 %v78
  %v159 = vunpack.c.l.b16 %v79
  %v160 = vunpack.c.l.b16 %v80
  %v161 = vunpack.c.l.b16 %v81
  %v162 = vunpack.c.l.b16 %v82
  %v163 = vunpack.c.l.b16 %v83
  %v164 = vunpack.c.l.b16 %v84
  %v165 = vunpack.c.l.b16 %v85
  %v166 = vpack.c.b16 %v151, %v150
  %v167 = vpack.c.b16 %v153, %v152
  %v168 = vpack.c.b16 %v155, %v154
  %v169 = vpack.c.b16 %v157, %v156
  %v170 = vpack.c.b16 %v159, %v158
  %v171 = vpack.c.b16 %v161, %v160
  %v172 = vpack.c.b16 %v163, %v162
  %v173 = vpack.c.b16 %v165, %v164
  %182 = vmatprep.subr.bf16.mxu0 0
  %183 = vmatpush1.bf16.msra.mxu0 %v173
  %184 = vmatprep.subr.bf16.mxu0 0
  %185 = vmatpush1.bf16.msra.mxu0 %v172
  %186 = vmatprep.subr.bf16.mxu0 0
  %187 = vmatpush1.bf16.msra.mxu0 %v171
  %188 = vmatprep.subr.bf16.mxu0 0
  %189 = vmatpush1.bf16.msra.mxu0 %v170
  %190 = vmatprep.subr.bf16.mxu0 0
  %191 = vmatpush1.bf16.msra.mxu0 %v169
  %192 = vmatprep.subr.bf16.mxu0 0
  %193 = vmatpush1.bf16.msra.mxu0 %v168
  %194 = vmatprep.subr.bf16.mxu0 0
  %195 = vmatpush1.bf16.msra.mxu0 %v167
  %196 = vmatprep.subr.bf16.mxu0 0
  %197 = vmatpush1.bf16.msra.mxu0 %v166
  %198 = vmatprep.subr.bf16.mxu0 0
  %199 = vmatpush2.bf16.msra.mxu0 0
  %200 = vmatprep.subr.bf16.mxu0 0
  %201 = vmatpush2.bf16.msra.mxu0 0
  %202 = vmatprep.subr.bf16.mxu0 0
  %203 = vmatpush2.bf16.msra.mxu0 0
  %204 = vmatprep.subr.bf16.mxu0 0
  %205 = vmatpush2.bf16.msra.mxu0 0
  %206 = vmatprep.subr.bf16.mxu0 0
  %207 = vmatpush2.bf16.msra.mxu0 0
  %208 = vmatprep.subr.bf16.mxu0 0
  %209 = vmatpush2.bf16.msra.mxu0 0
  %210 = vmatprep.subr.bf16.mxu0 0
  %211 = vmatpush2.bf16.msra.mxu0 0
  %212 = vmatprep.subr.bf16.mxu0 0
  %213 = vmatpush2.bf16.msra.mxu0 0
  %214 = vmatprep.mubr.bf16.mxu0 0
  %215 = vmatmul.mubr.bf16.gmra.mxu0 %v118
  %v216 = vpop.f32.mrf.mxu0
  %v217 = vadd.f32 0.0, %v216
  %v218 = vpop.f32.mrf.mxu0
  %v219 = vpop.f32.mrf.mxu0
  %v220 = vadd.f32 0.0, %v219
  %v221 = vpop.f32.mrf.mxu0
  %222 = vmatprep.mubr.bf16.mxu0 0
  %223 = vmatmul.mubr.bf16.gmra.mxu0 %v119
  %v224 = vpop.f32.mrf.mxu0
  %v225 = vadd.f32 0.0, %v224
  %v226 = vpop.f32.mrf.mxu0
  %v227 = vpop.f32.mrf.mxu0
  %v228 = vadd.f32 0.0, %v227
  %v229 = vpop.f32.mrf.mxu0
  %230 = vmatprep.mubr.bf16.mxu0 0
  %231 = vmatmul.mubr.bf16.gmra.mxu0 %v120
  %v232 = vpop.f32.mrf.mxu0
  %v233 = vadd.f32 0.0, %v232
  %v234 = vpop.f32.mrf.mxu0
  %v235 = vpop.f32.mrf.mxu0
  %v236 = vadd.f32 0.0, %v235
  %v237 = vpop.f32.mrf.mxu0
  %238 = vmatprep.mubr.bf16.mxu0 0
  %239 = vmatmul.mubr.bf16.gmra.mxu0 %v121
  %v240 = vpop.f32.mrf.mxu0
  %v241 = vadd.f32 0.0, %v240
  %v242 = vpop.f32.mrf.mxu0
  %v243 = vpop.f32.mrf.mxu0
  %v244 = vadd.f32 0.0, %v243
  %v245 = vpop.f32.mrf.mxu0
  %246 = vmatprep.mubr.bf16.mxu0 0
  %247 = vmatmul.mubr.bf16.gmra.mxu0 %v122
  %v248 = vpop.f32.mrf.mxu0
  %v249 = vadd.f32 0.0, %v248
  %v250 = vpop.f32.mrf.mxu0
  %v251 = vpop.f32.mrf.mxu0
  %v252 = vadd.f32 0.0, %v251
  %v253 = vpop.f32.mrf.mxu0
  %254 = vmatprep.mubr.bf16.mxu0 0
  %255 = vmatmul.mubr.bf16.gmra.mxu0 %v123
  %v256 = vpop.f32.mrf.mxu0
  %v257 = vadd.f32 0.0, %v256
  %v258 = vpop.f32.mrf.mxu0
  %v259 = vpop.f32.mrf.mxu0
  %v260 = vadd.f32 0.0, %v259
  %v261 = vpop.f32.mrf.mxu0
  %262 = vmatprep.mubr.bf16.mxu0 0
  %263 = vmatmul.mubr.bf16.gmra.mxu0 %v124
  %v264 = vpop.f32.mrf.mxu0
  %v265 = vadd.f32 0.0, %v264
  %v266 = vpop.f32.mrf.mxu0
  %v267 = vpop.f32.mrf.mxu0
  %v268 = vadd.f32 0.0, %v267
  %v269 = vpop.f32.mrf.mxu0
  %270 = vmatprep.mubr.bf16.mxu0 0
  %271 = vmatmul.mubr.bf16.gmra.mxu0 %v125
  %v272 = vpop.f32.mrf.mxu0
  %v273 = vadd.f32 0.0, %v272
  %v274 = vpop.f32.mrf.mxu0
  %v275 = vpop.f32.mrf.mxu0
  %v276 = vadd.f32 0.0, %v275
  %v277 = vpop.f32.mrf.mxu0
  %278 = vdwg.mxu0
  %v279 = vadd.f32 %v38, %v217
  %v280 = vadd.f32 %v39, %v220
  %v281 = vadd.f32 %v40, %v225
  %v282 = vadd.f32 %v41, %v228
  %v283 = vadd.f32 %v42, %v233
  %v284 = vadd.f32 %v43, %v236
  %v285 = vadd.f32 %v44, %v241
  %v286 = vadd.f32 %v45, %v244
  %v287 = vadd.f32 %v46, %v249
  %v288 = vadd.f32 %v47, %v252
  %v289 = vadd.f32 %v48, %v257
  %v290 = vadd.f32 %v49, %v260
  %v291 = vadd.f32 %v50, %v265
  %v292 = vadd.f32 %v51, %v268
  %v293 = vadd.f32 %v52, %v273
  %v294 = vadd.f32 %v53, %v276
  %295 = vst [vmem:[#allocation2] sm:$0xff] %v279
  %296 = vst [vmem:[#allocation2 + $0x8] sm:$0xff] %v280
  %297 = vst [vmem:[#allocation2 + $0x10] sm:$0xff] %v281
  %298 = vst [vmem:[#allocation2 + $0x18] sm:$0xff] %v282
  %299 = vst [vmem:[#allocation2 + $0x20] sm:$0xff] %v283
  %300 = vst [vmem:[#allocation2 + $0x28] sm:$0xff] %v284
  %301 = vst [vmem:[#allocation2 + $0x30] sm:$0xff] %v285
  %302 = vst [vmem:[#allocation2 + $0x38] sm:$0xff] %v286
  %303 = vst [vmem:[#allocation2 + $0x40] sm:$0xff] %v287
  %304 = vst [vmem:[#allocation2 + $0x48] sm:$0xff] %v288
  %305 = vst [vmem:[#allocation2 + $0x50] sm:$0xff] %v289
  %306 = vst [vmem:[#allocation2 + $0x58] sm:$0xff] %v290
  %307 = vst [vmem:[#allocation2 + $0x60] sm:$0xff] %v291
  %308 = vst [vmem:[#allocation2 + $0x68] sm:$0xff] %v292
  %309 = vst [vmem:[#allocation2 + $0x70] sm:$0xff] %v293
  %310 = vst [vmem:[#allocation2 + $0x78] sm:$0xff] %v294
  // Predicated region
  $region22: #{netg_forward.19} parent=0 // pred_check
    %p311 = pneg %p18
  $region23: #{netg_forward.19} parent=0 // pred_check_branch
    %313 = sbr.rel (%p311) target = $region25
  $region24: #{netg_forward.19} parent=0 // pred_region
    %v314 = vld [vmem:[#allocation2] sm:$0xff]
    %v315 = vld [vmem:[#allocation2 + $0x8] sm:$0xff]
    %v316 = vld [vmem:[#allocation2 + $0x10] sm:$0xff]
    %v317 = vld [vmem:[#allocation2 + $0x18] sm:$0xff]
    %v318 = vld [vmem:[#allocation2 + $0x20] sm:$0xff]
    %v319 = vld [vmem:[#allocation2 + $0x28] sm:$0xff]
    %v320 = vld [vmem:[#allocation2 + $0x30] sm:$0xff]
    %v321 = vld [vmem:[#allocation2 + $0x38] sm:$0xff]
    %v322 = vld [vmem:[#allocation2 + $0x40] sm:$0xff]
    %v323 = vld [vmem:[#allocation2 + $0x48] sm:$0xff]
    %v324 = vld [vmem:[#allocation2 + $0x50] sm:$0xff]
    %v325 = vld [vmem:[#allocation2 + $0x58] sm:$0xff]
    %v326 = vld [vmem:[#allocation2 + $0x60] sm:$0xff]
    %v327 = vld [vmem:[#allocation2 + $0x68] sm:$0xff]
    %v328 = vld [vmem:[#allocation2 + $0x70] sm:$0xff]
    %v329 = vld [vmem:[#allocation2 + $0x78] sm:$0xff]
    %v330 = vld [vmem:[%s2] sm:$0x1]
    %v332 = vlaneseq
    %v333 = vshrl.u32 %v332, 7
    %v334 = vsub.s32 0, %v333
    %v335 = vrot.slane %v330, %v334
    %v337 = vmul.f32 %v314, %v335
    %v338 = vmul.f32 %v315, %v335
    %v339 = vmul.f32 %v316, %v335
    %v340 = vmul.f32 %v317, %v335
    %v341 = vmul.f32 %v318, %v335
    %v342 = vmul.f32 %v319, %v335
    %v343 = vmul.f32 %v320, %v335
    %v344 = vmul.f32 %v321, %v335
    %v345 = vmul.f32 %v322, %v335
    %v346 = vmul.f32 %v323, %v335
    %v347 = vmul.f32 %v324, %v335
    %v348 = vmul.f32 %v325, %v335
    %v349 = vmul.f32 %v326, %v335
    %v350 = vmul.f32 %v327, %v335
    %v351 = vmul.f32 %v328, %v335
    %v352 = vmul.f32 %v329, %v335
    %v353 = vld [vmem:[%s3] sm:$0x1]
    %v355 = vlaneseq
    %v356 = vshrl.u32 %v355, 7
    %v357 = vsub.s32 0, %v356
    %v358 = vrot.slane %v353, %v357
    %v360 = vadd.f32 %v337, %v358
    %v361 = vadd.f32 %v338, %v358
    %v362 = vadd.f32 %v339, %v358
    %v363 = vadd.f32 %v340, %v358
    %v364 = vadd.f32 %v341, %v358
    %v365 = vadd.f32 %v342, %v358
    %v366 = vadd.f32 %v343, %v358
    %v367 = vadd.f32 %v344, %v358
    %v368 = vadd.f32 %v345, %v358
    %v369 = vadd.f32 %v346, %v358
    %v370 = vadd.f32 %v347, %v358
    %v371 = vadd.f32 %v348, %v358
    %v372 = vadd.f32 %v349, %v358
    %v373 = vadd.f32 %v350, %v358
    %v374 = vadd.f32 %v351, %v358
    %v375 = vadd.f32 %v352, %v358
    %v376 = vpack.c.bf16 %v361, %v360
    %v377 = vpack.c.bf16 %v363, %v362
    %v378 = vpack.c.bf16 %v365, %v364
    %v379 = vpack.c.bf16 %v367, %v366
    %v380 = vpack.c.bf16 %v369, %v368
    %v381 = vpack.c.bf16 %v371, %v370
    %v382 = vpack.c.bf16 %v373, %v372
    %v383 = vpack.c.bf16 %v375, %v374
    %v392 = vunpack.c.l.b16 %v376
    %v393 = vunpack.c.h.b16 %v376
    %v394 = vunpack.c.l.b16 %v377
    %v395 = vunpack.c.h.b16 %v377
    %v396 = vunpack.c.l.b16 %v378
    %v397 = vunpack.c.h.b16 %v378
    %v398 = vunpack.c.l.b16 %v379
    %v399 = vunpack.c.h.b16 %v379
    %v400 = vunpack.c.l.b16 %v380
    %v401 = vunpack.c.h.b16 %v380
    %v402 = vunpack.c.l.b16 %v381
    %v403 = vunpack.c.h.b16 %v381
    %v404 = vunpack.c.l.b16 %v382
    %v405 = vunpack.c.h.b16 %v382
    %v406 = vunpack.c.l.b16 %v383
    %v407 = vunpack.c.h.b16 %v383
    %v408 = vpack.c.b16 %v392, %v392
    %v409 = vpack.c.b16 %v393, %v393
    %v410 = vpack.c.b16 %v394, %v394
    %v411 = vpack.c.b16 %v395, %v395
    %v412 = vpack.c.b16 %v396, %v396
    %v413 = vpack.c.b16 %v397, %v397
    %v414 = vpack.c.b16 %v398, %v398
    %v415 = vpack.c.b16 %v399, %v399
    %v416 = vpack.c.b16 %v400, %v400
    %v417 = vpack.c.b16 %v401, %v401
    %v418 = vpack.c.b16 %v402, %v402
    %v419 = vpack.c.b16 %v403, %v403
    %v420 = vpack.c.b16 %v404, %v404
    %v421 = vpack.c.b16 %v405, %v405
    %v422 = vpack.c.b16 %v406, %v406
    %v423 = vpack.c.b16 %v407, %v407
    %440 = vst [vmem:[%s4] sm:$0xf] %v408
    %441 = vst [vmem:[%s4 + $0x4] sm:$0xf] %v409
    %442 = vst [vmem:[%s4 + $0x8] sm:$0xf] %v410
    %443 = vst [vmem:[%s4 + $0xc] sm:$0xf] %v411
    %444 = vst [vmem:[%s4 + $0x10] sm:$0xf] %v412
    %445 = vst [vmem:[%s4 + $0x14] sm:$0xf] %v413
    %446 = vst [vmem:[%s4 + $0x18] sm:$0xf] %v414
    %447 = vst [vmem:[%s4 + $0x1c] sm:$0xf] %v415
    %448 = vst [vmem:[%s4 + $0x20] sm:$0xf] %v416
    %449 = vst [vmem:[%s4 + $0x24] sm:$0xf] %v417
    %450 = vst [vmem:[%s4 + $0x28] sm:$0xf] %v418
    %451 = vst [vmem:[%s4 + $0x2c] sm:$0xf] %v419
    %452 = vst [vmem:[%s4 + $0x30] sm:$0xf] %v420
    %453 = vst [vmem:[%s4 + $0x34] sm:$0xf] %v421
    %454 = vst [vmem:[%s4 + $0x38] sm:$0xf] %v422
    %455 = vst [vmem:[%s4 + $0x3c] sm:$0xf] %v423
  $region25: #{netg_forward.19} parent=0 // pred_fallthru
    _
  // Predicated region
  $region26: #{netg_forward.19} parent=0 // pred_check
    _
  $region27: #{netg_forward.19} parent=0 // pred_check_branch
    %457 = sbr.rel (0) target = $region29
  $region28: #{netg_forward.19} parent=0 // pred_region
    _
  $region29: #{netg_forward.19} parent=0 // pred_fallthru
    _
  // Predicated region
  $region30: #{netg_forward.19} parent=0 // pred_check
    _
  $region31: #{netg_forward.19} parent=0 // pred_check_branch
    %459 = sbr.rel (0) target = $region33
  $region32: #{netg_forward.19} parent=0 // pred_region
    _
  $region33: #{netg_forward.19} parent=0 // pred_fallthru
    _

// kernel: netg_forward.23
$region0: #{netg_forward.23}
  #allocation0 [shape = 'u32[]', space=smem, size = 0x4, offset = 0x4, fixed_abs, tag = 'smem constant byte address 0x4 - core index']
  #allocation1 [shape = 'u32[144,128]{1,0:T(1,128)}', space=vmem, size = 0x12000, scoped, tag = 'internal scratch']
  %s0 = inlined_call_operand.vmem [shape: f32[512,128], index: 0, kind: input, shape index: {}]
  %s1 = inlined_call_operand.vmem [shape: f32[1,128], index: 1, kind: input, shape index: {}]
  %s2 = inlined_call_operand.vmem [shape: f32[1,128], index: 2, kind: input, shape index: {}]
  %s3 = inlined_call_operand.vmem [shape: f32[512,128], index: 3, kind: output, shape index: {}]
  %s4 = sld [smem:[#allocation0]]
  $region45: #{netg_forward.23} parent=0
    _
  %s6 = ssub.s32 1, %s4
  %s7 = scalar_select 0, %s6, %s4
  loop: start=0, step=1, limit=4
  $region2: #{netg_forward.23} parent=0 // loop_pre_header
    _
  $region3: #{netg_forward.23} parent=0 // loop_header
    %s9 = sphi 0, %s13
    %p10 = scmp.ge.s32.totalorder %s9, 4
    %s19 = sphi 0, %s21
    %s22 = sphi 0, %s19
    %s23 = sphi 0, %s22
    %s39 = sphi 0, %s23
    %s43 = sphi 0, %s43
    %s45 = sphi 0, %s43
    %s46 = sphi 0, %s45
    %s60 = sphi 0, %s46
    %s64 = sphi 0, %s64
    %s66 = sphi 0, %s64
    %s67 = sphi 0, %s66
    %s81 = sphi 0, %s67
    %s87 = sphi 0, %s89
    %s90 = sphi 0, %s87
    %s91 = sphi 0, %s90
    %s107 = sphi 0, %s91
  $region4: #{netg_forward.23} parent=0 // loop_header_branch
    %12 = sbr.rel (%p10) target = $region8
  $region5: #{netg_forward.23} parent=0 // loop_body
    %s14 = ssub.s32 %s9, 1
    %s15 = ssub.s32 %s9, 2
    %s16 = sadd.s32 %s9, 1
    %s17 = ssub.s32 %s9, %s16
    %p18 = scmp.eq.s32.totalorder %s17, 0
    %s20 = sadd.s32 %s19, 1
    %s21 = scalar_select %p18, %s19, %s20
    %p24 = pneg %p18
    %p25 = scmp.eq.s32.totalorder %s9, 1
    %p26 = por %p24, %p25
    %p27 = scmp.ne.s32.totalorder %s19, %s22
    %p28 = scmp.eq.s32.totalorder %s9, 0
    %p29 = por %p27, %p28
    %p30 = scmp.ne.s32.totalorder %s19, %s22
    %p31 = scmp.eq.s32.totalorder %s14, 1
    %p32 = por %p30, %p31
    %p33 = scmp.ne.s32.totalorder %s22, %s23
    %p34 = scmp.eq.s32.totalorder %s14, 0
    %p35 = por %p33, %p34
    %p36 = scmp.ne.s32.totalorder %s22, %s23
    %p37 = scmp.eq.s32.totalorder %s15, 1
    %p38 = por %p36, %p37
    %p40 = scmp.ne.s32.totalorder %s23, %s39
    %p41 = scmp.eq.s32.totalorder %s15, 0
    %p42 = por %p40, %p41
    %s44 = sadd.s32 %s43, 1
    %p47 = scmp.eq.s32.totalorder %s9, 1
    %p48 = scmp.ne.s32.totalorder %s43, %s45
    %p49 = scmp.eq.s32.totalorder %s9, 0
    %p50 = por %p48, %p49
    %p51 = scmp.ne.s32.totalorder %s43, %s45
    %p52 = scmp.eq.s32.totalorder %s14, 1
    %p53 = por %p51, %p52
    %p54 = scmp.ne.s32.totalorder %s45, %s46
    %p55 = scmp.eq.s32.totalorder %s14, 0
    %p56 = por %p54, %p55
    %p57 = scmp.ne.s32.totalorder %s45, %s46
    %p58 = scmp.eq.s32.totalorder %s15, 1
    %p59 = por %p57, %p58
    %p61 = scmp.ne.s32.totalorder %s46, %s60
    %p62 = scmp.eq.s32.totalorder %s15, 0
    %p63 = por %p61, %p62
    %s65 = sadd.s32 %s64, 1
    %p68 = scmp.eq.s32.totalorder %s9, 1
    %p69 = scmp.ne.s32.totalorder %s64, %s66
    %p70 = scmp.eq.s32.totalorder %s9, 0
    %p71 = por %p69, %p70
    %p72 = scmp.ne.s32.totalorder %s64, %s66
    %p73 = scmp.eq.s32.totalorder %s14, 1
    %p74 = por %p72, %p73
    %p75 = scmp.ne.s32.totalorder %s66, %s67
    %p76 = scmp.eq.s32.totalorder %s14, 0
    %p77 = por %p75, %p76
    %p78 = scmp.ne.s32.totalorder %s66, %s67
    %p79 = scmp.eq.s32.totalorder %s15, 1
    %p80 = por %p78, %p79
    %p82 = scmp.ne.s32.totalorder %s67, %s81
    %p83 = scmp.eq.s32.totalorder %s15, 0
    %p84 = por %p82, %p83
    %s85 = ssub.s32 %s9, %s16
    %p86 = scmp.eq.s32.totalorder %s85, 0
    %s88 = sadd.s32 %s87, 1
    %s89 = scalar_select %p86, %s87, %s88
    %p92 = pneg %p86
    %p93 = scmp.eq.s32.totalorder %s9, 1
    %p94 = por %p92, %p93
    %p95 = scmp.ne.s32.totalorder %s87, %s90
    %p96 = scmp.eq.s32.totalorder %s9, 0
    %p97 = por %p95, %p96
    %p98 = scmp.ne.s32.totalorder %s87, %s90
    %p99 = scmp.eq.s32.totalorder %s14, 1
    %p100 = por %p98, %p99
    %p101 = scmp.ne.s32.totalorder %s90, %s91
    %p102 = scmp.eq.s32.totalorder %s14, 0
    %p103 = por %p101, %p102
    %p104 = scmp.ne.s32.totalorder %s90, %s91
    %p105 = scmp.eq.s32.totalorder %s15, 1
    %p106 = por %p104, %p105
    %p108 = scmp.ne.s32.totalorder %s91, %s107
    %p109 = scmp.eq.s32.totalorder %s15, 0
    %p110 = por %p108, %p109
    %p111 = scmp.le.s32.totalorder 1, %s9
    %p112 = scmp.lt.s32.totalorder %s9, 3
    %p113 = pnand %p111, %p112
    %p114 = pneg %p113
    // Predicated region
    $region9: #{netg_forward.23} parent=5 // pred_check
      _
    $region10: #{netg_forward.23} parent=5 // pred_check_branch
      %116 = sbr.rel (%p113) target = $region12
    $region11: #{netg_forward.23} parent=5 // pred_region
      %s117 = ssub.s32 %s9, 1
      // Predicated region
      $region13: #{netg_forward.23} parent=11 // pred_check
        %p118 = pneg %p56
      $region14: #{netg_forward.23} parent=11 // pred_check_branch
        %120 = sbr.rel (%p118) target = $region16
      $region15: #{netg_forward.23} parent=11 // pred_region
        _
      $region16: #{netg_forward.23} parent=11 // pred_fallthru
        _
      // Predicated region
      $region17: #{netg_forward.23} parent=11 // pred_check
        %p121 = pneg %p77
      $region18: #{netg_forward.23} parent=11 // pred_check_branch
        %123 = sbr.rel (%p121) target = $region20
      $region19: #{netg_forward.23} parent=11 // pred_region
        _
      $region20: #{netg_forward.23} parent=11 // pred_fallthru
        _
    $region12: #{netg_forward.23} parent=5 // pred_fallthru
      _
    %p124 = scmp.lt.s32.totalorder %s9, 2
    // Predicated region
    $region21: #{netg_forward.23} parent=5 // pred_check
      %p125 = pneg %p124
    $region22: #{netg_forward.23} parent=5 // pred_check_branch
      %127 = sbr.rel (%p125) target = $region24
    $region23: #{netg_forward.23} parent=5 // pred_region
      // Predicated region
      $region25: #{netg_forward.23} parent=23 // pred_check
        %p128 = pneg %p29
      $region26: #{netg_forward.23} parent=23 // pred_check_branch
        %130 = sbr.rel (%p128) target = $region28
      $region27: #{netg_forward.23} parent=23 // pred_region
        %s131 = smul.u32 32, %s9
        %p132 = scmp.lt.s32.totalorder %s131, 63
        %s133 = scalar_select %p132, %s131, 63
        %s134 = smul.addr %s133, 8
        %s135 = scalar_lea.vmem %s0, %s134
        %s136 = smul.u32 32, %s9
      $region28: #{netg_forward.23} parent=23 // pred_fallthru
        _
    $region24: #{netg_forward.23} parent=5 // pred_fallthru
      _
    %p137 = scmp.le.s32.totalorder 1, %s9
    %p138 = scmp.lt.s32.totalorder %s9, 3
    %p139 = pnand %p137, %p138
    %p140 = pneg %p139
    // Predicated region
    $region29: #{netg_forward.23} parent=5 // pred_check
      _
    $region30: #{netg_forward.23} parent=5 // pred_check_branch
      %142 = sbr.rel (%p139) target = $region32
    $region31: #{netg_forward.23} parent=5 // pred_region
      %s143 = ssub.s32 %s9, 1
      %s144 = smul.u32 32, %s14
      %p145 = scmp.lt.s32.totalorder %s144, 63
      %s146 = scalar_select %p145, %s144, 63
      %s147 = smul.addr %s146, 8
      %s148 = scalar_lea.vmem %s0, %s147
      %p149 = pneg %p35
      %p150 = pneg %p32
      %p151 = pneg %p56
      %p152 = pneg %p53
      %p153 = pneg %p77
      %p154 = pneg %p74
      %p155 = pneg %p103
      %p156 = pneg %p100
      %s157 = smul.u32 32, %s14
      %p158 = scmp.lt.s32.totalorder %s157, 63
      %s159 = scalar_select %p158, %s157, 63
      %s160 = smul.addr %s159, 8
      %s161 = scalar_lea.vmem %s3, %s160
      %s162 = smul.u32 32, %s14
      %p163 = scmp.lt.s32.totalorder %s162, 63
      %s164 = scalar_select %p163, %s162, 63
      %s165 = smul.addr %s164, 8
      %s166 = scalar_lea.vmem %s0, %s165
      %s167 = smul.u32 32, %s14
      %s168 = smul.u32 32, %s14
      %p169 = scmp.lt.s32.totalorder %s168, 63
      %s170 = scalar_select %p169, %s168, 63
      %s171 = smul.addr %s170, 8
      %s172 = scalar_lea.vmem %s3, %s171
      %s173 = smul.u32 32, %s14
      %v174 = vld [vmem:[%s166] sm:$0xff]
      %v175 = vld [vmem:[%s166 + $0x8] sm:$0xff]
      %v176 = vld [vmem:[%s166 + $0x10] sm:$0xff]
      %v177 = vld [vmem:[%s166 + $0x18] sm:$0xff]
      %v178 = vld [vmem:[%s166 + $0x20] sm:$0xff]
      %v179 = vld [vmem:[%s166 + $0x28] sm:$0xff]
      %v180 = vld [vmem:[%s166 + $0x30] sm:$0xff]
      %v181 = vld [vmem:[%s166 + $0x38] sm:$0xff]
      %v182 = vld [vmem:[%s166 + $0x40] sm:$0xff]
      %v183 = vld [vmem:[%s166 + $0x48] sm:$0xff]
      %v184 = vld [vmem:[%s166 + $0x50] sm:$0xff]
      %v185 = vld [vmem:[%s166 + $0x58] sm:$0xff]
      %v186 = vld [vmem:[%s166 + $0x60] sm:$0xff]
      %v187 = vld [vmem:[%s166 + $0x68] sm:$0xff]
      %v188 = vld [vmem:[%s166 + $0x70] sm:$0xff]
      %v189 = vld [vmem:[%s166 + $0x78] sm:$0xff]
      %v190 = vld [vmem:[%s166 + $0x80] sm:$0xff]
      %v191 = vld [vmem:[%s166 + $0x88] sm:$0xff]
      %v192 = vld [vmem:[%s166 + $0x90] sm:$0xff]
      %v193 = vld [vmem:[%s166 + $0x98] sm:$0xff]
      %v194 = vld [vmem:[%s166 + $0xa0] sm:$0xff]
      %v195 = vld [vmem:[%s166 + $0xa8] sm:$0xff]
      %v196 = vld [vmem:[%s166 + $0xb0] sm:$0xff]
      %v197 = vld [vmem:[%s166 + $0xb8] sm:$0xff]
      %v198 = vld [vmem:[%s166 + $0xc0] sm:$0xff]
      %v199 = vld [vmem:[%s166 + $0xc8] sm:$0xff]
      %v200 = vld [vmem:[%s166 + $0xd0] sm:$0xff]
      %v201 = vld [vmem:[%s166 + $0xd8] sm:$0xff]
      %v202 = vld [vmem:[%s166 + $0xe0] sm:$0xff]
      %v203 = vld [vmem:[%s166 + $0xe8] sm:$0xff]
      %v204 = vld [vmem:[%s166 + $0xf0] sm:$0xff]
      %v205 = vld [vmem:[%s166 + $0xf8] sm:$0xff]
      %v206 = vld [vmem:[%s1] sm:$0x1]
      %v208 = vlaneseq
      %v209 = vshrl.u32 %v208, 7
      %v210 = vsub.s32 0, %v209
      %v211 = vrot.slane %v206, %v210
      %v213 = vmul.f32 %v174, %v211
      %v214 = vmul.f32 %v175, %v211
      %v215 = vmul.f32 %v176, %v211
      %v216 = vmul.f32 %v177, %v211
      %v217 = vmul.f32 %v178, %v211
      %v218 = vmul.f32 %v179, %v211
      %v219 = vmul.f32 %v180, %v211
      %v220 = vmul.f32 %v181, %v211
      %v221 = vmul.f32 %v182, %v211
      %v222 = vmul.f32 %v183, %v211
      %v223 = vmul.f32 %v184, %v211
      %v224 = vmul.f32 %v185, %v211
      %v225 = vmul.f32 %v186, %v211
      %v226 = vmul.f32 %v187, %v211
      %v227 = vmul.f32 %v188, %v211
      %v228 = vmul.f32 %v189, %v211
      %v229 = vmul.f32 %v190, %v211
      %v230 = vmul.f32 %v191, %v211
      %v231 = vmul.f32 %v192, %v211
      %v232 = vmul.f32 %v193, %v211
      %v233 = vmul.f32 %v194, %v211
      %v234 = vmul.f32 %v195, %v211
      %v235 = vmul.f32 %v196, %v211
      %v236 = vmul.f32 %v197, %v211
      %v237 = vmul.f32 %v198, %v211
      %v238 = vmul.f32 %v199, %v211
      %v239 = vmul.f32 %v200, %v211
      %v240 = vmul.f32 %v201, %v211
      %v241 = vmul.f32 %v202, %v211
      %v242 = vmul.f32 %v203, %v211
      %v243 = vmul.f32 %v204, %v211
      %v244 = vmul.f32 %v205, %v211
      %v245 = vld [vmem:[%s2] sm:$0x1]
      %v247 = vlaneseq
      %v248 = vshrl.u32 %v247, 7
      %v249 = vsub.s32 0, %v248
      %v250 = vrot.slane %v245, %v249
      %v252 = vadd.f32 %v213, %v250
      %v253 = vadd.f32 %v214, %v250
      %v254 = vadd.f32 %v215, %v250
      %v255 = vadd.f32 %v216, %v250
      %v256 = vadd.f32 %v217, %v250
      %v257 = vadd.f32 %v218, %v250
      %v258 = vadd.f32 %v219, %v250
      %v259 = vadd.f32 %v220, %v250
      %v260 = vadd.f32 %v221, %v250
      %v261 = vadd.f32 %v222, %v250
      %v262 = vadd.f32 %v223, %v250
      %v263 = vadd.f32 %v224, %v250
      %v264 = vadd.f32 %v225, %v250
      %v265 = vadd.f32 %v226, %v250
      %v266 = vadd.f32 %v227, %v250
      %v267 = vadd.f32 %v228, %v250
      %v268 = vadd.f32 %v229, %v250
      %v269 = vadd.f32 %v230, %v250
      %v270 = vadd.f32 %v231, %v250
      %v271 = vadd.f32 %v232, %v250
      %v272 = vadd.f32 %v233, %v250
      %v273 = vadd.f32 %v234, %v250
      %v274 = vadd.f32 %v235, %v250
      %v275 = vadd.f32 %v236, %v250
      %v276 = vadd.f32 %v237, %v250
      %v277 = vadd.f32 %v238, %v250
      %v278 = vadd.f32 %v239, %v250
      %v279 = vadd.f32 %v240, %v250
      %v280 = vadd.f32 %v241, %v250
      %v281 = vadd.f32 %v242, %v250
      %v282 = vadd.f32 %v243, %v250
      %v283 = vadd.f32 %v244, %v250
      %v284 = vtanh.pop %v252
      %v285 = vtanh.pop %v253
      %v286 = vtanh.pop %v254
      %v287 = vtanh.pop %v255
      %v288 = vtanh.pop %v256
      %v289 = vtanh.pop %v257
      %v290 = vtanh.pop %v258
      %v291 = vtanh.pop %v259
      %v292 = vtanh.pop %v260
      %v293 = vtanh.pop %v261
      %v294 = vtanh.pop %v262
      %v295 = vtanh.pop %v263
      %v296 = vtanh.pop %v264
      %v297 = vtanh.pop %v265
      %v298 = vtanh.pop %v266
      %v299 = vtanh.pop %v267
      %v300 = vtanh.pop %v268
      %v301 = vtanh.pop %v269
      %v302 = vtanh.pop %v270
      %v303 = vtanh.pop %v271
      %v304 = vtanh.pop %v272
      %v305 = vtanh.pop %v273
      %v306 = vtanh.pop %v274
      %v307 = vtanh.pop %v275
      %v308 = vtanh.pop %v276
      %v309 = vtanh.pop %v277
      %v310 = vtanh.pop %v278
      %v311 = vtanh.pop %v279
      %v312 = vtanh.pop %v280
      %v313 = vtanh.pop %v281
      %v314 = vtanh.pop %v282
      %v315 = vtanh.pop %v283
      %316 = vst [vmem:[%s172] sm:$0xff] %v284
      %317 = vst [vmem:[%s172 + $0x8] sm:$0xff] %v285
      %318 = vst [vmem:[%s172 + $0x10] sm:$0xff] %v286
      %319 = vst [vmem:[%s172 + $0x18] sm:$0xff] %v287
      %320 = vst [vmem:[%s172 + $0x20] sm:$0xff] %v288
      %321 = vst [vmem:[%s172 + $0x28] sm:$0xff] %v289
      %322 = vst [vmem:[%s172 + $0x30] sm:$0xff] %v290
      %323 = vst [vmem:[%s172 + $0x38] sm:$0xff] %v291
      %324 = vst [vmem:[%s172 + $0x40] sm:$0xff] %v292
      %325 = vst [vmem:[%s172 + $0x48] sm:$0xff] %v293
      %326 = vst [vmem:[%s172 + $0x50] sm:$0xff] %v294
      %327 = vst [vmem:[%s172 + $0x58] sm:$0xff] %v295
      %328 = vst [vmem:[%s172 + $0x60] sm:$0xff] %v296
      %329 = vst [vmem:[%s172 + $0x68] sm:$0xff] %v297
      %330 = vst [vmem:[%s172 + $0x70] sm:$0xff] %v298
      %331 = vst [vmem:[%s172 + $0x78] sm:$0xff] %v299
      %332 = vst [vmem:[%s172 + $0x80] sm:$0xff] %v300
      %333 = vst [vmem:[%s172 + $0x88] sm:$0xff] %v301
      %334 = vst [vmem:[%s172 + $0x90] sm:$0xff] %v302
      %335 = vst [vmem:[%s172 + $0x98] sm:$0xff] %v303
      %336 = vst [vmem:[%s172 + $0xa0] sm:$0xff] %v304
      %337 = vst [vmem:[%s172 + $0xa8] sm:$0xff] %v305
      %338 = vst [vmem:[%s172 + $0xb0] sm:$0xff] %v306
      %339 = vst [vmem:[%s172 + $0xb8] sm:$0xff] %v307
      %340 = vst [vmem:[%s172 + $0xc0] sm:$0xff] %v308
      %341 = vst [vmem:[%s172 + $0xc8] sm:$0xff] %v309
      %342 = vst [vmem:[%s172 + $0xd0] sm:$0xff] %v310
      %343 = vst [vmem:[%s172 + $0xd8] sm:$0xff] %v311
      %344 = vst [vmem:[%s172 + $0xe0] sm:$0xff] %v312
      %345 = vst [vmem:[%s172 + $0xe8] sm:$0xff] %v313
      %346 = vst [vmem:[%s172 + $0xf0] sm:$0xff] %v314
      %347 = vst [vmem:[%s172 + $0xf8] sm:$0xff] %v315
      %s348 = smul.u32 32, %s14
      %p349 = scmp.lt.s32.totalorder %s348, 63
      %s350 = scalar_select %p349, %s348, 63
      %s351 = smul.addr %s350, 8
      %s352 = scalar_lea.vmem %s3, %s351
      // Predicated region
      $region33: #{netg_forward.23} parent=31 // pred_check
        %p353 = pneg %p100
      $region34: #{netg_forward.23} parent=31 // pred_check_branch
        %355 = sbr.rel (%p353) target = $region36
      $region35: #{netg_forward.23} parent=31 // pred_region
        %s356 = smul.u32 32, %s14
      $region36: #{netg_forward.23} parent=31 // pred_fallthru
        _
    $region32: #{netg_forward.23} parent=5 // pred_fallthru
      _
    %p357 = scmp.le.s32.totalorder 2, %s9
    // Predicated region
    $region37: #{netg_forward.23} parent=5 // pred_check
      %p358 = pneg %p357
    $region38: #{netg_forward.23} parent=5 // pred_check_branch
      %360 = sbr.rel (%p358) target = $region40
    $region39: #{netg_forward.23} parent=5 // pred_region
      %s361 = ssub.s32 %s9, 2
      // Predicated region
      $region41: #{netg_forward.23} parent=39 // pred_check
        %p362 = pneg %p106
      $region42: #{netg_forward.23} parent=39 // pred_check_branch
        %364 = sbr.rel (%p362) target = $region44
      $region43: #{netg_forward.23} parent=39 // pred_region
        %s365 = smul.u32 32, %s15
        %p366 = scmp.lt.s32.totalorder %s365, 63
        %s367 = scalar_select %p366, %s365, 63
        %s368 = smul.addr %s367, 8
        %s369 = scalar_lea.vmem %s3, %s368
      $region44: #{netg_forward.23} parent=39 // pred_fallthru
        _
    $region40: #{netg_forward.23} parent=5 // pred_fallthru
      _
  $region6: #{netg_forward.23} parent=0 // loop_footer
    %s13 = sadd.s32 1, %s9
  $region7: #{netg_forward.23} parent=0 // loop_footer_branch
    %8 = sbr.rel target = $region3
  $region8: #{netg_forward.23} parent=0 // loop_exit
    _

</llo_original>
